<compile_context>
chip_gen: v7x
topology: tpu7x:2x2x1
jax: 0.10.0
libtpu: 0.0.40
codegen_flags: <defaults>
</compile_context>

<pallas_src>
import functools

import jax
import jax.numpy as jnp
from jax.experimental import pallas as pl
from jax.experimental.pallas import tpu as pltpu


# -----------------------------------------------------------------------------
# Fused kernel: dw-conv+BN (q/k/v) -> linear q/k/v -> MHA -> output projection.
# One grid step == one batch element.
# -----------------------------------------------------------------------------
def _fused_attention_kernel(x_ref, cw_ref, cs_ref, cb_ref,
                            wq_ref, wk_ref, wv_ref, wp_ref, bp_ref,
                            o_ref, pad_ref, tok_ref,
                            *, H, W, T, TP, num_heads, scale):
    # x_ref   : (1, T, C)      f32 tokens  (cls + H*W spatial), C = dim_in
    # cw_ref  : (3, 9, C)      f32 depthwise 3x3 taps for q/k/v (row = 3*di+dj)
    # cs_ref  : (3, C)         f32 folded BN scale   gamma / sqrt(var + eps)
    # cb_ref  : (3, C)         f32 folded BN bias    beta - mean * scale
    # wq/wk/wv: (C, Cout)      bf16 linear projection weights (pre-transposed)
    # wp_ref  : (Cout, Cout)   bf16 output projection weight
    # bp_ref  : (1, Cout)      f32 output projection bias
    # o_ref   : (1, T, Cout)
    # pad_ref : (H+2, W+2, C)  f32 VMEM scratch (zero-padded spatial input)
    # tok_ref : (3, TP, C)     f32 VMEM scratch (q/k/v token inputs padded to TP)
    HW = H * W
    C = x_ref.shape[-1]
    Cout = o_ref.shape[-1]

    cls_tok = x_ref[0, 0:1, :].astype(jnp.float32)          # (1, C)
    xs_flat = x_ref[0, 1:1 + HW, :].astype(jnp.float32)     # (HW, C)

    # ---- zero-padded spatial input built once in VMEM (shared by q/k/v) -----
    pad_ref[...] = jnp.zeros_like(pad_ref)
    for i in range(H):
        pad_ref[1 + i, 1:W + 1, :] = xs_flat[i * W:(i + 1) * W, :]
    xpad = pad_ref[...]                                      # (H+2, W+2, C)

    # ---- depthwise 3x3 conv, stride 1, pad 1: q/k/v share every input tap ---
    accs = [jnp.zeros((H, W, C), jnp.float32) for _ in range(3)]
    for di in range(3):
        for dj in range(3):
            patch = xpad[di:di + H, dj:dj + W, :]
            for b in range(3):
                accs[b] = accs[b] + patch * cw_ref[b, 3 * di + dj, :][None, None, :]

    # ---- folded BatchNorm + re-attach cls token into TP-padded token rows ---
    tok_ref[...] = jnp.zeros_like(tok_ref)   # rows >= 1+HW stay zero (padding)
    for b in range(3):
        y_b = accs[b] * cs_ref[b][None, None, :] + cb_ref[b][None, None, :]
        tok_ref[b, 0:1, :] = cls_tok
        for i in range(H):
            tok_ref[b, 1 + i * W:1 + (i + 1) * W, :] = y_b[i]

    # ---- linear q/k/v projections (bf16 operands, f32 MXU accumulation) -----
    Q = jnp.dot(tok_ref[0].astype(jnp.bfloat16), wq_ref[...],
                preferred_element_type=jnp.float32)          # (TP, Cout)
    K = jnp.dot(tok_ref[1].astype(jnp.bfloat16), wk_ref[...],
                preferred_element_type=jnp.float32)
    V = jnp.dot(tok_ref[2].astype(jnp.bfloat16), wv_ref[...],
                preferred_element_type=jnp.float32)
    Q = Q * scale                       # fold softmax scale into Q once (f32)

    # Mask for padded key tokens (columns >= T of the score matrix).
    col_ids = jax.lax.broadcasted_iota(jnp.int32, (TP, TP), 1)
    col_valid = col_ids < T

    # ---- multi-head attention; heads accumulate through the output proj -----
    d = Cout // num_heads
    y = jnp.zeros((TP, Cout), jnp.float32)
    for hh in range(num_heads):
        sl = slice(hh * d, (hh + 1) * d)
        qh = Q[:, sl].astype(jnp.bfloat16)
        kh = K[:, sl].astype(jnp.bfloat16)
        vh = V[:, sl].astype(jnp.bfloat16)
        s = jax.lax.dot_general(qh, kh, (((1,), (1,)), ((), ())),
                                preferred_element_type=jnp.float32)  # (TP, TP)
        s = jnp.where(col_valid, s, -1e30)
        s = s - jnp.max(s, axis=-1, keepdims=True)
        p = jnp.exp(s)
        p = p * pl.reciprocal(jnp.sum(p, axis=-1, keepdims=True), approx=True)
        head = jnp.dot(p.astype(jnp.bfloat16), vh,
                       preferred_element_type=jnp.float32)           # (TP, d)
        # Accumulate this head via its slice of the output projection instead
        # of a lane-axis concatenate.
        y = y + jnp.dot(head.astype(jnp.bfloat16), wp_ref[sl, :],
                        preferred_element_type=jnp.float32)
    y = y + bp_ref[...]

    o_ref[0] = y[:T, :].astype(o_ref.dtype)


# -----------------------------------------------------------------------------
# Full Attention.forward (with_cls_token=True, method='dw_bn') — one launch.
# -----------------------------------------------------------------------------
def attention_forward(params, x, h, w, *, num_heads, dim_out):
    B, T, C = x.shape
    assert T == 1 + h * w
    scale = float(dim_out) ** -0.5
    TP = 128 * pl.cdiv(T, 128)          # token count padded to full lane width

    # Stack the three conv branches so the padded input is used once for all.
    cw = jnp.stack([params["q_conv_w"], params["k_conv_w"], params["v_conv_w"]])
    cs = jnp.stack([params["q_bn_scale"].reshape(-1),
                    params["k_bn_scale"].reshape(-1),
                    params["v_bn_scale"].reshape(-1)])
    cb = jnp.stack([params["q_bn_bias"].reshape(-1),
                    params["k_bn_bias"].reshape(-1),
                    params["v_bn_bias"].reshape(-1)])
    # Matmul operands in bf16 (f32 accumulation happens on the MXU).
    wq = params["wq"].astype(jnp.bfloat16)
    wk = params["wk"].astype(jnp.bfloat16)
    wv = params["wv"].astype(jnp.bfloat16)
    wp = params["wp"].astype(jnp.bfloat16)
    bp = params["bp"].reshape(1, -1).astype(jnp.float32)

    kernel = functools.partial(_fused_attention_kernel, H=h, W=w, T=T, TP=TP,
                               num_heads=num_heads, scale=scale)
    return pl.pallas_call(
        kernel,
        out_shape=jax.ShapeDtypeStruct((B, T, dim_out), x.dtype),
        grid=(B,),
        in_specs=[
            pl.BlockSpec((1, T, C), lambda b: (b, 0, 0)),
            pl.BlockSpec((3, 9, C), lambda b: (0, 0, 0)),
            pl.BlockSpec((3, C), lambda b: (0, 0)),
            pl.BlockSpec((3, C), lambda b: (0, 0)),
            pl.BlockSpec((C, dim_out), lambda b: (0, 0)),
            pl.BlockSpec((C, dim_out), lambda b: (0, 0)),
            pl.BlockSpec((C, dim_out), lambda b: (0, 0)),
            pl.BlockSpec((dim_out, dim_out), lambda b: (0, 0)),
            pl.BlockSpec((1, dim_out), lambda b: (0, 0)),
        ],
        out_specs=pl.BlockSpec((1, T, dim_out), lambda b: (b, 0, 0)),
        scratch_shapes=[
            pltpu.VMEM((h + 2, w + 2, C), jnp.float32),   # padded spatial input
            pltpu.VMEM((3, TP, C), jnp.float32),          # q/k/v token matrices
        ],
        compiler_params=pltpu.CompilerParams(
            dimension_semantics=("parallel",)),            # B>=2 feeds both v7x TCs
    )(x, cw, cs, cb, wq, wk, wv, wp, bp)


# -----------------------------------------------------------------------------
# Plain-JAX f32 reference (same math, no Pallas) for a correctness check.
# -----------------------------------------------------------------------------
def reference_forward(params, x, h, w, *, num_heads, dim_out):
    B, T, C = x.shape
    scale = float(dim_out) ** -0.5
    cls_tok = x[:, :1, :]
    xs = x[:, 1:, :].reshape(B, h, w, C)

    def ref_conv(name):
        xp = jnp.pad(xs, ((0, 0), (1, 1), (1, 1), (0, 0)))
        wt = params[f"{name}_conv_w"]
        acc = jnp.zeros((B, h, w, C), jnp.float32)
        for di in range(3):
            for dj in range(3):
                acc = acc + xp[:, di:di + h, dj:dj + w, :] * wt[3 * di + dj][None, None, None, :]
        y = acc * params[f"{name}_bn_scale"][0][None, None, None, :] \
              + params[f"{name}_bn_bias"][0][None, None, None, :]
        return jnp.concatenate([cls_tok, y.reshape(B, h * w, C)], axis=1)

    q = ref_conv("q") @ params["wq"]
    k = ref_conv("k") @ params["wk"]
    v = ref_conv("v") @ params["wv"]
    d = dim_out // num_heads
    q = q.reshape(B, T, num_heads, d).transpose(0, 2, 1, 3)
    k = k.reshape(B, T, num_heads, d).transpose(0, 2, 1, 3)
    v = v.reshape(B, T, num_heads, d).transpose(0, 2, 1, 3)
    s = jnp.einsum("bhlk,bhtk->bhlt", q, k) * scale
    p = jax.nn.softmax(s, axis=-1)
    o = jnp.einsum("bhlt,bhtv->bhlv", p, v)
    o = o.transpose(0, 2, 1, 3).reshape(B, T, dim_out)
    return o @ params["wp"] + params["bp"][None, None, :]


# -----------------------------------------------------------------------------
# Deterministic synthetic parameters.
# -----------------------------------------------------------------------------
def make_params(key, dim_in, dim_out):
    keys = jax.random.split(key, 32)
    ki = iter(range(32))
    params = {}
    eps = 1e-5
    for name in ("q", "k", "v"):
        w = 0.2 * jax.random.normal(keys[next(ki)], (9, dim_in), jnp.float32)
        gamma = 0.5 + jax.random.uniform(keys[next(ki)], (dim_in,), jnp.float32)
        beta = 0.1 * jax.random.normal(keys[next(ki)], (dim_in,), jnp.float32)
        rmean = 0.1 * jax.random.normal(keys[next(ki)], (dim_in,), jnp.float32)
        rvar = 0.5 + jax.random.uniform(keys[next(ki)], (dim_in,), jnp.float32)
        scale = gamma / jnp.sqrt(rvar + eps)
        bias = beta - rmean * scale
        params[f"{name}_conv_w"] = w
        params[f"{name}_bn_scale"] = scale.reshape(1, dim_in)
        params[f"{name}_bn_bias"] = bias.reshape(1, dim_in)
    # nn.Linear weights stored pre-transposed: (in, out); qkv_bias=False.
    params["wq"] = 0.1 * jax.random.normal(keys[next(ki)], (dim_in, dim_out), jnp.float32)
    params["wk"] = 0.1 * jax.random.normal(keys[next(ki)], (dim_in, dim_out), jnp.float32)
    params["wv"] = 0.1 * jax.random.normal(keys[next(ki)], (dim_in, dim_out), jnp.float32)
    params["wp"] = 0.1 * jax.random.normal(keys[next(ki)], (dim_out, dim_out), jnp.float32)
    params["bp"] = 0.02 * jax.random.normal(keys[next(ki)], (dim_out,), jnp.float32)
    return params


if __name__ == "__main__":
    B, dim_in, dim_out, num_heads = 2, 32, 32, 4
    h = w = 8
    T = 1 + h * w  # cls token + spatial tokens

    key = jax.random.PRNGKey(0)
    kx, kp = jax.random.split(key)
    x = jax.random.normal(kx, (B, T, dim_in), jnp.float32)
    params = make_params(kp, dim_in, dim_out)

    out = attention_forward(params, x, h, w, num_heads=num_heads, dim_out=dim_out)
    out = jax.block_until_ready(out)

    ref = reference_forward(params, x, h, w, num_heads=num_heads, dim_out=dim_out)
    assert out.shape == (B, T, dim_out)
    # Tolerance accounts for bf16 matmul operands (f32 accumulation) and the
    # approximate EUP reciprocal in the softmax normalization.
    assert jnp.allclose(out, ref, atol=1e-2, rtol=1e-2), "mismatch vs JAX reference"

    print("KERNEL_OK")
</pallas_src>

<mosaic_0001>
module attributes {stable_mosaic.version = 11 : i64} {
  func.func @_fused_attention_kernel(%arg0: i32, %arg1: memref<1x65x32xf32, #tpu.memory_space<vmem>>, %arg2: memref<3x9x32xf32, #tpu.memory_space<vmem>>, %arg3: memref<3x32xf32, #tpu.memory_space<vmem>>, %arg4: memref<3x32xf32, #tpu.memory_space<vmem>>, %arg5: memref<32x32xbf16, #tpu.memory_space<vmem>>, %arg6: memref<32x32xbf16, #tpu.memory_space<vmem>>, %arg7: memref<32x32xbf16, #tpu.memory_space<vmem>>, %arg8: memref<32x32xbf16, #tpu.memory_space<vmem>>, %arg9: memref<1x32xf32, #tpu.memory_space<vmem>>, %arg10: memref<1x65x32xf32, #tpu.memory_space<vmem>>, %arg11: memref<10x10x32xf32, #tpu.memory_space<vmem>>, %arg12: memref<3x128x32xf32, #tpu.memory_space<vmem>>) attributes {dimension_semantics = [#tpu.dimension_semantics<parallel>], iteration_bounds = array<i64: 2>, scalar_prefetch = 0 : i64, scratch_operands = 2 : i64, tpu.core_type = #tpu.core_type<tc>, window_params = [{transform_indices = @transform_0, window_bounds = array<i64: 1, 65, 32>}, {pipeline_mode = #tpu.pipeline_mode<synchronous>, transform_indices = @transform_1, window_bounds = array<i64: 3, 9, 32>}, {pipeline_mode = #tpu.pipeline_mode<synchronous>, transform_indices = @transform_2, window_bounds = array<i64: 3, 32>}, {pipeline_mode = #tpu.pipeline_mode<synchronous>, transform_indices = @transform_3, window_bounds = array<i64: 3, 32>}, {pipeline_mode = #tpu.pipeline_mode<synchronous>, transform_indices = @transform_4, window_bounds = array<i64: 32, 32>}, {pipeline_mode = #tpu.pipeline_mode<synchronous>, transform_indices = @transform_5, window_bounds = array<i64: 32, 32>}, {pipeline_mode = #tpu.pipeline_mode<synchronous>, transform_indices = @transform_6, window_bounds = array<i64: 32, 32>}, {pipeline_mode = #tpu.pipeline_mode<synchronous>, transform_indices = @transform_7, window_bounds = array<i64: 32, 32>}, {pipeline_mode = #tpu.pipeline_mode<synchronous>, transform_indices = @transform_8, window_bounds = array<i64: 1, 32>}, {transform_indices = @transform_9, window_bounds = array<i64: 1, 65, 32>}]} {
    %c0 = arith.constant 0 : index
    %c0_0 = arith.constant 0 : index
    %c0_1 = arith.constant 0 : index
    %0 = vector.load %arg1[%c0, %c0_0, %c0_1] : memref<1x65x32xf32, #tpu.memory_space<vmem>>, vector<1x1x32xf32>
    %1 = vector.shape_cast %0 : vector<1x1x32xf32> to vector<1x32xf32>
    %c0_2 = arith.constant 0 : index
    %c1 = arith.constant 1 : index
    %c0_3 = arith.constant 0 : index
    %2 = vector.load %arg1[%c0_2, %c1, %c0_3] : memref<1x65x32xf32, #tpu.memory_space<vmem>>, vector<1x64x32xf32>
    %3 = vector.shape_cast %2 : vector<1x64x32xf32> to vector<64x32xf32>
    %cst = arith.constant 0.000000e+00 : f32
    %4 = vector.broadcast %cst : f32 to vector<10x10x32xf32>
    %c0_4 = arith.constant 0 : index
    %c0_5 = arith.constant 0 : index
    %c0_6 = arith.constant 0 : index
    %5 = vector.load %arg11[%c0_4, %c0_5, %c0_6] : memref<10x10x32xf32, #tpu.memory_space<vmem>>, vector<10x10x32xf32>
    tpu.vector_store %arg11[%c0_4, %c0_5, %c0_6], %4 {strides = array<i32>} : memref<10x10x32xf32, #tpu.memory_space<vmem>>, vector<10x10x32xf32>,
    %6 = vector.extract_strided_slice %3 {offsets = [0, 0], sizes = [8, 32], strides = [1, 1]} : vector<64x32xf32> to vector<8x32xf32>
    %c1_7 = arith.constant 1 : index
    %c1_8 = arith.constant 1 : index
    %c0_9 = arith.constant 0 : index
    %7 = vector.load %arg11[%c1_7, %c1_8, %c0_9] : memref<10x10x32xf32, #tpu.memory_space<vmem>>, vector<1x8x32xf32>
    %8 = vector.shape_cast %7 : vector<1x8x32xf32> to vector<8x32xf32>
    %9 = vector.shape_cast %6 : vector<8x32xf32> to vector<1x8x32xf32>
    tpu.vector_store %arg11[%c1_7, %c1_8, %c0_9], %9 {strides = array<i32>} : memref<10x10x32xf32, #tpu.memory_space<vmem>>, vector<1x8x32xf32>,
    %10 = vector.extract_strided_slice %3 {offsets = [8, 0], sizes = [8, 32], strides = [1, 1]} : vector<64x32xf32> to vector<8x32xf32>
    %c2 = arith.constant 2 : index
    %c1_10 = arith.constant 1 : index
    %c0_11 = arith.constant 0 : index
    %11 = vector.load %arg11[%c2, %c1_10, %c0_11] : memref<10x10x32xf32, #tpu.memory_space<vmem>>, vector<1x8x32xf32>
    %12 = vector.shape_cast %11 : vector<1x8x32xf32> to vector<8x32xf32>
    %13 = vector.shape_cast %10 : vector<8x32xf32> to vector<1x8x32xf32>
    tpu.vector_store %arg11[%c2, %c1_10, %c0_11], %13 {strides = array<i32>} : memref<10x10x32xf32, #tpu.memory_space<vmem>>, vector<1x8x32xf32>,
    %14 = vector.extract_strided_slice %3 {offsets = [16, 0], sizes = [8, 32], strides = [1, 1]} : vector<64x32xf32> to vector<8x32xf32>
    %c3 = arith.constant 3 : index
    %c1_12 = arith.constant 1 : index
    %c0_13 = arith.constant 0 : index
    %15 = vector.load %arg11[%c3, %c1_12, %c0_13] : memref<10x10x32xf32, #tpu.memory_space<vmem>>, vector<1x8x32xf32>
    %16 = vector.shape_cast %15 : vector<1x8x32xf32> to vector<8x32xf32>
    %17 = vector.shape_cast %14 : vector<8x32xf32> to vector<1x8x32xf32>
    tpu.vector_store %arg11[%c3, %c1_12, %c0_13], %17 {strides = array<i32>} : memref<10x10x32xf32, #tpu.memory_space<vmem>>, vector<1x8x32xf32>,
    %18 = vector.extract_strided_slice %3 {offsets = [24, 0], sizes = [8, 32], strides = [1, 1]} : vector<64x32xf32> to vector<8x32xf32>
    %c4 = arith.constant 4 : index
    %c1_14 = arith.constant 1 : index
    %c0_15 = arith.constant 0 : index
    %19 = vector.load %arg11[%c4, %c1_14, %c0_15] : memref<10x10x32xf32, #tpu.memory_space<vmem>>, vector<1x8x32xf32>
    %20 = vector.shape_cast %19 : vector<1x8x32xf32> to vector<8x32xf32>
    %21 = vector.shape_cast %18 : vector<8x32xf32> to vector<1x8x32xf32>
    tpu.vector_store %arg11[%c4, %c1_14, %c0_15], %21 {strides = array<i32>} : memref<10x10x32xf32, #tpu.memory_space<vmem>>, vector<1x8x32xf32>,
    %22 = vector.extract_strided_slice %3 {offsets = [32, 0], sizes = [8, 32], strides = [1, 1]} : vector<64x32xf32> to vector<8x32xf32>
    %c5 = arith.constant 5 : index
    %c1_16 = arith.constant 1 : index
    %c0_17 = arith.constant 0 : index
    %23 = vector.load %arg11[%c5, %c1_16, %c0_17] : memref<10x10x32xf32, #tpu.memory_space<vmem>>, vector<1x8x32xf32>
    %24 = vector.shape_cast %23 : vector<1x8x32xf32> to vector<8x32xf32>
    %25 = vector.shape_cast %22 : vector<8x32xf32> to vector<1x8x32xf32>
    tpu.vector_store %arg11[%c5, %c1_16, %c0_17], %25 {strides = array<i32>} : memref<10x10x32xf32, #tpu.memory_space<vmem>>, vector<1x8x32xf32>,
    %26 = vector.extract_strided_slice %3 {offsets = [40, 0], sizes = [8, 32], strides = [1, 1]} : vector<64x32xf32> to vector<8x32xf32>
    %c6 = arith.constant 6 : index
    %c1_18 = arith.constant 1 : index
    %c0_19 = arith.constant 0 : index
    %27 = vector.load %arg11[%c6, %c1_18, %c0_19] : memref<10x10x32xf32, #tpu.memory_space<vmem>>, vector<1x8x32xf32>
    %28 = vector.shape_cast %27 : vector<1x8x32xf32> to vector<8x32xf32>
    %29 = vector.shape_cast %26 : vector<8x32xf32> to vector<1x8x32xf32>
    tpu.vector_store %arg11[%c6, %c1_18, %c0_19], %29 {strides = array<i32>} : memref<10x10x32xf32, #tpu.memory_space<vmem>>, vector<1x8x32xf32>,
    %30 = vector.extract_strided_slice %3 {offsets = [48, 0], sizes = [8, 32], strides = [1, 1]} : vector<64x32xf32> to vector<8x32xf32>
    %c7 = arith.constant 7 : index
    %c1_20 = arith.constant 1 : index
    %c0_21 = arith.constant 0 : index
    %31 = vector.load %arg11[%c7, %c1_20, %c0_21] : memref<10x10x32xf32, #tpu.memory_space<vmem>>, vector<1x8x32xf32>
    %32 = vector.shape_cast %31 : vector<1x8x32xf32> to vector<8x32xf32>
    %33 = vector.shape_cast %30 : vector<8x32xf32> to vector<1x8x32xf32>
    tpu.vector_store %arg11[%c7, %c1_20, %c0_21], %33 {strides = array<i32>} : memref<10x10x32xf32, #tpu.memory_space<vmem>>, vector<1x8x32xf32>,
    %34 = vector.extract_strided_slice %3 {offsets = [56, 0], sizes = [8, 32], strides = [1, 1]} : vector<64x32xf32> to vector<8x32xf32>
    %c8 = arith.constant 8 : index
    %c1_22 = arith.constant 1 : index
    %c0_23 = arith.constant 0 : index
    %35 = vector.load %arg11[%c8, %c1_22, %c0_23] : memref<10x10x32xf32, #tpu.memory_space<vmem>>, vector<1x8x32xf32>
    %36 = vector.shape_cast %35 : vector<1x8x32xf32> to vector<8x32xf32>
    %37 = vector.shape_cast %34 : vector<8x32xf32> to vector<1x8x32xf32>
    tpu.vector_store %arg11[%c8, %c1_22, %c0_23], %37 {strides = array<i32>} : memref<10x10x32xf32, #tpu.memory_space<vmem>>, vector<1x8x32xf32>,
    %c0_24 = arith.constant 0 : index
    %c0_25 = arith.constant 0 : index
    %c0_26 = arith.constant 0 : index
    %38 = vector.load %arg11[%c0_24, %c0_25, %c0_26] : memref<10x10x32xf32, #tpu.memory_space<vmem>>, vector<10x10x32xf32>
    %cst_27 = arith.constant 0.000000e+00 : f32
    %39 = vector.broadcast %cst_27 : f32 to vector<8x8x32xf32>
    %cst_28 = arith.constant 0.000000e+00 : f32
    %40 = vector.broadcast %cst_28 : f32 to vector<8x8x32xf32>
    %cst_29 = arith.constant 0.000000e+00 : f32
    %41 = vector.broadcast %cst_29 : f32 to vector<8x8x32xf32>
    %42 = vector.extract_strided_slice %38 {offsets = [0, 0, 0], sizes = [8, 8, 32], strides = [1, 1, 1]} : vector<10x10x32xf32> to vector<8x8x32xf32>
    %c0_30 = arith.constant 0 : index
    %c0_31 = arith.constant 0 : index
    %c0_32 = arith.constant 0 : index
    %43 = vector.load %arg2[%c0_30, %c0_31, %c0_32] : memref<3x9x32xf32, #tpu.memory_space<vmem>>, vector<1x1x32xf32>
    %44 = vector.shape_cast %43 : vector<1x1x32xf32> to vector<32xf32>
    %45 = vector.shape_cast %44 : vector<32xf32> to vector<1x1x32xf32>
    %46 = vector.broadcast %45 : vector<1x1x32xf32> to vector<8x8x32xf32>
    %47 = arith.mulf %42, %46 : vector<8x8x32xf32>
    %48 = arith.addf %39, %47 : vector<8x8x32xf32>
    %c1_33 = arith.constant 1 : index
    %c0_34 = arith.constant 0 : index
    %c0_35 = arith.constant 0 : index
    %49 = vector.load %arg2[%c1_33, %c0_34, %c0_35] : memref<3x9x32xf32, #tpu.memory_space<vmem>>, vector<1x1x32xf32>
    %50 = vector.shape_cast %49 : vector<1x1x32xf32> to vector<32xf32>
    %51 = vector.shape_cast %50 : vector<32xf32> to vector<1x1x32xf32>
    %52 = vector.broadcast %51 : vector<1x1x32xf32> to vector<8x8x32xf32>
    %53 = arith.mulf %42, %52 : vector<8x8x32xf32>
    %54 = arith.addf %40, %53 : vector<8x8x32xf32>
    %c2_36 = arith.constant 2 : index
    %c0_37 = arith.constant 0 : index
    %c0_38 = arith.constant 0 : index
    %55 = vector.load %arg2[%c2_36, %c0_37, %c0_38] : memref<3x9x32xf32, #tpu.memory_space<vmem>>, vector<1x1x32xf32>
    %56 = vector.shape_cast %55 : vector<1x1x32xf32> to vector<32xf32>
    %57 = vector.shape_cast %56 : vector<32xf32> to vector<1x1x32xf32>
    %58 = vector.broadcast %57 : vector<1x1x32xf32> to vector<8x8x32xf32>
    %59 = arith.mulf %42, %58 : vector<8x8x32xf32>
    %60 = arith.addf %41, %59 : vector<8x8x32xf32>
    %61 = vector.extract_strided_slice %38 {offsets = [0, 1, 0], sizes = [8, 8, 32], strides = [1, 1, 1]} : vector<10x10x32xf32> to vector<8x8x32xf32>
    %c0_39 = arith.constant 0 : index
    %c1_40 = arith.constant 1 : index
    %c0_41 = arith.constant 0 : index
    %62 = vector.load %arg2[%c0_39, %c1_40, %c0_41] : memref<3x9x32xf32, #tpu.memory_space<vmem>>, vector<1x1x32xf32>
    %63 = vector.shape_cast %62 : vector<1x1x32xf32> to vector<32xf32>
    %64 = vector.shape_cast %63 : vector<32xf32> to vector<1x1x32xf32>
    %65 = vector.broadcast %64 : vector<1x1x32xf32> to vector<8x8x32xf32>
    %66 = arith.mulf %61, %65 : vector<8x8x32xf32>
    %67 = arith.addf %48, %66 : vector<8x8x32xf32>
    %c1_42 = arith.constant 1 : index
    %c1_43 = arith.constant 1 : index
    %c0_44 = arith.constant 0 : index
    %68 = vector.load %arg2[%c1_42, %c1_43, %c0_44] : memref<3x9x32xf32, #tpu.memory_space<vmem>>, vector<1x1x32xf32>
    %69 = vector.shape_cast %68 : vector<1x1x32xf32> to vector<32xf32>
    %70 = vector.shape_cast %69 : vector<32xf32> to vector<1x1x32xf32>
    %71 = vector.broadcast %70 : vector<1x1x32xf32> to vector<8x8x32xf32>
    %72 = arith.mulf %61, %71 : vector<8x8x32xf32>
    %73 = arith.addf %54, %72 : vector<8x8x32xf32>
    %c2_45 = arith.constant 2 : index
    %c1_46 = arith.constant 1 : index
    %c0_47 = arith.constant 0 : index
    %74 = vector.load %arg2[%c2_45, %c1_46, %c0_47] : memref<3x9x32xf32, #tpu.memory_space<vmem>>, vector<1x1x32xf32>
    %75 = vector.shape_cast %74 : vector<1x1x32xf32> to vector<32xf32>
    %76 = vector.shape_cast %75 : vector<32xf32> to vector<1x1x32xf32>
    %77 = vector.broadcast %76 : vector<1x1x32xf32> to vector<8x8x32xf32>
    %78 = arith.mulf %61, %77 : vector<8x8x32xf32>
    %79 = arith.addf %60, %78 : vector<8x8x32xf32>
    %80 = vector.extract_strided_slice %38 {offsets = [0, 2, 0], sizes = [8, 8, 32], strides = [1, 1, 1]} : vector<10x10x32xf32> to vector<8x8x32xf32>
    %c0_48 = arith.constant 0 : index
    %c2_49 = arith.constant 2 : index
    %c0_50 = arith.constant 0 : index
    %81 = vector.load %arg2[%c0_48, %c2_49, %c0_50] : memref<3x9x32xf32, #tpu.memory_space<vmem>>, vector<1x1x32xf32>
    %82 = vector.shape_cast %81 : vector<1x1x32xf32> to vector<32xf32>
    %83 = vector.shape_cast %82 : vector<32xf32> to vector<1x1x32xf32>
    %84 = vector.broadcast %83 : vector<1x1x32xf32> to vector<8x8x32xf32>
    %85 = arith.mulf %80, %84 : vector<8x8x32xf32>
    %86 = arith.addf %67, %85 : vector<8x8x32xf32>
    %c1_51 = arith.constant 1 : index
    %c2_52 = arith.constant 2 : index
    %c0_53 = arith.constant 0 : index
    %87 = vector.load %arg2[%c1_51, %c2_52, %c0_53] : memref<3x9x32xf32, #tpu.memory_space<vmem>>, vector<1x1x32xf32>
    %88 = vector.shape_cast %87 : vector<1x1x32xf32> to vector<32xf32>
    %89 = vector.shape_cast %88 : vector<32xf32> to vector<1x1x32xf32>
    %90 = vector.broadcast %89 : vector<1x1x32xf32> to vector<8x8x32xf32>
    %91 = arith.mulf %80, %90 : vector<8x8x32xf32>
    %92 = arith.addf %73, %91 : vector<8x8x32xf32>
    %c2_54 = arith.constant 2 : index
    %c2_55 = arith.constant 2 : index
    %c0_56 = arith.constant 0 : index
    %93 = vector.load %arg2[%c2_54, %c2_55, %c0_56] : memref<3x9x32xf32, #tpu.memory_space<vmem>>, vector<1x1x32xf32>
    %94 = vector.shape_cast %93 : vector<1x1x32xf32> to vector<32xf32>
    %95 = vector.shape_cast %94 : vector<32xf32> to vector<1x1x32xf32>
    %96 = vector.broadcast %95 : vector<1x1x32xf32> to vector<8x8x32xf32>
    %97 = arith.mulf %80, %96 : vector<8x8x32xf32>
    %98 = arith.addf %79, %97 : vector<8x8x32xf32>
    %99 = vector.extract_strided_slice %38 {offsets = [1, 0, 0], sizes = [8, 8, 32], strides = [1, 1, 1]} : vector<10x10x32xf32> to vector<8x8x32xf32>
    %c0_57 = arith.constant 0 : index
    %c3_58 = arith.constant 3 : index
    %c0_59 = arith.constant 0 : index
    %100 = vector.load %arg2[%c0_57, %c3_58, %c0_59] : memref<3x9x32xf32, #tpu.memory_space<vmem>>, vector<1x1x32xf32>
    %101 = vector.shape_cast %100 : vector<1x1x32xf32> to vector<32xf32>
    %102 = vector.shape_cast %101 : vector<32xf32> to vector<1x1x32xf32>
    %103 = vector.broadcast %102 : vector<1x1x32xf32> to vector<8x8x32xf32>
    %104 = arith.mulf %99, %103 : vector<8x8x32xf32>
    %105 = arith.addf %86, %104 : vector<8x8x32xf32>
    %c1_60 = arith.constant 1 : index
    %c3_61 = arith.constant 3 : index
    %c0_62 = arith.constant 0 : index
    %106 = vector.load %arg2[%c1_60, %c3_61, %c0_62] : memref<3x9x32xf32, #tpu.memory_space<vmem>>, vector<1x1x32xf32>
    %107 = vector.shape_cast %106 : vector<1x1x32xf32> to vector<32xf32>
    %108 = vector.shape_cast %107 : vector<32xf32> to vector<1x1x32xf32>
    %109 = vector.broadcast %108 : vector<1x1x32xf32> to vector<8x8x32xf32>
    %110 = arith.mulf %99, %109 : vector<8x8x32xf32>
    %111 = arith.addf %92, %110 : vector<8x8x32xf32>
    %c2_63 = arith.constant 2 : index
    %c3_64 = arith.constant 3 : index
    %c0_65 = arith.constant 0 : index
    %112 = vector.load %arg2[%c2_63, %c3_64, %c0_65] : memref<3x9x32xf32, #tpu.memory_space<vmem>>, vector<1x1x32xf32>
    %113 = vector.shape_cast %112 : vector<1x1x32xf32> to vector<32xf32>
    %114 = vector.shape_cast %113 : vector<32xf32> to vector<1x1x32xf32>
    %115 = vector.broadcast %114 : vector<1x1x32xf32> to vector<8x8x32xf32>
    %116 = arith.mulf %99, %115 : vector<8x8x32xf32>
    %117 = arith.addf %98, %116 : vector<8x8x32xf32>
    %118 = vector.extract_strided_slice %38 {offsets = [1, 1, 0], sizes = [8, 8, 32], strides = [1, 1, 1]} : vector<10x10x32xf32> to vector<8x8x32xf32>
    %c0_66 = arith.constant 0 : index
    %c4_67 = arith.constant 4 : index
    %c0_68 = arith.constant 0 : index
    %119 = vector.load %arg2[%c0_66, %c4_67, %c0_68] : memref<3x9x32xf32, #tpu.memory_space<vmem>>, vector<1x1x32xf32>
    %120 = vector.shape_cast %119 : vector<1x1x32xf32> to vector<32xf32>
    %121 = vector.shape_cast %120 : vector<32xf32> to vector<1x1x32xf32>
    %122 = vector.broadcast %121 : vector<1x1x32xf32> to vector<8x8x32xf32>
    %123 = arith.mulf %118, %122 : vector<8x8x32xf32>
    %124 = arith.addf %105, %123 : vector<8x8x32xf32>
    %c1_69 = arith.constant 1 : index
    %c4_70 = arith.constant 4 : index
    %c0_71 = arith.constant 0 : index
    %125 = vector.load %arg2[%c1_69, %c4_70, %c0_71] : memref<3x9x32xf32, #tpu.memory_space<vmem>>, vector<1x1x32xf32>
    %126 = vector.shape_cast %125 : vector<1x1x32xf32> to vector<32xf32>
    %127 = vector.shape_cast %126 : vector<32xf32> to vector<1x1x32xf32>
    %128 = vector.broadcast %127 : vector<1x1x32xf32> to vector<8x8x32xf32>
    %129 = arith.mulf %118, %128 : vector<8x8x32xf32>
    %130 = arith.addf %111, %129 : vector<8x8x32xf32>
    %c2_72 = arith.constant 2 : index
    %c4_73 = arith.constant 4 : index
    %c0_74 = arith.constant 0 : index
    %131 = vector.load %arg2[%c2_72, %c4_73, %c0_74] : memref<3x9x32xf32, #tpu.memory_space<vmem>>, vector<1x1x32xf32>
    %132 = vector.shape_cast %131 : vector<1x1x32xf32> to vector<32xf32>
    %133 = vector.shape_cast %132 : vector<32xf32> to vector<1x1x32xf32>
    %134 = vector.broadcast %133 : vector<1x1x32xf32> to vector<8x8x32xf32>
    %135 = arith.mulf %118, %134 : vector<8x8x32xf32>
    %136 = arith.addf %117, %135 : vector<8x8x32xf32>
    %137 = vector.extract_strided_slice %38 {offsets = [1, 2, 0], sizes = [8, 8, 32], strides = [1, 1, 1]} : vector<10x10x32xf32> to vector<8x8x32xf32>
    %c0_75 = arith.constant 0 : index
    %c5_76 = arith.constant 5 : index
    %c0_77 = arith.constant 0 : index
    %138 = vector.load %arg2[%c0_75, %c5_76, %c0_77] : memref<3x9x32xf32, #tpu.memory_space<vmem>>, vector<1x1x32xf32>
    %139 = vector.shape_cast %138 : vector<1x1x32xf32> to vector<32xf32>
    %140 = vector.shape_cast %139 : vector<32xf32> to vector<1x1x32xf32>
    %141 = vector.broadcast %140 : vector<1x1x32xf32> to vector<8x8x32xf32>
    %142 = arith.mulf %137, %141 : vector<8x8x32xf32>
    %143 = arith.addf %124, %142 : vector<8x8x32xf32>
    %c1_78 = arith.constant 1 : index
    %c5_79 = arith.constant 5 : index
    %c0_80 = arith.constant 0 : index
    %144 = vector.load %arg2[%c1_78, %c5_79, %c0_80] : memref<3x9x32xf32, #tpu.memory_space<vmem>>, vector<1x1x32xf32>
    %145 = vector.shape_cast %144 : vector<1x1x32xf32> to vector<32xf32>
    %146 = vector.shape_cast %145 : vector<32xf32> to vector<1x1x32xf32>
    %147 = vector.broadcast %146 : vector<1x1x32xf32> to vector<8x8x32xf32>
    %148 = arith.mulf %137, %147 : vector<8x8x32xf32>
    %149 = arith.addf %130, %148 : vector<8x8x32xf32>
    %c2_81 = arith.constant 2 : index
    %c5_82 = arith.constant 5 : index
    %c0_83 = arith.constant 0 : index
    %150 = vector.load %arg2[%c2_81, %c5_82, %c0_83] : memref<3x9x32xf32, #tpu.memory_space<vmem>>, vector<1x1x32xf32>
    %151 = vector.shape_cast %150 : vector<1x1x32xf32> to vector<32xf32>
    %152 = vector.shape_cast %151 : vector<32xf32> to vector<1x1x32xf32>
    %153 = vector.broadcast %152 : vector<1x1x32xf32> to vector<8x8x32xf32>
    %154 = arith.mulf %137, %153 : vector<8x8x32xf32>
    %155 = arith.addf %136, %154 : vector<8x8x32xf32>
    %156 = vector.extract_strided_slice %38 {offsets = [2, 0, 0], sizes = [8, 8, 32], strides = [1, 1, 1]} : vector<10x10x32xf32> to vector<8x8x32xf32>
    %c0_84 = arith.constant 0 : index
    %c6_85 = arith.constant 6 : index
    %c0_86 = arith.constant 0 : index
    %157 = vector.load %arg2[%c0_84, %c6_85, %c0_86] : memref<3x9x32xf32, #tpu.memory_space<vmem>>, vector<1x1x32xf32>
    %158 = vector.shape_cast %157 : vector<1x1x32xf32> to vector<32xf32>
    %159 = vector.shape_cast %158 : vector<32xf32> to vector<1x1x32xf32>
    %160 = vector.broadcast %159 : vector<1x1x32xf32> to vector<8x8x32xf32>
    %161 = arith.mulf %156, %160 : vector<8x8x32xf32>
    %162 = arith.addf %143, %161 : vector<8x8x32xf32>
    %c1_87 = arith.constant 1 : index
    %c6_88 = arith.constant 6 : index
    %c0_89 = arith.constant 0 : index
    %163 = vector.load %arg2[%c1_87, %c6_88, %c0_89] : memref<3x9x32xf32, #tpu.memory_space<vmem>>, vector<1x1x32xf32>
    %164 = vector.shape_cast %163 : vector<1x1x32xf32> to vector<32xf32>
    %165 = vector.shape_cast %164 : vector<32xf32> to vector<1x1x32xf32>
    %166 = vector.broadcast %165 : vector<1x1x32xf32> to vector<8x8x32xf32>
    %167 = arith.mulf %156, %166 : vector<8x8x32xf32>
    %168 = arith.addf %149, %167 : vector<8x8x32xf32>
    %c2_90 = arith.constant 2 : index
    %c6_91 = arith.constant 6 : index
    %c0_92 = arith.constant 0 : index
    %169 = vector.load %arg2[%c2_90, %c6_91, %c0_92] : memref<3x9x32xf32, #tpu.memory_space<vmem>>, vector<1x1x32xf32>
    %170 = vector.shape_cast %169 : vector<1x1x32xf32> to vector<32xf32>
    %171 = vector.shape_cast %170 : vector<32xf32> to vector<1x1x32xf32>
    %172 = vector.broadcast %171 : vector<1x1x32xf32> to vector<8x8x32xf32>
    %173 = arith.mulf %156, %172 : vector<8x8x32xf32>
    %174 = arith.addf %155, %173 : vector<8x8x32xf32>
    %175 = vector.extract_strided_slice %38 {offsets = [2, 1, 0], sizes = [8, 8, 32], strides = [1, 1, 1]} : vector<10x10x32xf32> to vector<8x8x32xf32>
    %c0_93 = arith.constant 0 : index
    %c7_94 = arith.constant 7 : index
    %c0_95 = arith.constant 0 : index
    %176 = vector.load %arg2[%c0_93, %c7_94, %c0_95] : memref<3x9x32xf32, #tpu.memory_space<vmem>>, vector<1x1x32xf32>
    %177 = vector.shape_cast %176 : vector<1x1x32xf32> to vector<32xf32>
    %178 = vector.shape_cast %177 : vector<32xf32> to vector<1x1x32xf32>
    %179 = vector.broadcast %178 : vector<1x1x32xf32> to vector<8x8x32xf32>
    %180 = arith.mulf %175, %179 : vector<8x8x32xf32>
    %181 = arith.addf %162, %180 : vector<8x8x32xf32>
    %c1_96 = arith.constant 1 : index
    %c7_97 = arith.constant 7 : index
    %c0_98 = arith.constant 0 : index
    %182 = vector.load %arg2[%c1_96, %c7_97, %c0_98] : memref<3x9x32xf32, #tpu.memory_space<vmem>>, vector<1x1x32xf32>
    %183 = vector.shape_cast %182 : vector<1x1x32xf32> to vector<32xf32>
    %184 = vector.shape_cast %183 : vector<32xf32> to vector<1x1x32xf32>
    %185 = vector.broadcast %184 : vector<1x1x32xf32> to vector<8x8x32xf32>
    %186 = arith.mulf %175, %185 : vector<8x8x32xf32>
    %187 = arith.addf %168, %186 : vector<8x8x32xf32>
    %c2_99 = arith.constant 2 : index
    %c7_100 = arith.constant 7 : index
    %c0_101 = arith.constant 0 : index
    %188 = vector.load %arg2[%c2_99, %c7_100, %c0_101] : memref<3x9x32xf32, #tpu.memory_space<vmem>>, vector<1x1x32xf32>
    %189 = vector.shape_cast %188 : vector<1x1x32xf32> to vector<32xf32>
    %190 = vector.shape_cast %189 : vector<32xf32> to vector<1x1x32xf32>
    %191 = vector.broadcast %190 : vector<1x1x32xf32> to vector<8x8x32xf32>
    %192 = arith.mulf %175, %191 : vector<8x8x32xf32>
    %193 = arith.addf %174, %192 : vector<8x8x32xf32>
    %194 = vector.extract_strided_slice %38 {offsets = [2, 2, 0], sizes = [8, 8, 32], strides = [1, 1, 1]} : vector<10x10x32xf32> to vector<8x8x32xf32>
    %c0_102 = arith.constant 0 : index
    %c8_103 = arith.constant 8 : index
    %c0_104 = arith.constant 0 : index
    %195 = vector.load %arg2[%c0_102, %c8_103, %c0_104] : memref<3x9x32xf32, #tpu.memory_space<vmem>>, vector<1x1x32xf32>
    %196 = vector.shape_cast %195 : vector<1x1x32xf32> to vector<32xf32>
    %197 = vector.shape_cast %196 : vector<32xf32> to vector<1x1x32xf32>
    %198 = vector.broadcast %197 : vector<1x1x32xf32> to vector<8x8x32xf32>
    %199 = arith.mulf %194, %198 : vector<8x8x32xf32>
    %200 = arith.addf %181, %199 : vector<8x8x32xf32>
    %c1_105 = arith.constant 1 : index
    %c8_106 = arith.constant 8 : index
    %c0_107 = arith.constant 0 : index
    %201 = vector.load %arg2[%c1_105, %c8_106, %c0_107] : memref<3x9x32xf32, #tpu.memory_space<vmem>>, vector<1x1x32xf32>
    %202 = vector.shape_cast %201 : vector<1x1x32xf32> to vector<32xf32>
    %203 = vector.shape_cast %202 : vector<32xf32> to vector<1x1x32xf32>
    %204 = vector.broadcast %203 : vector<1x1x32xf32> to vector<8x8x32xf32>
    %205 = arith.mulf %194, %204 : vector<8x8x32xf32>
    %206 = arith.addf %187, %205 : vector<8x8x32xf32>
    %c2_108 = arith.constant 2 : index
    %c8_109 = arith.constant 8 : index
    %c0_110 = arith.constant 0 : index
    %207 = vector.load %arg2[%c2_108, %c8_109, %c0_110] : memref<3x9x32xf32, #tpu.memory_space<vmem>>, vector<1x1x32xf32>
    %208 = vector.shape_cast %207 : vector<1x1x32xf32> to vector<32xf32>
    %209 = vector.shape_cast %208 : vector<32xf32> to vector<1x1x32xf32>
    %210 = vector.broadcast %209 : vector<1x1x32xf32> to vector<8x8x32xf32>
    %211 = arith.mulf %194, %210 : vector<8x8x32xf32>
    %212 = arith.addf %193, %211 : vector<8x8x32xf32>
    %cst_111 = arith.constant 0.000000e+00 : f32
    %213 = vector.broadcast %cst_111 : f32 to vector<3x128x32xf32>
    %c0_112 = arith.constant 0 : index
    %c0_113 = arith.constant 0 : index
    %c0_114 = arith.constant 0 : index
    %214 = vector.load %arg12[%c0_112, %c0_113, %c0_114] : memref<3x128x32xf32, #tpu.memory_space<vmem>>, vector<3x128x32xf32>
    tpu.vector_store %arg12[%c0_112, %c0_113, %c0_114], %213 {strides = array<i32>} : memref<3x128x32xf32, #tpu.memory_space<vmem>>, vector<3x128x32xf32>,
    %c0_115 = arith.constant 0 : index
    %c0_116 = arith.constant 0 : index
    %215 = vector.load %arg3[%c0_115, %c0_116] : memref<3x32xf32, #tpu.memory_space<vmem>>, vector<1x32xf32>
    %216 = vector.shape_cast %215 : vector<1x32xf32> to vector<32xf32>
    %217 = vector.shape_cast %216 : vector<32xf32> to vector<1x1x32xf32>
    %218 = vector.broadcast %217 : vector<1x1x32xf32> to vector<8x8x32xf32>
    %219 = arith.mulf %200, %218 : vector<8x8x32xf32>
    %c0_117 = arith.constant 0 : index
    %c0_118 = arith.constant 0 : index
    %220 = vector.load %arg4[%c0_117, %c0_118] : memref<3x32xf32, #tpu.memory_space<vmem>>, vector<1x32xf32>
    %221 = vector.shape_cast %220 : vector<1x32xf32> to vector<32xf32>
    %222 = vector.shape_cast %221 : vector<32xf32> to vector<1x1x32xf32>
    %223 = vector.broadcast %222 : vector<1x1x32xf32> to vector<8x8x32xf32>
    %224 = arith.addf %219, %223 : vector<8x8x32xf32>
    %c0_119 = arith.constant 0 : index
    %c0_120 = arith.constant 0 : index
    %c0_121 = arith.constant 0 : index
    %225 = vector.load %arg12[%c0_119, %c0_120, %c0_121] : memref<3x128x32xf32, #tpu.memory_space<vmem>>, vector<1x1x32xf32>
    %226 = vector.shape_cast %225 : vector<1x1x32xf32> to vector<1x32xf32>
    %227 = vector.shape_cast %1 : vector<1x32xf32> to vector<1x1x32xf32>
    tpu.vector_store %arg12[%c0_119, %c0_120, %c0_121], %227 {strides = array<i32>} : memref<3x128x32xf32, #tpu.memory_space<vmem>>, vector<1x1x32xf32>,
    %228 = vector.extract_strided_slice %224 {offsets = [0, 0, 0], sizes = [1, 8, 32], strides = [1, 1, 1]} : vector<8x8x32xf32> to vector<1x8x32xf32>
    %229 = vector.shape_cast %228 : vector<1x8x32xf32> to vector<8x32xf32>
    %c0_122 = arith.constant 0 : index
    %c1_123 = arith.constant 1 : index
    %c0_124 = arith.constant 0 : index
    %230 = vector.load %arg12[%c0_122, %c1_123, %c0_124] : memref<3x128x32xf32, #tpu.memory_space<vmem>>, vector<1x8x32xf32>
    %231 = vector.shape_cast %230 : vector<1x8x32xf32> to vector<8x32xf32>
    %232 = vector.shape_cast %229 : vector<8x32xf32> to vector<1x8x32xf32>
    tpu.vector_store %arg12[%c0_122, %c1_123, %c0_124], %232 {strides = array<i32>} : memref<3x128x32xf32, #tpu.memory_space<vmem>>, vector<1x8x32xf32>,
    %233 = vector.extract_strided_slice %224 {offsets = [1, 0, 0], sizes = [1, 8, 32], strides = [1, 1, 1]} : vector<8x8x32xf32> to vector<1x8x32xf32>
    %234 = vector.shape_cast %233 : vector<1x8x32xf32> to vector<8x32xf32>
    %c0_125 = arith.constant 0 : index
    %c9 = arith.constant 9 : index
    %c0_126 = arith.constant 0 : index
    %235 = vector.load %arg12[%c0_125, %c9, %c0_126] : memref<3x128x32xf32, #tpu.memory_space<vmem>>, vector<1x8x32xf32>
    %236 = vector.shape_cast %235 : vector<1x8x32xf32> to vector<8x32xf32>
    %237 = vector.shape_cast %234 : vector<8x32xf32> to vector<1x8x32xf32>
    tpu.vector_store %arg12[%c0_125, %c9, %c0_126], %237 {strides = array<i32>} : memref<3x128x32xf32, #tpu.memory_space<vmem>>, vector<1x8x32xf32>,
    %238 = vector.extract_strided_slice %224 {offsets = [2, 0, 0], sizes = [1, 8, 32], strides = [1, 1, 1]} : vector<8x8x32xf32> to vector<1x8x32xf32>
    %239 = vector.shape_cast %238 : vector<1x8x32xf32> to vector<8x32xf32>
    %c0_127 = arith.constant 0 : index
    %c17 = arith.constant 17 : index
    %c0_128 = arith.constant 0 : index
    %240 = vector.load %arg12[%c0_127, %c17, %c0_128] : memref<3x128x32xf32, #tpu.memory_space<vmem>>, vector<1x8x32xf32>
    %241 = vector.shape_cast %240 : vector<1x8x32xf32> to vector<8x32xf32>
    %242 = vector.shape_cast %239 : vector<8x32xf32> to vector<1x8x32xf32>
    tpu.vector_store %arg12[%c0_127, %c17, %c0_128], %242 {strides = array<i32>} : memref<3x128x32xf32, #tpu.memory_space<vmem>>, vector<1x8x32xf32>,
    %243 = vector.extract_strided_slice %224 {offsets = [3, 0, 0], sizes = [1, 8, 32], strides = [1, 1, 1]} : vector<8x8x32xf32> to vector<1x8x32xf32>
    %244 = vector.shape_cast %243 : vector<1x8x32xf32> to vector<8x32xf32>
    %c0_129 = arith.constant 0 : index
    %c25 = arith.constant 25 : index
    %c0_130 = arith.constant 0 : index
    %245 = vector.load %arg12[%c0_129, %c25, %c0_130] : memref<3x128x32xf32, #tpu.memory_space<vmem>>, vector<1x8x32xf32>
    %246 = vector.shape_cast %245 : vector<1x8x32xf32> to vector<8x32xf32>
    %247 = vector.shape_cast %244 : vector<8x32xf32> to vector<1x8x32xf32>
    tpu.vector_store %arg12[%c0_129, %c25, %c0_130], %247 {strides = array<i32>} : memref<3x128x32xf32, #tpu.memory_space<vmem>>, vector<1x8x32xf32>,
    %248 = vector.extract_strided_slice %224 {offsets = [4, 0, 0], sizes = [1, 8, 32], strides = [1, 1, 1]} : vector<8x8x32xf32> to vector<1x8x32xf32>
    %249 = vector.shape_cast %248 : vector<1x8x32xf32> to vector<8x32xf32>
    %c0_131 = arith.constant 0 : index
    %c33 = arith.constant 33 : index
    %c0_132 = arith.constant 0 : index
    %250 = vector.load %arg12[%c0_131, %c33, %c0_132] : memref<3x128x32xf32, #tpu.memory_space<vmem>>, vector<1x8x32xf32>
    %251 = vector.shape_cast %250 : vector<1x8x32xf32> to vector<8x32xf32>
    %252 = vector.shape_cast %249 : vector<8x32xf32> to vector<1x8x32xf32>
    tpu.vector_store %arg12[%c0_131, %c33, %c0_132], %252 {strides = array<i32>} : memref<3x128x32xf32, #tpu.memory_space<vmem>>, vector<1x8x32xf32>,
    %253 = vector.extract_strided_slice %224 {offsets = [5, 0, 0], sizes = [1, 8, 32], strides = [1, 1, 1]} : vector<8x8x32xf32> to vector<1x8x32xf32>
    %254 = vector.shape_cast %253 : vector<1x8x32xf32> to vector<8x32xf32>
    %c0_133 = arith.constant 0 : index
    %c41 = arith.constant 41 : index
    %c0_134 = arith.constant 0 : index
    %255 = vector.load %arg12[%c0_133, %c41, %c0_134] : memref<3x128x32xf32, #tpu.memory_space<vmem>>, vector<1x8x32xf32>
    %256 = vector.shape_cast %255 : vector<1x8x32xf32> to vector<8x32xf32>
    %257 = vector.shape_cast %254 : vector<8x32xf32> to vector<1x8x32xf32>
    tpu.vector_store %arg12[%c0_133, %c41, %c0_134], %257 {strides = array<i32>} : memref<3x128x32xf32, #tpu.memory_space<vmem>>, vector<1x8x32xf32>,
    %258 = vector.extract_strided_slice %224 {offsets = [6, 0, 0], sizes = [1, 8, 32], strides = [1, 1, 1]} : vector<8x8x32xf32> to vector<1x8x32xf32>
    %259 = vector.shape_cast %258 : vector<1x8x32xf32> to vector<8x32xf32>
    %c0_135 = arith.constant 0 : index
    %c49 = arith.constant 49 : index
    %c0_136 = arith.constant 0 : index
    %260 = vector.load %arg12[%c0_135, %c49, %c0_136] : memref<3x128x32xf32, #tpu.memory_space<vmem>>, vector<1x8x32xf32>
    %261 = vector.shape_cast %260 : vector<1x8x32xf32> to vector<8x32xf32>
    %262 = vector.shape_cast %259 : vector<8x32xf32> to vector<1x8x32xf32>
    tpu.vector_store %arg12[%c0_135, %c49, %c0_136], %262 {strides = array<i32>} : memref<3x128x32xf32, #tpu.memory_space<vmem>>, vector<1x8x32xf32>,
    %263 = vector.extract_strided_slice %224 {offsets = [7, 0, 0], sizes = [1, 8, 32], strides = [1, 1, 1]} : vector<8x8x32xf32> to vector<1x8x32xf32>
    %264 = vector.shape_cast %263 : vector<1x8x32xf32> to vector<8x32xf32>
    %c0_137 = arith.constant 0 : index
    %c57 = arith.constant 57 : index
    %c0_138 = arith.constant 0 : index
    %265 = vector.load %arg12[%c0_137, %c57, %c0_138] : memref<3x128x32xf32, #tpu.memory_space<vmem>>, vector<1x8x32xf32>
    %266 = vector.shape_cast %265 : vector<1x8x32xf32> to vector<8x32xf32>
    %267 = vector.shape_cast %264 : vector<8x32xf32> to vector<1x8x32xf32>
    tpu.vector_store %arg12[%c0_137, %c57, %c0_138], %267 {strides = array<i32>} : memref<3x128x32xf32, #tpu.memory_space<vmem>>, vector<1x8x32xf32>,
    %c1_139 = arith.constant 1 : index
    %c0_140 = arith.constant 0 : index
    %268 = vector.load %arg3[%c1_139, %c0_140] : memref<3x32xf32, #tpu.memory_space<vmem>>, vector<1x32xf32>
    %269 = vector.shape_cast %268 : vector<1x32xf32> to vector<32xf32>
    %270 = vector.shape_cast %269 : vector<32xf32> to vector<1x1x32xf32>
    %271 = vector.broadcast %270 : vector<1x1x32xf32> to vector<8x8x32xf32>
    %272 = arith.mulf %206, %271 : vector<8x8x32xf32>
    %c1_141 = arith.constant 1 : index
    %c0_142 = arith.constant 0 : index
    %273 = vector.load %arg4[%c1_141, %c0_142] : memref<3x32xf32, #tpu.memory_space<vmem>>, vector<1x32xf32>
    %274 = vector.shape_cast %273 : vector<1x32xf32> to vector<32xf32>
    %275 = vector.shape_cast %274 : vector<32xf32> to vector<1x1x32xf32>
    %276 = vector.broadcast %275 : vector<1x1x32xf32> to vector<8x8x32xf32>
    %277 = arith.addf %272, %276 : vector<8x8x32xf32>
    %c1_143 = arith.constant 1 : index
    %c0_144 = arith.constant 0 : index
    %c0_145 = arith.constant 0 : index
    %278 = vector.load %arg12[%c1_143, %c0_144, %c0_145] : memref<3x128x32xf32, #tpu.memory_space<vmem>>, vector<1x1x32xf32>
    %279 = vector.shape_cast %278 : vector<1x1x32xf32> to vector<1x32xf32>
    %280 = vector.shape_cast %1 : vector<1x32xf32> to vector<1x1x32xf32>
    tpu.vector_store %arg12[%c1_143, %c0_144, %c0_145], %280 {strides = array<i32>} : memref<3x128x32xf32, #tpu.memory_space<vmem>>, vector<1x1x32xf32>,
    %281 = vector.extract_strided_slice %277 {offsets = [0, 0, 0], sizes = [1, 8, 32], strides = [1, 1, 1]} : vector<8x8x32xf32> to vector<1x8x32xf32>
    %282 = vector.shape_cast %281 : vector<1x8x32xf32> to vector<8x32xf32>
    %c1_146 = arith.constant 1 : index
    %c1_147 = arith.constant 1 : index
    %c0_148 = arith.constant 0 : index
    %283 = vector.load %arg12[%c1_146, %c1_147, %c0_148] : memref<3x128x32xf32, #tpu.memory_space<vmem>>, vector<1x8x32xf32>
    %284 = vector.shape_cast %283 : vector<1x8x32xf32> to vector<8x32xf32>
    %285 = vector.shape_cast %282 : vector<8x32xf32> to vector<1x8x32xf32>
    tpu.vector_store %arg12[%c1_146, %c1_147, %c0_148], %285 {strides = array<i32>} : memref<3x128x32xf32, #tpu.memory_space<vmem>>, vector<1x8x32xf32>,
    %286 = vector.extract_strided_slice %277 {offsets = [1, 0, 0], sizes = [1, 8, 32], strides = [1, 1, 1]} : vector<8x8x32xf32> to vector<1x8x32xf32>
    %287 = vector.shape_cast %286 : vector<1x8x32xf32> to vector<8x32xf32>
    %c1_149 = arith.constant 1 : index
    %c9_150 = arith.constant 9 : index
    %c0_151 = arith.constant 0 : index
    %288 = vector.load %arg12[%c1_149, %c9_150, %c0_151] : memref<3x128x32xf32, #tpu.memory_space<vmem>>, vector<1x8x32xf32>
    %289 = vector.shape_cast %288 : vector<1x8x32xf32> to vector<8x32xf32>
    %290 = vector.shape_cast %287 : vector<8x32xf32> to vector<1x8x32xf32>
    tpu.vector_store %arg12[%c1_149, %c9_150, %c0_151], %290 {strides = array<i32>} : memref<3x128x32xf32, #tpu.memory_space<vmem>>, vector<1x8x32xf32>,
    %291 = vector.extract_strided_slice %277 {offsets = [2, 0, 0], sizes = [1, 8, 32], strides = [1, 1, 1]} : vector<8x8x32xf32> to vector<1x8x32xf32>
    %292 = vector.shape_cast %291 : vector<1x8x32xf32> to vector<8x32xf32>
    %c1_152 = arith.constant 1 : index
    %c17_153 = arith.constant 17 : index
    %c0_154 = arith.constant 0 : index
    %293 = vector.load %arg12[%c1_152, %c17_153, %c0_154] : memref<3x128x32xf32, #tpu.memory_space<vmem>>, vector<1x8x32xf32>
    %294 = vector.shape_cast %293 : vector<1x8x32xf32> to vector<8x32xf32>
    %295 = vector.shape_cast %292 : vector<8x32xf32> to vector<1x8x32xf32>
    tpu.vector_store %arg12[%c1_152, %c17_153, %c0_154], %295 {strides = array<i32>} : memref<3x128x32xf32, #tpu.memory_space<vmem>>, vector<1x8x32xf32>,
    %296 = vector.extract_strided_slice %277 {offsets = [3, 0, 0], sizes = [1, 8, 32], strides = [1, 1, 1]} : vector<8x8x32xf32> to vector<1x8x32xf32>
    %297 = vector.shape_cast %296 : vector<1x8x32xf32> to vector<8x32xf32>
    %c1_155 = arith.constant 1 : index
    %c25_156 = arith.constant 25 : index
    %c0_157 = arith.constant 0 : index
    %298 = vector.load %arg12[%c1_155, %c25_156, %c0_157] : memref<3x128x32xf32, #tpu.memory_space<vmem>>, vector<1x8x32xf32>
    %299 = vector.shape_cast %298 : vector<1x8x32xf32> to vector<8x32xf32>
    %300 = vector.shape_cast %297 : vector<8x32xf32> to vector<1x8x32xf32>
    tpu.vector_store %arg12[%c1_155, %c25_156, %c0_157], %300 {strides = array<i32>} : memref<3x128x32xf32, #tpu.memory_space<vmem>>, vector<1x8x32xf32>,
    %301 = vector.extract_strided_slice %277 {offsets = [4, 0, 0], sizes = [1, 8, 32], strides = [1, 1, 1]} : vector<8x8x32xf32> to vector<1x8x32xf32>
    %302 = vector.shape_cast %301 : vector<1x8x32xf32> to vector<8x32xf32>
    %c1_158 = arith.constant 1 : index
    %c33_159 = arith.constant 33 : index
    %c0_160 = arith.constant 0 : index
    %303 = vector.load %arg12[%c1_158, %c33_159, %c0_160] : memref<3x128x32xf32, #tpu.memory_space<vmem>>, vector<1x8x32xf32>
    %304 = vector.shape_cast %303 : vector<1x8x32xf32> to vector<8x32xf32>
    %305 = vector.shape_cast %302 : vector<8x32xf32> to vector<1x8x32xf32>
    tpu.vector_store %arg12[%c1_158, %c33_159, %c0_160], %305 {strides = array<i32>} : memref<3x128x32xf32, #tpu.memory_space<vmem>>, vector<1x8x32xf32>,
    %306 = vector.extract_strided_slice %277 {offsets = [5, 0, 0], sizes = [1, 8, 32], strides = [1, 1, 1]} : vector<8x8x32xf32> to vector<1x8x32xf32>
    %307 = vector.shape_cast %306 : vector<1x8x32xf32> to vector<8x32xf32>
    %c1_161 = arith.constant 1 : index
    %c41_162 = arith.constant 41 : index
    %c0_163 = arith.constant 0 : index
    %308 = vector.load %arg12[%c1_161, %c41_162, %c0_163] : memref<3x128x32xf32, #tpu.memory_space<vmem>>, vector<1x8x32xf32>
    %309 = vector.shape_cast %308 : vector<1x8x32xf32> to vector<8x32xf32>
    %310 = vector.shape_cast %307 : vector<8x32xf32> to vector<1x8x32xf32>
    tpu.vector_store %arg12[%c1_161, %c41_162, %c0_163], %310 {strides = array<i32>} : memref<3x128x32xf32, #tpu.memory_space<vmem>>, vector<1x8x32xf32>,
    %311 = vector.extract_strided_slice %277 {offsets = [6, 0, 0], sizes = [1, 8, 32], strides = [1, 1, 1]} : vector<8x8x32xf32> to vector<1x8x32xf32>
    %312 = vector.shape_cast %311 : vector<1x8x32xf32> to vector<8x32xf32>
    %c1_164 = arith.constant 1 : index
    %c49_165 = arith.constant 49 : index
    %c0_166 = arith.constant 0 : index
    %313 = vector.load %arg12[%c1_164, %c49_165, %c0_166] : memref<3x128x32xf32, #tpu.memory_space<vmem>>, vector<1x8x32xf32>
    %314 = vector.shape_cast %313 : vector<1x8x32xf32> to vector<8x32xf32>
    %315 = vector.shape_cast %312 : vector<8x32xf32> to vector<1x8x32xf32>
    tpu.vector_store %arg12[%c1_164, %c49_165, %c0_166], %315 {strides = array<i32>} : memref<3x128x32xf32, #tpu.memory_space<vmem>>, vector<1x8x32xf32>,
    %316 = vector.extract_strided_slice %277 {offsets = [7, 0, 0], sizes = [1, 8, 32], strides = [1, 1, 1]} : vector<8x8x32xf32> to vector<1x8x32xf32>
    %317 = vector.shape_cast %316 : vector<1x8x32xf32> to vector<8x32xf32>
    %c1_167 = arith.constant 1 : index
    %c57_168 = arith.constant 57 : index
    %c0_169 = arith.constant 0 : index
    %318 = vector.load %arg12[%c1_167, %c57_168, %c0_169] : memref<3x128x32xf32, #tpu.memory_space<vmem>>, vector<1x8x32xf32>
    %319 = vector.shape_cast %318 : vector<1x8x32xf32> to vector<8x32xf32>
    %320 = vector.shape_cast %317 : vector<8x32xf32> to vector<1x8x32xf32>
    tpu.vector_store %arg12[%c1_167, %c57_168, %c0_169], %320 {strides = array<i32>} : memref<3x128x32xf32, #tpu.memory_space<vmem>>, vector<1x8x32xf32>,
    %c2_170 = arith.constant 2 : index
    %c0_171 = arith.constant 0 : index
    %321 = vector.load %arg3[%c2_170, %c0_171] : memref<3x32xf32, #tpu.memory_space<vmem>>, vector<1x32xf32>
    %322 = vector.shape_cast %321 : vector<1x32xf32> to vector<32xf32>
    %323 = vector.shape_cast %322 : vector<32xf32> to vector<1x1x32xf32>
    %324 = vector.broadcast %323 : vector<1x1x32xf32> to vector<8x8x32xf32>
    %325 = arith.mulf %212, %324 : vector<8x8x32xf32>
    %c2_172 = arith.constant 2 : index
    %c0_173 = arith.constant 0 : index
    %326 = vector.load %arg4[%c2_172, %c0_173] : memref<3x32xf32, #tpu.memory_space<vmem>>, vector<1x32xf32>
    %327 = vector.shape_cast %326 : vector<1x32xf32> to vector<32xf32>
    %328 = vector.shape_cast %327 : vector<32xf32> to vector<1x1x32xf32>
    %329 = vector.broadcast %328 : vector<1x1x32xf32> to vector<8x8x32xf32>
    %330 = arith.addf %325, %329 : vector<8x8x32xf32>
    %c2_174 = arith.constant 2 : index
    %c0_175 = arith.constant 0 : index
    %c0_176 = arith.constant 0 : index
    %331 = vector.load %arg12[%c2_174, %c0_175, %c0_176] : memref<3x128x32xf32, #tpu.memory_space<vmem>>, vector<1x1x32xf32>
    %332 = vector.shape_cast %331 : vector<1x1x32xf32> to vector<1x32xf32>
    %333 = vector.shape_cast %1 : vector<1x32xf32> to vector<1x1x32xf32>
    tpu.vector_store %arg12[%c2_174, %c0_175, %c0_176], %333 {strides = array<i32>} : memref<3x128x32xf32, #tpu.memory_space<vmem>>, vector<1x1x32xf32>,
    %334 = vector.extract_strided_slice %330 {offsets = [0, 0, 0], sizes = [1, 8, 32], strides = [1, 1, 1]} : vector<8x8x32xf32> to vector<1x8x32xf32>
    %335 = vector.shape_cast %334 : vector<1x8x32xf32> to vector<8x32xf32>
    %c2_177 = arith.constant 2 : index
    %c1_178 = arith.constant 1 : index
    %c0_179 = arith.constant 0 : index
    %336 = vector.load %arg12[%c2_177, %c1_178, %c0_179] : memref<3x128x32xf32, #tpu.memory_space<vmem>>, vector<1x8x32xf32>
    %337 = vector.shape_cast %336 : vector<1x8x32xf32> to vector<8x32xf32>
    %338 = vector.shape_cast %335 : vector<8x32xf32> to vector<1x8x32xf32>
    tpu.vector_store %arg12[%c2_177, %c1_178, %c0_179], %338 {strides = array<i32>} : memref<3x128x32xf32, #tpu.memory_space<vmem>>, vector<1x8x32xf32>,
    %339 = vector.extract_strided_slice %330 {offsets = [1, 0, 0], sizes = [1, 8, 32], strides = [1, 1, 1]} : vector<8x8x32xf32> to vector<1x8x32xf32>
    %340 = vector.shape_cast %339 : vector<1x8x32xf32> to vector<8x32xf32>
    %c2_180 = arith.constant 2 : index
    %c9_181 = arith.constant 9 : index
    %c0_182 = arith.constant 0 : index
    %341 = vector.load %arg12[%c2_180, %c9_181, %c0_182] : memref<3x128x32xf32, #tpu.memory_space<vmem>>, vector<1x8x32xf32>
    %342 = vector.shape_cast %341 : vector<1x8x32xf32> to vector<8x32xf32>
    %343 = vector.shape_cast %340 : vector<8x32xf32> to vector<1x8x32xf32>
    tpu.vector_store %arg12[%c2_180, %c9_181, %c0_182], %343 {strides = array<i32>} : memref<3x128x32xf32, #tpu.memory_space<vmem>>, vector<1x8x32xf32>,
    %344 = vector.extract_strided_slice %330 {offsets = [2, 0, 0], sizes = [1, 8, 32], strides = [1, 1, 1]} : vector<8x8x32xf32> to vector<1x8x32xf32>
    %345 = vector.shape_cast %344 : vector<1x8x32xf32> to vector<8x32xf32>
    %c2_183 = arith.constant 2 : index
    %c17_184 = arith.constant 17 : index
    %c0_185 = arith.constant 0 : index
    %346 = vector.load %arg12[%c2_183, %c17_184, %c0_185] : memref<3x128x32xf32, #tpu.memory_space<vmem>>, vector<1x8x32xf32>
    %347 = vector.shape_cast %346 : vector<1x8x32xf32> to vector<8x32xf32>
    %348 = vector.shape_cast %345 : vector<8x32xf32> to vector<1x8x32xf32>
    tpu.vector_store %arg12[%c2_183, %c17_184, %c0_185], %348 {strides = array<i32>} : memref<3x128x32xf32, #tpu.memory_space<vmem>>, vector<1x8x32xf32>,
    %349 = vector.extract_strided_slice %330 {offsets = [3, 0, 0], sizes = [1, 8, 32], strides = [1, 1, 1]} : vector<8x8x32xf32> to vector<1x8x32xf32>
    %350 = vector.shape_cast %349 : vector<1x8x32xf32> to vector<8x32xf32>
    %c2_186 = arith.constant 2 : index
    %c25_187 = arith.constant 25 : index
    %c0_188 = arith.constant 0 : index
    %351 = vector.load %arg12[%c2_186, %c25_187, %c0_188] : memref<3x128x32xf32, #tpu.memory_space<vmem>>, vector<1x8x32xf32>
    %352 = vector.shape_cast %351 : vector<1x8x32xf32> to vector<8x32xf32>
    %353 = vector.shape_cast %350 : vector<8x32xf32> to vector<1x8x32xf32>
    tpu.vector_store %arg12[%c2_186, %c25_187, %c0_188], %353 {strides = array<i32>} : memref<3x128x32xf32, #tpu.memory_space<vmem>>, vector<1x8x32xf32>,
    %354 = vector.extract_strided_slice %330 {offsets = [4, 0, 0], sizes = [1, 8, 32], strides = [1, 1, 1]} : vector<8x8x32xf32> to vector<1x8x32xf32>
    %355 = vector.shape_cast %354 : vector<1x8x32xf32> to vector<8x32xf32>
    %c2_189 = arith.constant 2 : index
    %c33_190 = arith.constant 33 : index
    %c0_191 = arith.constant 0 : index
    %356 = vector.load %arg12[%c2_189, %c33_190, %c0_191] : memref<3x128x32xf32, #tpu.memory_space<vmem>>, vector<1x8x32xf32>
    %357 = vector.shape_cast %356 : vector<1x8x32xf32> to vector<8x32xf32>
    %358 = vector.shape_cast %355 : vector<8x32xf32> to vector<1x8x32xf32>
    tpu.vector_store %arg12[%c2_189, %c33_190, %c0_191], %358 {strides = array<i32>} : memref<3x128x32xf32, #tpu.memory_space<vmem>>, vector<1x8x32xf32>,
    %359 = vector.extract_strided_slice %330 {offsets = [5, 0, 0], sizes = [1, 8, 32], strides = [1, 1, 1]} : vector<8x8x32xf32> to vector<1x8x32xf32>
    %360 = vector.shape_cast %359 : vector<1x8x32xf32> to vector<8x32xf32>
    %c2_192 = arith.constant 2 : index
    %c41_193 = arith.constant 41 : index
    %c0_194 = arith.constant 0 : index
    %361 = vector.load %arg12[%c2_192, %c41_193, %c0_194] : memref<3x128x32xf32, #tpu.memory_space<vmem>>, vector<1x8x32xf32>
    %362 = vector.shape_cast %361 : vector<1x8x32xf32> to vector<8x32xf32>
    %363 = vector.shape_cast %360 : vector<8x32xf32> to vector<1x8x32xf32>
    tpu.vector_store %arg12[%c2_192, %c41_193, %c0_194], %363 {strides = array<i32>} : memref<3x128x32xf32, #tpu.memory_space<vmem>>, vector<1x8x32xf32>,
    %364 = vector.extract_strided_slice %330 {offsets = [6, 0, 0], sizes = [1, 8, 32], strides = [1, 1, 1]} : vector<8x8x32xf32> to vector<1x8x32xf32>
    %365 = vector.shape_cast %364 : vector<1x8x32xf32> to vector<8x32xf32>
    %c2_195 = arith.constant 2 : index
    %c49_196 = arith.constant 49 : index
    %c0_197 = arith.constant 0 : index
    %366 = vector.load %arg12[%c2_195, %c49_196, %c0_197] : memref<3x128x32xf32, #tpu.memory_space<vmem>>, vector<1x8x32xf32>
    %367 = vector.shape_cast %366 : vector<1x8x32xf32> to vector<8x32xf32>
    %368 = vector.shape_cast %365 : vector<8x32xf32> to vector<1x8x32xf32>
    tpu.vector_store %arg12[%c2_195, %c49_196, %c0_197], %368 {strides = array<i32>} : memref<3x128x32xf32, #tpu.memory_space<vmem>>, vector<1x8x32xf32>,
    %369 = vector.extract_strided_slice %330 {offsets = [7, 0, 0], sizes = [1, 8, 32], strides = [1, 1, 1]} : vector<8x8x32xf32> to vector<1x8x32xf32>
    %370 = vector.shape_cast %369 : vector<1x8x32xf32> to vector<8x32xf32>
    %c2_198 = arith.constant 2 : index
    %c57_199 = arith.constant 57 : index
    %c0_200 = arith.constant 0 : index
    %371 = vector.load %arg12[%c2_198, %c57_199, %c0_200] : memref<3x128x32xf32, #tpu.memory_space<vmem>>, vector<1x8x32xf32>
    %372 = vector.shape_cast %371 : vector<1x8x32xf32> to vector<8x32xf32>
    %373 = vector.shape_cast %370 : vector<8x32xf32> to vector<1x8x32xf32>
    tpu.vector_store %arg12[%c2_198, %c57_199, %c0_200], %373 {strides = array<i32>} : memref<3x128x32xf32, #tpu.memory_space<vmem>>, vector<1x8x32xf32>,
    %c0_201 = arith.constant 0 : index
    %c0_202 = arith.constant 0 : index
    %c0_203 = arith.constant 0 : index
    %374 = vector.load %arg12[%c0_201, %c0_202, %c0_203] : memref<3x128x32xf32, #tpu.memory_space<vmem>>, vector<1x128x32xf32>
    %375 = vector.shape_cast %374 : vector<1x128x32xf32> to vector<128x32xf32>
    %376 = arith.truncf %375 : vector<128x32xf32> to vector<128x32xbf16>
    %c0_204 = arith.constant 0 : index
    %c0_205 = arith.constant 0 : index
    %377 = vector.load %arg5[%c0_204, %c0_205] : memref<32x32xbf16, #tpu.memory_space<vmem>>, vector<32x32xbf16>
    %cst_206 = arith.constant dense<0.000000e+00> : vector<128x32xf32>
    %378 = tpu.matmul %376, %377, %cst_206 {dimension_numbers = #tpu.dot_dimension_numbers<[1], [0], [0], [1], [0, 0, 1, 1], [], []>} : vector<128x32xbf16>, vector<32x32xbf16>, vector<128x32xf32> -> vector<128x32xf32>
    %c1_207 = arith.constant 1 : index
    %c0_208 = arith.constant 0 : index
    %c0_209 = arith.constant 0 : index
    %379 = vector.load %arg12[%c1_207, %c0_208, %c0_209] : memref<3x128x32xf32, #tpu.memory_space<vmem>>, vector<1x128x32xf32>
    %380 = vector.shape_cast %379 : vector<1x128x32xf32> to vector<128x32xf32>
    %381 = arith.truncf %380 : vector<128x32xf32> to vector<128x32xbf16>
    %c0_210 = arith.constant 0 : index
    %c0_211 = arith.constant 0 : index
    %382 = vector.load %arg6[%c0_210, %c0_211] : memref<32x32xbf16, #tpu.memory_space<vmem>>, vector<32x32xbf16>
    %cst_212 = arith.constant dense<0.000000e+00> : vector<128x32xf32>
    %383 = tpu.matmul %381, %382, %cst_212 {dimension_numbers = #tpu.dot_dimension_numbers<[1], [0], [0], [1], [0, 0, 1, 1], [], []>} : vector<128x32xbf16>, vector<32x32xbf16>, vector<128x32xf32> -> vector<128x32xf32>
    %c2_213 = arith.constant 2 : index
    %c0_214 = arith.constant 0 : index
    %c0_215 = arith.constant 0 : index
    %384 = vector.load %arg12[%c2_213, %c0_214, %c0_215] : memref<3x128x32xf32, #tpu.memory_space<vmem>>, vector<1x128x32xf32>
    %385 = vector.shape_cast %384 : vector<1x128x32xf32> to vector<128x32xf32>
    %386 = arith.truncf %385 : vector<128x32xf32> to vector<128x32xbf16>
    %c0_216 = arith.constant 0 : index
    %c0_217 = arith.constant 0 : index
    %387 = vector.load %arg7[%c0_216, %c0_217] : memref<32x32xbf16, #tpu.memory_space<vmem>>, vector<32x32xbf16>
    %cst_218 = arith.constant dense<0.000000e+00> : vector<128x32xf32>
    %388 = tpu.matmul %386, %387, %cst_218 {dimension_numbers = #tpu.dot_dimension_numbers<[1], [0], [0], [1], [0, 0, 1, 1], [], []>} : vector<128x32xbf16>, vector<32x32xbf16>, vector<128x32xf32> -> vector<128x32xf32>
    %cst_219 = arith.constant 0.176776692 : f32
    %389 = vector.broadcast %cst_219 : f32 to vector<128x32xf32>
    %390 = arith.mulf %378, %389 : vector<128x32xf32>
    %391 = tpu.iota {dimensions = array<i32: 1>} : vector<128x128xi32>
    %c65_i32 = arith.constant 65 : i32
    %392 = vector.broadcast %c65_i32 : i32 to vector<128x128xi32>
    %393 = arith.cmpi slt, %391, %392 : vector<128x128xi32>
    %cst_220 = arith.constant 0.000000e+00 : f32
    %394 = vector.broadcast %cst_220 : f32 to vector<128x32xf32>
    %395 = vector.extract_strided_slice %390 {offsets = [0, 0], sizes = [128, 8], strides = [1, 1]} : vector<128x32xf32> to vector<128x8xf32>
    %396 = arith.truncf %395 : vector<128x8xf32> to vector<128x8xbf16>
    %397 = vector.extract_strided_slice %383 {offsets = [0, 0], sizes = [128, 8], strides = [1, 1]} : vector<128x32xf32> to vector<128x8xf32>
    %398 = arith.truncf %397 : vector<128x8xf32> to vector<128x8xbf16>
    %399 = vector.extract_strided_slice %388 {offsets = [0, 0], sizes = [128, 8], strides = [1, 1]} : vector<128x32xf32> to vector<128x8xf32>
    %400 = arith.truncf %399 : vector<128x8xf32> to vector<128x8xbf16>
    %cst_221 = arith.constant dense<0.000000e+00> : vector<128x128xf32>
    %401 = tpu.matmul %396, %398, %cst_221 {dimension_numbers = #tpu.dot_dimension_numbers<[1], [1], [0], [0], [0, 0, 1, 0], [], []>} : vector<128x8xbf16>, vector<128x8xbf16>, vector<128x128xf32> -> vector<128x128xf32>
    %cst_222 = arith.constant -1.000000e+30 : f32
    %402 = vector.broadcast %cst_222 : f32 to vector<128x128xf32>
    %403 = arith.select %393, %401, %402 : vector<128x128xi1>, vector<128x128xf32>
    %cst_223 = arith.constant dense<0xFF800000> : vector<128xf32>
    %404 = vector.multi_reduction <maximumf>, %403, %cst_223 [1] : vector<128x128xf32> to vector<128xf32>
    %405 = vector.shape_cast %404 : vector<128xf32> to vector<128x1xf32>
    %406 = vector.broadcast %405 : vector<128x1xf32> to vector<128x128xf32>
    %407 = arith.subf %403, %406 : vector<128x128xf32>
    %408 = math.exp %407 : vector<128x128xf32>
    %cst_224 = arith.constant dense<0.000000e+00> : vector<128xf32>
    %409 = vector.multi_reduction <add>, %408, %cst_224 [1] : vector<128x128xf32> to vector<128xf32>
    %410 = vector.shape_cast %409 : vector<128xf32> to vector<128x1xf32>
    %411 = tpu.reciprocal %410 {approx = true} : vector<128x1xf32> -> vector<128x1xf32>
    %412 = vector.broadcast %411 : vector<128x1xf32> to vector<128x128xf32>
    %413 = arith.mulf %408, %412 : vector<128x128xf32>
    %414 = arith.truncf %413 : vector<128x128xf32> to vector<128x128xbf16>
    %cst_225 = arith.constant dense<0.000000e+00> : vector<128x8xf32>
    %415 = tpu.matmul %414, %400, %cst_225 {dimension_numbers = #tpu.dot_dimension_numbers<[1], [0], [0], [1], [0, 0, 1, 1], [], []>} : vector<128x128xbf16>, vector<128x8xbf16>, vector<128x8xf32> -> vector<128x8xf32>
    %416 = arith.truncf %415 : vector<128x8xf32> to vector<128x8xbf16>
    %c0_226 = arith.constant 0 : index
    %c0_227 = arith.constant 0 : index
    %417 = vector.load %arg8[%c0_226, %c0_227] : memref<32x32xbf16, #tpu.memory_space<vmem>>, vector<8x32xbf16>
    %cst_228 = arith.constant dense<0.000000e+00> : vector<128x32xf32>
    %418 = tpu.matmul %416, %417, %cst_228 {dimension_numbers = #tpu.dot_dimension_numbers<[1], [0], [0], [1], [0, 0, 1, 1], [], []>} : vector<128x8xbf16>, vector<8x32xbf16>, vector<128x32xf32> -> vector<128x32xf32>
    %419 = arith.addf %394, %418 : vector<128x32xf32>
    %420 = vector.extract_strided_slice %390 {offsets = [0, 8], sizes = [128, 8], strides = [1, 1]} : vector<128x32xf32> to vector<128x8xf32>
    %421 = arith.truncf %420 : vector<128x8xf32> to vector<128x8xbf16>
    %422 = vector.extract_strided_slice %383 {offsets = [0, 8], sizes = [128, 8], strides = [1, 1]} : vector<128x32xf32> to vector<128x8xf32>
    %423 = arith.truncf %422 : vector<128x8xf32> to vector<128x8xbf16>
    %424 = vector.extract_strided_slice %388 {offsets = [0, 8], sizes = [128, 8], strides = [1, 1]} : vector<128x32xf32> to vector<128x8xf32>
    %425 = arith.truncf %424 : vector<128x8xf32> to vector<128x8xbf16>
    %cst_229 = arith.constant dense<0.000000e+00> : vector<128x128xf32>
    %426 = tpu.matmul %421, %423, %cst_229 {dimension_numbers = #tpu.dot_dimension_numbers<[1], [1], [0], [0], [0, 0, 1, 0], [], []>} : vector<128x8xbf16>, vector<128x8xbf16>, vector<128x128xf32> -> vector<128x128xf32>
    %cst_230 = arith.constant -1.000000e+30 : f32
    %427 = vector.broadcast %cst_230 : f32 to vector<128x128xf32>
    %428 = arith.select %393, %426, %427 : vector<128x128xi1>, vector<128x128xf32>
    %cst_231 = arith.constant dense<0xFF800000> : vector<128xf32>
    %429 = vector.multi_reduction <maximumf>, %428, %cst_231 [1] : vector<128x128xf32> to vector<128xf32>
    %430 = vector.shape_cast %429 : vector<128xf32> to vector<128x1xf32>
    %431 = vector.broadcast %430 : vector<128x1xf32> to vector<128x128xf32>
    %432 = arith.subf %428, %431 : vector<128x128xf32>
    %433 = math.exp %432 : vector<128x128xf32>
    %cst_232 = arith.constant dense<0.000000e+00> : vector<128xf32>
    %434 = vector.multi_reduction <add>, %433, %cst_232 [1] : vector<128x128xf32> to vector<128xf32>
    %435 = vector.shape_cast %434 : vector<128xf32> to vector<128x1xf32>
    %436 = tpu.reciprocal %435 {approx = true} : vector<128x1xf32> -> vector<128x1xf32>
    %437 = vector.broadcast %436 : vector<128x1xf32> to vector<128x128xf32>
    %438 = arith.mulf %433, %437 : vector<128x128xf32>
    %439 = arith.truncf %438 : vector<128x128xf32> to vector<128x128xbf16>
    %cst_233 = arith.constant dense<0.000000e+00> : vector<128x8xf32>
    %440 = tpu.matmul %439, %425, %cst_233 {dimension_numbers = #tpu.dot_dimension_numbers<[1], [0], [0], [1], [0, 0, 1, 1], [], []>} : vector<128x128xbf16>, vector<128x8xbf16>, vector<128x8xf32> -> vector<128x8xf32>
    %441 = arith.truncf %440 : vector<128x8xf32> to vector<128x8xbf16>
    %c8_234 = arith.constant 8 : index
    %c0_235 = arith.constant 0 : index
    %442 = vector.load %arg8[%c8_234, %c0_235] : memref<32x32xbf16, #tpu.memory_space<vmem>>, vector<8x32xbf16>
    %cst_236 = arith.constant dense<0.000000e+00> : vector<128x32xf32>
    %443 = tpu.matmul %441, %442, %cst_236 {dimension_numbers = #tpu.dot_dimension_numbers<[1], [0], [0], [1], [0, 0, 1, 1], [], []>} : vector<128x8xbf16>, vector<8x32xbf16>, vector<128x32xf32> -> vector<128x32xf32>
    %444 = arith.addf %419, %443 : vector<128x32xf32>
    %445 = vector.extract_strided_slice %390 {offsets = [0, 16], sizes = [128, 8], strides = [1, 1]} : vector<128x32xf32> to vector<128x8xf32>
    %446 = arith.truncf %445 : vector<128x8xf32> to vector<128x8xbf16>
    %447 = vector.extract_strided_slice %383 {offsets = [0, 16], sizes = [128, 8], strides = [1, 1]} : vector<128x32xf32> to vector<128x8xf32>
    %448 = arith.truncf %447 : vector<128x8xf32> to vector<128x8xbf16>
    %449 = vector.extract_strided_slice %388 {offsets = [0, 16], sizes = [128, 8], strides = [1, 1]} : vector<128x32xf32> to vector<128x8xf32>
    %450 = arith.truncf %449 : vector<128x8xf32> to vector<128x8xbf16>
    %cst_237 = arith.constant dense<0.000000e+00> : vector<128x128xf32>
    %451 = tpu.matmul %446, %448, %cst_237 {dimension_numbers = #tpu.dot_dimension_numbers<[1], [1], [0], [0], [0, 0, 1, 0], [], []>} : vector<128x8xbf16>, vector<128x8xbf16>, vector<128x128xf32> -> vector<128x128xf32>
    %cst_238 = arith.constant -1.000000e+30 : f32
    %452 = vector.broadcast %cst_238 : f32 to vector<128x128xf32>
    %453 = arith.select %393, %451, %452 : vector<128x128xi1>, vector<128x128xf32>
    %cst_239 = arith.constant dense<0xFF800000> : vector<128xf32>
    %454 = vector.multi_reduction <maximumf>, %453, %cst_239 [1] : vector<128x128xf32> to vector<128xf32>
    %455 = vector.shape_cast %454 : vector<128xf32> to vector<128x1xf32>
    %456 = vector.broadcast %455 : vector<128x1xf32> to vector<128x128xf32>
    %457 = arith.subf %453, %456 : vector<128x128xf32>
    %458 = math.exp %457 : vector<128x128xf32>
    %cst_240 = arith.constant dense<0.000000e+00> : vector<128xf32>
    %459 = vector.multi_reduction <add>, %458, %cst_240 [1] : vector<128x128xf32> to vector<128xf32>
    %460 = vector.shape_cast %459 : vector<128xf32> to vector<128x1xf32>
    %461 = tpu.reciprocal %460 {approx = true} : vector<128x1xf32> -> vector<128x1xf32>
    %462 = vector.broadcast %461 : vector<128x1xf32> to vector<128x128xf32>
    %463 = arith.mulf %458, %462 : vector<128x128xf32>
    %464 = arith.truncf %463 : vector<128x128xf32> to vector<128x128xbf16>
    %cst_241 = arith.constant dense<0.000000e+00> : vector<128x8xf32>
    %465 = tpu.matmul %464, %450, %cst_241 {dimension_numbers = #tpu.dot_dimension_numbers<[1], [0], [0], [1], [0, 0, 1, 1], [], []>} : vector<128x128xbf16>, vector<128x8xbf16>, vector<128x8xf32> -> vector<128x8xf32>
    %466 = arith.truncf %465 : vector<128x8xf32> to vector<128x8xbf16>
    %c16 = arith.constant 16 : index
    %c0_242 = arith.constant 0 : index
    %467 = vector.load %arg8[%c16, %c0_242] : memref<32x32xbf16, #tpu.memory_space<vmem>>, vector<8x32xbf16>
    %cst_243 = arith.constant dense<0.000000e+00> : vector<128x32xf32>
    %468 = tpu.matmul %466, %467, %cst_243 {dimension_numbers = #tpu.dot_dimension_numbers<[1], [0], [0], [1], [0, 0, 1, 1], [], []>} : vector<128x8xbf16>, vector<8x32xbf16>, vector<128x32xf32> -> vector<128x32xf32>
    %469 = arith.addf %444, %468 : vector<128x32xf32>
    %470 = vector.extract_strided_slice %390 {offsets = [0, 24], sizes = [128, 8], strides = [1, 1]} : vector<128x32xf32> to vector<128x8xf32>
    %471 = arith.truncf %470 : vector<128x8xf32> to vector<128x8xbf16>
    %472 = vector.extract_strided_slice %383 {offsets = [0, 24], sizes = [128, 8], strides = [1, 1]} : vector<128x32xf32> to vector<128x8xf32>
    %473 = arith.truncf %472 : vector<128x8xf32> to vector<128x8xbf16>
    %474 = vector.extract_strided_slice %388 {offsets = [0, 24], sizes = [128, 8], strides = [1, 1]} : vector<128x32xf32> to vector<128x8xf32>
    %475 = arith.truncf %474 : vector<128x8xf32> to vector<128x8xbf16>
    %cst_244 = arith.constant dense<0.000000e+00> : vector<128x128xf32>
    %476 = tpu.matmul %471, %473, %cst_244 {dimension_numbers = #tpu.dot_dimension_numbers<[1], [1], [0], [0], [0, 0, 1, 0], [], []>} : vector<128x8xbf16>, vector<128x8xbf16>, vector<128x128xf32> -> vector<128x128xf32>
    %cst_245 = arith.constant -1.000000e+30 : f32
    %477 = vector.broadcast %cst_245 : f32 to vector<128x128xf32>
    %478 = arith.select %393, %476, %477 : vector<128x128xi1>, vector<128x128xf32>
    %cst_246 = arith.constant dense<0xFF800000> : vector<128xf32>
    %479 = vector.multi_reduction <maximumf>, %478, %cst_246 [1] : vector<128x128xf32> to vector<128xf32>
    %480 = vector.shape_cast %479 : vector<128xf32> to vector<128x1xf32>
    %481 = vector.broadcast %480 : vector<128x1xf32> to vector<128x128xf32>
    %482 = arith.subf %478, %481 : vector<128x128xf32>
    %483 = math.exp %482 : vector<128x128xf32>
    %cst_247 = arith.constant dense<0.000000e+00> : vector<128xf32>
    %484 = vector.multi_reduction <add>, %483, %cst_247 [1] : vector<128x128xf32> to vector<128xf32>
    %485 = vector.shape_cast %484 : vector<128xf32> to vector<128x1xf32>
    %486 = tpu.reciprocal %485 {approx = true} : vector<128x1xf32> -> vector<128x1xf32>
    %487 = vector.broadcast %486 : vector<128x1xf32> to vector<128x128xf32>
    %488 = arith.mulf %483, %487 : vector<128x128xf32>
    %489 = arith.truncf %488 : vector<128x128xf32> to vector<128x128xbf16>
    %cst_248 = arith.constant dense<0.000000e+00> : vector<128x8xf32>
    %490 = tpu.matmul %489, %475, %cst_248 {dimension_numbers = #tpu.dot_dimension_numbers<[1], [0], [0], [1], [0, 0, 1, 1], [], []>} : vector<128x128xbf16>, vector<128x8xbf16>, vector<128x8xf32> -> vector<128x8xf32>
    %491 = arith.truncf %490 : vector<128x8xf32> to vector<128x8xbf16>
    %c24 = arith.constant 24 : index
    %c0_249 = arith.constant 0 : index
    %492 = vector.load %arg8[%c24, %c0_249] : memref<32x32xbf16, #tpu.memory_space<vmem>>, vector<8x32xbf16>
    %cst_250 = arith.constant dense<0.000000e+00> : vector<128x32xf32>
    %493 = tpu.matmul %491, %492, %cst_250 {dimension_numbers = #tpu.dot_dimension_numbers<[1], [0], [0], [1], [0, 0, 1, 1], [], []>} : vector<128x8xbf16>, vector<8x32xbf16>, vector<128x32xf32> -> vector<128x32xf32>
    %494 = arith.addf %469, %493 : vector<128x32xf32>
    %c0_251 = arith.constant 0 : index
    %c0_252 = arith.constant 0 : index
    %495 = vector.load %arg9[%c0_251, %c0_252] : memref<1x32xf32, #tpu.memory_space<vmem>>, vector<1x32xf32>
    %496 = vector.broadcast %495 : vector<1x32xf32> to vector<128x32xf32>
    %497 = arith.addf %494, %496 : vector<128x32xf32>
    %498 = vector.extract_strided_slice %497 {offsets = [0, 0], sizes = [65, 32], strides = [1, 1]} : vector<128x32xf32> to vector<65x32xf32>
    %c0_253 = arith.constant 0 : index
    %c0_254 = arith.constant 0 : index
    %c0_255 = arith.constant 0 : index
    %499 = vector.load %arg10[%c0_253, %c0_254, %c0_255] : memref<1x65x32xf32, #tpu.memory_space<vmem>>, vector<1x65x32xf32>
    %500 = vector.shape_cast %499 : vector<1x65x32xf32> to vector<65x32xf32>
    %501 = vector.shape_cast %498 : vector<65x32xf32> to vector<1x65x32xf32>
    tpu.vector_store %arg10[%c0_253, %c0_254, %c0_255], %501 {strides = array<i32>} : memref<1x65x32xf32, #tpu.memory_space<vmem>>, vector<1x65x32xf32>,
    return
  }
  func.func @transform_0(%arg0: i32) -> (i32, i32, i32) {
    %c0_i32 = arith.constant 0 : i32
    %c0_i32_0 = arith.constant 0 : i32
    %c0_i32_1 = arith.constant 0 : i32
    return %arg0, %c0_i32, %c0_i32_0 : i32, i32, i32
  }
  func.func @transform_1(%arg0: i32) -> (i32, i32, i32) {
    %c0_i32 = arith.constant 0 : i32
    %c0_i32_0 = arith.constant 0 : i32
    %c0_i32_1 = arith.constant 0 : i32
    %c0_i32_2 = arith.constant 0 : i32
    return %c0_i32, %c0_i32_0, %c0_i32_1 : i32, i32, i32
  }
  func.func @transform_2(%arg0: i32) -> (i32, i32) {
    %c0_i32 = arith.constant 0 : i32
    %c0_i32_0 = arith.constant 0 : i32
    %c0_i32_1 = arith.constant 0 : i32
    return %c0_i32, %c0_i32_0 : i32, i32
  }
  func.func @transform_3(%arg0: i32) -> (i32, i32) {
    %c0_i32 = arith.constant 0 : i32
    %c0_i32_0 = arith.constant 0 : i32
    %c0_i32_1 = arith.constant 0 : i32
    return %c0_i32, %c0_i32_0 : i32, i32
  }
  func.func @transform_4(%arg0: i32) -> (i32, i32) {
    %c0_i32 = arith.constant 0 : i32
    %c0_i32_0 = arith.constant 0 : i32
    %c0_i32_1 = arith.constant 0 : i32
    return %c0_i32, %c0_i32_0 : i32, i32
  }
  func.func @transform_5(%arg0: i32) -> (i32, i32) {
    %c0_i32 = arith.constant 0 : i32
    %c0_i32_0 = arith.constant 0 : i32
    %c0_i32_1 = arith.constant 0 : i32
    return %c0_i32, %c0_i32_0 : i32, i32
  }
  func.func @transform_6(%arg0: i32) -> (i32, i32) {
    %c0_i32 = arith.constant 0 : i32
    %c0_i32_0 = arith.constant 0 : i32
    %c0_i32_1 = arith.constant 0 : i32
    return %c0_i32, %c0_i32_0 : i32, i32
  }
  func.func @transform_7(%arg0: i32) -> (i32, i32) {
    %c0_i32 = arith.constant 0 : i32
    %c0_i32_0 = arith.constant 0 : i32
    %c0_i32_1 = arith.constant 0 : i32
    return %c0_i32, %c0_i32_0 : i32, i32
  }
  func.func @transform_8(%arg0: i32) -> (i32, i32) {
    %c0_i32 = arith.constant 0 : i32
    %c0_i32_0 = arith.constant 0 : i32
    %c0_i32_1 = arith.constant 0 : i32
    return %c0_i32, %c0_i32_0 : i32, i32
  }
  func.func @transform_9(%arg0: i32) -> (i32, i32, i32) {
    %c0_i32 = arith.constant 0 : i32
    %c0_i32_0 = arith.constant 0 : i32
    %c0_i32_1 = arith.constant 0 : i32
    return %arg0, %c0_i32, %c0_i32_0 : i32, i32, i32
  }
}

</mosaic_0001>

<llo_original>
// kernel: tpu_custom_call.1
$region0: #{tpu_custom_call.1}
  #allocation0 [shape = 'u32[]', space=smem, size = 0x4, offset = 0x4, fixed_abs, tag = 'smem constant byte address 0x4 - core index']
  #allocation1 [shape = 'u32[144,128]{1,0:T(1,128)}', space=vmem, size = 0x12000, scoped, tag = 'internal scratch']
  #allocation2 [shape = 'f32[10,10,32]{2,1,0:T(8,128)}', space=vmem, size = 0x14000, scoped, tag = 'scratch operand']
  #allocation3 [shape = 'f32[3,128,32]{2,1,0:T(8,128)}', space=vmem, size = 0x30000, scoped, tag = 'scratch operand']
  %s0 = inlined_call_operand.vmem [shape: f32[2,65,32], index: 0, kind: input, shape index: {}]
  %s1 = inlined_call_operand.vmem [shape: f32[3,9,32], index: 1, kind: input, shape index: {}]
  %s2 = inlined_call_operand.vmem [shape: f32[3,32], index: 2, kind: input, shape index: {}]
  %s3 = inlined_call_operand.vmem [shape: f32[3,32], index: 3, kind: input, shape index: {}]
  %s4 = inlined_call_operand.vmem [shape: bf16[32,32], index: 4, kind: input, shape index: {}]
  %s5 = inlined_call_operand.vmem [shape: bf16[32,32], index: 5, kind: input, shape index: {}]
  %s6 = inlined_call_operand.vmem [shape: bf16[32,32], index: 6, kind: input, shape index: {}]
  %s7 = inlined_call_operand.vmem [shape: bf16[32,32], index: 7, kind: input, shape index: {}]
  %s8 = inlined_call_operand.vmem [shape: f32[1,32], index: 8, kind: input, shape index: {}]
  %s9 = inlined_call_operand.vmem [shape: f32[2,65,32], index: 9, kind: output, shape index: {}]
  %s10 = sld [smem:[#allocation0]]
  $region69: #{tpu_custom_call.1} parent=0
    _
  %s12 = ssub.s32 1, %s10
  %s13 = scalar_select 0, %s12, %s10
  loop: start=0, step=1, limit=4
  $region2: #{tpu_custom_call.1} parent=0 // loop_pre_header
    _
  $region3: #{tpu_custom_call.1} parent=0 // loop_header
    %s15 = sphi 0, %s19
    %p16 = scmp.ge.s32.totalorder %s15, 4
    %s25 = sphi 0, %s27
    %s28 = sphi 0, %s25
    %s29 = sphi 0, %s28
    %s45 = sphi 0, %s29
    %s49 = sphi 0, %s49
    %s51 = sphi 0, %s49
    %s52 = sphi 0, %s51
    %s66 = sphi 0, %s52
    %s70 = sphi 0, %s70
    %s72 = sphi 0, %s70
    %s73 = sphi 0, %s72
    %s87 = sphi 0, %s73
    %s91 = sphi 0, %s91
    %s93 = sphi 0, %s91
    %s94 = sphi 0, %s93
    %s108 = sphi 0, %s94
    %s112 = sphi 0, %s112
    %s114 = sphi 0, %s112
    %s115 = sphi 0, %s114
    %s129 = sphi 0, %s115
    %s133 = sphi 0, %s133
    %s135 = sphi 0, %s133
    %s136 = sphi 0, %s135
    %s150 = sphi 0, %s136
    %s154 = sphi 0, %s154
    %s156 = sphi 0, %s154
    %s157 = sphi 0, %s156
    %s171 = sphi 0, %s157
    %s175 = sphi 0, %s175
    %s177 = sphi 0, %s175
    %s178 = sphi 0, %s177
    %s192 = sphi 0, %s178
    %s196 = sphi 0, %s196
    %s198 = sphi 0, %s196
    %s199 = sphi 0, %s198
    %s213 = sphi 0, %s199
    %s219 = sphi 0, %s221
    %s222 = sphi 0, %s219
    %s223 = sphi 0, %s222
    %s239 = sphi 0, %s223
  $region4: #{tpu_custom_call.1} parent=0 // loop_header_branch
    %18 = sbr.rel (%p16) target = $region8
  $region5: #{tpu_custom_call.1} parent=0 // loop_body
    %s20 = ssub.s32 %s15, 1
    %s21 = ssub.s32 %s15, 2
    %s22 = sadd.s32 %s15, 1
    %s23 = ssub.s32 %s15, %s22
    %p24 = scmp.eq.s32.totalorder %s23, 0
    %s26 = sadd.s32 %s25, 1
    %s27 = scalar_select %p24, %s25, %s26
    %p30 = pneg %p24
    %p31 = scmp.eq.s32.totalorder %s15, 1
    %p32 = por %p30, %p31
    %p33 = scmp.ne.s32.totalorder %s25, %s28
    %p34 = scmp.eq.s32.totalorder %s15, 0
    %p35 = por %p33, %p34
    %p36 = scmp.ne.s32.totalorder %s25, %s28
    %p37 = scmp.eq.s32.totalorder %s20, 1
    %p38 = por %p36, %p37
    %p39 = scmp.ne.s32.totalorder %s28, %s29
    %p40 = scmp.eq.s32.totalorder %s20, 0
    %p41 = por %p39, %p40
    %p42 = scmp.ne.s32.totalorder %s28, %s29
    %p43 = scmp.eq.s32.totalorder %s21, 1
    %p44 = por %p42, %p43
    %p46 = scmp.ne.s32.totalorder %s29, %s45
    %p47 = scmp.eq.s32.totalorder %s21, 0
    %p48 = por %p46, %p47
    %s50 = sadd.s32 %s49, 1
    %p53 = scmp.eq.s32.totalorder %s15, 1
    %p54 = scmp.ne.s32.totalorder %s49, %s51
    %p55 = scmp.eq.s32.totalorder %s15, 0
    %p56 = por %p54, %p55
    %p57 = scmp.ne.s32.totalorder %s49, %s51
    %p58 = scmp.eq.s32.totalorder %s20, 1
    %p59 = por %p57, %p58
    %p60 = scmp.ne.s32.totalorder %s51, %s52
    %p61 = scmp.eq.s32.totalorder %s20, 0
    %p62 = por %p60, %p61
    %p63 = scmp.ne.s32.totalorder %s51, %s52
    %p64 = scmp.eq.s32.totalorder %s21, 1
    %p65 = por %p63, %p64
    %p67 = scmp.ne.s32.totalorder %s52, %s66
    %p68 = scmp.eq.s32.totalorder %s21, 0
    %p69 = por %p67, %p68
    %s71 = sadd.s32 %s70, 1
    %p74 = scmp.eq.s32.totalorder %s15, 1
    %p75 = scmp.ne.s32.totalorder %s70, %s72
    %p76 = scmp.eq.s32.totalorder %s15, 0
    %p77 = por %p75, %p76
    %p78 = scmp.ne.s32.totalorder %s70, %s72
    %p79 = scmp.eq.s32.totalorder %s20, 1
    %p80 = por %p78, %p79
    %p81 = scmp.ne.s32.totalorder %s72, %s73
    %p82 = scmp.eq.s32.totalorder %s20, 0
    %p83 = por %p81, %p82
    %p84 = scmp.ne.s32.totalorder %s72, %s73
    %p85 = scmp.eq.s32.totalorder %s21, 1
    %p86 = por %p84, %p85
    %p88 = scmp.ne.s32.totalorder %s73, %s87
    %p89 = scmp.eq.s32.totalorder %s21, 0
    %p90 = por %p88, %p89
    %s92 = sadd.s32 %s91, 1
    %p95 = scmp.eq.s32.totalorder %s15, 1
    %p96 = scmp.ne.s32.totalorder %s91, %s93
    %p97 = scmp.eq.s32.totalorder %s15, 0
    %p98 = por %p96, %p97
    %p99 = scmp.ne.s32.totalorder %s91, %s93
    %p100 = scmp.eq.s32.totalorder %s20, 1
    %p101 = por %p99, %p100
    %p102 = scmp.ne.s32.totalorder %s93, %s94
    %p103 = scmp.eq.s32.totalorder %s20, 0
    %p104 = por %p102, %p103
    %p105 = scmp.ne.s32.totalorder %s93, %s94
    %p106 = scmp.eq.s32.totalorder %s21, 1
    %p107 = por %p105, %p106
    %p109 = scmp.ne.s32.totalorder %s94, %s108
    %p110 = scmp.eq.s32.totalorder %s21, 0
    %p111 = por %p109, %p110
    %s113 = sadd.s32 %s112, 1
    %p116 = scmp.eq.s32.totalorder %s15, 1
    %p117 = scmp.ne.s32.totalorder %s112, %s114
    %p118 = scmp.eq.s32.totalorder %s15, 0
    %p119 = por %p117, %p118
    %p120 = scmp.ne.s32.totalorder %s112, %s114
    %p121 = scmp.eq.s32.totalorder %s20, 1
    %p122 = por %p120, %p121
    %p123 = scmp.ne.s32.totalorder %s114, %s115
    %p124 = scmp.eq.s32.totalorder %s20, 0
    %p125 = por %p123, %p124
    %p126 = scmp.ne.s32.totalorder %s114, %s115
    %p127 = scmp.eq.s32.totalorder %s21, 1
    %p128 = por %p126, %p127
    %p130 = scmp.ne.s32.totalorder %s115, %s129
    %p131 = scmp.eq.s32.totalorder %s21, 0
    %p132 = por %p130, %p131
    %s134 = sadd.s32 %s133, 1
    %p137 = scmp.eq.s32.totalorder %s15, 1
    %p138 = scmp.ne.s32.totalorder %s133, %s135
    %p139 = scmp.eq.s32.totalorder %s15, 0
    %p140 = por %p138, %p139
    %p141 = scmp.ne.s32.totalorder %s133, %s135
    %p142 = scmp.eq.s32.totalorder %s20, 1
    %p143 = por %p141, %p142
    %p144 = scmp.ne.s32.totalorder %s135, %s136
    %p145 = scmp.eq.s32.totalorder %s20, 0
    %p146 = por %p144, %p145
    %p147 = scmp.ne.s32.totalorder %s135, %s136
    %p148 = scmp.eq.s32.totalorder %s21, 1
    %p149 = por %p147, %p148
    %p151 = scmp.ne.s32.totalorder %s136, %s150
    %p152 = scmp.eq.s32.totalorder %s21, 0
    %p153 = por %p151, %p152
    %s155 = sadd.s32 %s154, 1
    %p158 = scmp.eq.s32.totalorder %s15, 1
    %p159 = scmp.ne.s32.totalorder %s154, %s156
    %p160 = scmp.eq.s32.totalorder %s15, 0
    %p161 = por %p159, %p160
    %p162 = scmp.ne.s32.totalorder %s154, %s156
    %p163 = scmp.eq.s32.totalorder %s20, 1
    %p164 = por %p162, %p163
    %p165 = scmp.ne.s32.totalorder %s156, %s157
    %p166 = scmp.eq.s32.totalorder %s20, 0
    %p167 = por %p165, %p166
    %p168 = scmp.ne.s32.totalorder %s156, %s157
    %p169 = scmp.eq.s32.totalorder %s21, 1
    %p170 = por %p168, %p169
    %p172 = scmp.ne.s32.totalorder %s157, %s171
    %p173 = scmp.eq.s32.totalorder %s21, 0
    %p174 = por %p172, %p173
    %s176 = sadd.s32 %s175, 1
    %p179 = scmp.eq.s32.totalorder %s15, 1
    %p180 = scmp.ne.s32.totalorder %s175, %s177
    %p181 = scmp.eq.s32.totalorder %s15, 0
    %p182 = por %p180, %p181
    %p183 = scmp.ne.s32.totalorder %s175, %s177
    %p184 = scmp.eq.s32.totalorder %s20, 1
    %p185 = por %p183, %p184
    %p186 = scmp.ne.s32.totalorder %s177, %s178
    %p187 = scmp.eq.s32.totalorder %s20, 0
    %p188 = por %p186, %p187
    %p189 = scmp.ne.s32.totalorder %s177, %s178
    %p190 = scmp.eq.s32.totalorder %s21, 1
    %p191 = por %p189, %p190
    %p193 = scmp.ne.s32.totalorder %s178, %s192
    %p194 = scmp.eq.s32.totalorder %s21, 0
    %p195 = por %p193, %p194
    %s197 = sadd.s32 %s196, 1
    %p200 = scmp.eq.s32.totalorder %s15, 1
    %p201 = scmp.ne.s32.totalorder %s196, %s198
    %p202 = scmp.eq.s32.totalorder %s15, 0
    %p203 = por %p201, %p202
    %p204 = scmp.ne.s32.totalorder %s196, %s198
    %p205 = scmp.eq.s32.totalorder %s20, 1
    %p206 = por %p204, %p205
    %p207 = scmp.ne.s32.totalorder %s198, %s199
    %p208 = scmp.eq.s32.totalorder %s20, 0
    %p209 = por %p207, %p208
    %p210 = scmp.ne.s32.totalorder %s198, %s199
    %p211 = scmp.eq.s32.totalorder %s21, 1
    %p212 = por %p210, %p211
    %p214 = scmp.ne.s32.totalorder %s199, %s213
    %p215 = scmp.eq.s32.totalorder %s21, 0
    %p216 = por %p214, %p215
    %s217 = ssub.s32 %s15, %s22
    %p218 = scmp.eq.s32.totalorder %s217, 0
    %s220 = sadd.s32 %s219, 1
    %s221 = scalar_select %p218, %s219, %s220
    %p224 = pneg %p218
    %p225 = scmp.eq.s32.totalorder %s15, 1
    %p226 = por %p224, %p225
    %p227 = scmp.ne.s32.totalorder %s219, %s222
    %p228 = scmp.eq.s32.totalorder %s15, 0
    %p229 = por %p227, %p228
    %p230 = scmp.ne.s32.totalorder %s219, %s222
    %p231 = scmp.eq.s32.totalorder %s20, 1
    %p232 = por %p230, %p231
    %p233 = scmp.ne.s32.totalorder %s222, %s223
    %p234 = scmp.eq.s32.totalorder %s20, 0
    %p235 = por %p233, %p234
    %p236 = scmp.ne.s32.totalorder %s222, %s223
    %p237 = scmp.eq.s32.totalorder %s21, 1
    %p238 = por %p236, %p237
    %p240 = scmp.ne.s32.totalorder %s223, %s239
    %p241 = scmp.eq.s32.totalorder %s21, 0
    %p242 = por %p240, %p241
    %p243 = scmp.le.s32.totalorder 1, %s15
    %p244 = scmp.lt.s32.totalorder %s15, 3
    %p245 = pnand %p243, %p244
    %p246 = pneg %p245
    // Predicated region
    $region9: #{tpu_custom_call.1} parent=5 // pred_check
      _
    $region10: #{tpu_custom_call.1} parent=5 // pred_check_branch
      %248 = sbr.rel (%p245) target = $region12
    $region11: #{tpu_custom_call.1} parent=5 // pred_region
      %s249 = ssub.s32 %s15, 1
      // Predicated region
      $region13: #{tpu_custom_call.1} parent=11 // pred_check
        %p250 = pneg %p62
      $region14: #{tpu_custom_call.1} parent=11 // pred_check_branch
        %252 = sbr.rel (%p250) target = $region16
      $region15: #{tpu_custom_call.1} parent=11 // pred_region
        _
      $region16: #{tpu_custom_call.1} parent=11 // pred_fallthru
        _
      // Predicated region
      $region17: #{tpu_custom_call.1} parent=11 // pred_check
        %p253 = pneg %p83
      $region18: #{tpu_custom_call.1} parent=11 // pred_check_branch
        %255 = sbr.rel (%p253) target = $region20
      $region19: #{tpu_custom_call.1} parent=11 // pred_region
        _
      $region20: #{tpu_custom_call.1} parent=11 // pred_fallthru
        _
      // Predicated region
      $region21: #{tpu_custom_call.1} parent=11 // pred_check
        %p256 = pneg %p104
      $region22: #{tpu_custom_call.1} parent=11 // pred_check_branch
        %258 = sbr.rel (%p256) target = $region24
      $region23: #{tpu_custom_call.1} parent=11 // pred_region
        _
      $region24: #{tpu_custom_call.1} parent=11 // pred_fallthru
        _
      // Predicated region
      $region25: #{tpu_custom_call.1} parent=11 // pred_check
        %p259 = pneg %p125
      $region26: #{tpu_custom_call.1} parent=11 // pred_check_branch
        %261 = sbr.rel (%p259) target = $region28
      $region27: #{tpu_custom_call.1} parent=11 // pred_region
        _
      $region28: #{tpu_custom_call.1} parent=11 // pred_fallthru
        _
      // Predicated region
      $region29: #{tpu_custom_call.1} parent=11 // pred_check
        %p262 = pneg %p146
      $region30: #{tpu_custom_call.1} parent=11 // pred_check_branch
        %264 = sbr.rel (%p262) target = $region32
      $region31: #{tpu_custom_call.1} parent=11 // pred_region
        _
      $region32: #{tpu_custom_call.1} parent=11 // pred_fallthru
        _
      // Predicated region
      $region33: #{tpu_custom_call.1} parent=11 // pred_check
        %p265 = pneg %p167
      $region34: #{tpu_custom_call.1} parent=11 // pred_check_branch
        %267 = sbr.rel (%p265) target = $region36
      $region35: #{tpu_custom_call.1} parent=11 // pred_region
        _
      $region36: #{tpu_custom_call.1} parent=11 // pred_fallthru
        _
      // Predicated region
      $region37: #{tpu_custom_call.1} parent=11 // pred_check
        %p268 = pneg %p188
      $region38: #{tpu_custom_call.1} parent=11 // pred_check_branch
        %270 = sbr.rel (%p268) target = $region40
      $region39: #{tpu_custom_call.1} parent=11 // pred_region
        _
      $region40: #{tpu_custom_call.1} parent=11 // pred_fallthru
        _
      // Predicated region
      $region41: #{tpu_custom_call.1} parent=11 // pred_check
        %p271 = pneg %p209
      $region42: #{tpu_custom_call.1} parent=11 // pred_check_branch
        %273 = sbr.rel (%p271) target = $region44
      $region43: #{tpu_custom_call.1} parent=11 // pred_region
        _
      $region44: #{tpu_custom_call.1} parent=11 // pred_fallthru
        _
    $region12: #{tpu_custom_call.1} parent=5 // pred_fallthru
      _
    %p274 = scmp.lt.s32.totalorder %s15, 2
    // Predicated region
    $region45: #{tpu_custom_call.1} parent=5 // pred_check
      %p275 = pneg %p274
    $region46: #{tpu_custom_call.1} parent=5 // pred_check_branch
      %277 = sbr.rel (%p275) target = $region48
    $region47: #{tpu_custom_call.1} parent=5 // pred_region
      // Predicated region
      $region49: #{tpu_custom_call.1} parent=47 // pred_check
        %p278 = pneg %p35
      $region50: #{tpu_custom_call.1} parent=47 // pred_check_branch
        %280 = sbr.rel (%p278) target = $region52
      $region51: #{tpu_custom_call.1} parent=47 // pred_region
        %p281 = scmp.lt.s32.totalorder %s15, 1
        %s282 = scalar_select %p281, %s15, 1
        %s283 = smul.addr %s282, 9
        %s284 = smul.addr %s283, 8
        %s285 = scalar_lea.vmem %s0, %s284
      $region52: #{tpu_custom_call.1} parent=47 // pred_fallthru
        _
    $region48: #{tpu_custom_call.1} parent=5 // pred_fallthru
      _
    %p286 = scmp.le.s32.totalorder 1, %s15
    %p287 = scmp.lt.s32.totalorder %s15, 3
    %p288 = pnand %p286, %p287
    %p289 = pneg %p288
    // Predicated region
    $region53: #{tpu_custom_call.1} parent=5 // pred_check
      _
    $region54: #{tpu_custom_call.1} parent=5 // pred_check_branch
      %291 = sbr.rel (%p288) target = $region56
    $region55: #{tpu_custom_call.1} parent=5 // pred_region
      %s292 = ssub.s32 %s15, 1
      %p293 = scmp.lt.s32.totalorder %s20, 1
      %s294 = scalar_select %p293, %s20, 1
      %s295 = smul.addr %s294, 9
      %s296 = smul.addr %s295, 8
      %s297 = scalar_lea.vmem %s0, %s296
      %p298 = pneg %p41
      %p299 = pneg %p38
      %p300 = pneg %p62
      %p301 = pneg %p59
      %p302 = pneg %p83
      %p303 = pneg %p80
      %p304 = pneg %p104
      %p305 = pneg %p101
      %p306 = pneg %p125
      %p307 = pneg %p122
      %p308 = pneg %p146
      %p309 = pneg %p143
      %p310 = pneg %p167
      %p311 = pneg %p164
      %p312 = pneg %p188
      %p313 = pneg %p185
      %p314 = pneg %p209
      %p315 = pneg %p206
      %p316 = pneg %p235
      %p317 = pneg %p232
      %p318 = scmp.lt.s32.totalorder %s20, 1
      %s319 = scalar_select %p318, %s20, 1
      %s320 = smul.addr %s319, 9
      %s321 = smul.addr %s320, 8
      %s322 = scalar_lea.vmem %s9, %s321
      %p323 = scmp.lt.s32.totalorder %s20, 1
      %s324 = scalar_select %p323, %s20, 1
      %s325 = smul.addr %s324, 9
      %s326 = smul.addr %s325, 8
      %s327 = scalar_lea.vmem %s0, %s326
      %p328 = scmp.lt.s32.totalorder %s20, 1
      %s329 = scalar_select %p328, %s20, 1
      %s330 = smul.addr %s329, 9
      %s331 = smul.addr %s330, 8
      %s332 = scalar_lea.vmem %s9, %s331
      %v334 = vld [vmem:[%s327] sm:$0x1]
      %v335 = vld [vmem:[%s327 + $0x1] sm:$0xff]
      %v336 = vld [vmem:[%s327 + $0x9] sm:$0xff]
      %v337 = vld [vmem:[%s327 + $0x11] sm:$0xff]
      %v338 = vld [vmem:[%s327 + $0x19] sm:$0xff]
      %v339 = vld [vmem:[%s327 + $0x21] sm:$0xff]
      %v340 = vld [vmem:[%s327 + $0x29] sm:$0xff]
      %v341 = vld [vmem:[%s327 + $0x31] sm:$0xff]
      %v342 = vld [vmem:[%s327 + $0x39] sm:$0xff]
      %vm343 = vcmask 261120
      %344 = vst.msk [vmem:[#allocation2] sm:$0xff] %vm343, 0.0
      %vm345 = vcmask 254976
      %346 = vst.msk [vmem:[#allocation2 + $0x8] sm:$0x3] %vm345, 0.0
      %347 = vst.msk [vmem:[#allocation2 + $0x10] sm:$0xff] %vm343, 0.0
      %348 = vst.msk [vmem:[#allocation2 + $0x18] sm:$0x3] %vm345, 0.0
      %349 = vst.msk [vmem:[#allocation2 + $0x20] sm:$0xff] %vm343, 0.0
      %350 = vst.msk [vmem:[#allocation2 + $0x28] sm:$0x3] %vm345, 0.0
      %351 = vst.msk [vmem:[#allocation2 + $0x30] sm:$0xff] %vm343, 0.0
      %352 = vst.msk [vmem:[#allocation2 + $0x38] sm:$0x3] %vm345, 0.0
      %353 = vst.msk [vmem:[#allocation2 + $0x40] sm:$0xff] %vm343, 0.0
      %354 = vst.msk [vmem:[#allocation2 + $0x48] sm:$0x3] %vm345, 0.0
      %355 = vst.msk [vmem:[#allocation2 + $0x50] sm:$0xff] %vm343, 0.0
      %356 = vst.msk [vmem:[#allocation2 + $0x58] sm:$0x3] %vm345, 0.0
      %357 = vst.msk [vmem:[#allocation2 + $0x60] sm:$0xff] %vm343, 0.0
      %358 = vst.msk [vmem:[#allocation2 + $0x68] sm:$0x3] %vm345, 0.0
      %359 = vst.msk [vmem:[#allocation2 + $0x70] sm:$0xff] %vm343, 0.0
      %360 = vst.msk [vmem:[#allocation2 + $0x78] sm:$0x3] %vm345, 0.0
      %361 = vst.msk [vmem:[#allocation2 + $0x80] sm:$0xff] %vm343, 0.0
      %362 = vst.msk [vmem:[#allocation2 + $0x88] sm:$0x3] %vm345, 0.0
      %363 = vst.msk [vmem:[#allocation2 + $0x90] sm:$0xff] %vm343, 0.0
      %364 = vst.msk [vmem:[#allocation2 + $0x98] sm:$0x3] %vm345, 0.0
      %s365 = scalar_lea.vmem [#allocation2], 16
      %366 = vst.msk [vmem:[%s365 + $0x1] sm:$0xff] %vm343, %v335
      %s367 = scalar_lea.vmem [#allocation2], 32
      %368 = vst.msk [vmem:[%s367 + $0x1] sm:$0xff] %vm343, %v336
      %s369 = scalar_lea.vmem [#allocation2], 48
      %370 = vst.msk [vmem:[%s369 + $0x1] sm:$0xff] %vm343, %v337
      %s371 = scalar_lea.vmem [#allocation2], 64
      %372 = vst.msk [vmem:[%s371 + $0x1] sm:$0xff] %vm343, %v338
      %s373 = scalar_lea.vmem [#allocation2], 80
      %374 = vst.msk [vmem:[%s373 + $0x1] sm:$0xff] %vm343, %v339
      %s375 = scalar_lea.vmem [#allocation2], 96
      %376 = vst.msk [vmem:[%s375 + $0x1] sm:$0xff] %vm343, %v340
      %s377 = scalar_lea.vmem [#allocation2], 112
      %378 = vst.msk [vmem:[%s377 + $0x1] sm:$0xff] %vm343, %v341
      %s379 = scalar_lea.vmem [#allocation2], 128
      %380 = vst.msk [vmem:[%s379 + $0x1] sm:$0xff] %vm343, %v342
      %v381 = vld [vmem:[#allocation2] sm:$0xff]
      %v382 = vld [vmem:[#allocation2 + $0x8] sm:$0x3]
      %v383 = vld [vmem:[#allocation2 + $0x10] sm:$0xff]
      %v384 = vld [vmem:[#allocation2 + $0x18] sm:$0x3]
      %v385 = vld [vmem:[#allocation2 + $0x20] sm:$0xff]
      %v386 = vld [vmem:[#allocation2 + $0x28] sm:$0x3]
      %v387 = vld [vmem:[#allocation2 + $0x30] sm:$0xff]
      %v388 = vld [vmem:[#allocation2 + $0x38] sm:$0x3]
      %v389 = vld [vmem:[#allocation2 + $0x40] sm:$0xff]
      %v390 = vld [vmem:[#allocation2 + $0x48] sm:$0x3]
      %v391 = vld [vmem:[#allocation2 + $0x50] sm:$0xff]
      %v392 = vld [vmem:[#allocation2 + $0x58] sm:$0x3]
      %v393 = vld [vmem:[#allocation2 + $0x60] sm:$0xff]
      %v394 = vld [vmem:[#allocation2 + $0x68] sm:$0x3]
      %v395 = vld [vmem:[#allocation2 + $0x70] sm:$0xff]
      %v396 = vld [vmem:[#allocation2 + $0x78] sm:$0x3]
      %v397 = vld [vmem:[#allocation2 + $0x80] sm:$0xff]
      %v398 = vld [vmem:[#allocation2 + $0x88] sm:$0x3]
      %v399 = vld [vmem:[#allocation2 + $0x90] sm:$0xff]
      %v400 = vld [vmem:[#allocation2 + $0x98] sm:$0x3]
      %v401 = vld [vmem:[%s1] sm:$0x1]
      %v402 = vlaneseq
      %v403 = vshrl.u32 %v402, 7
      %v404 = vsub.s32 0, %v403
      %v405 = vrot.slane %v401, %v404
      %v406 = vmul.f32 %v381, %v405
      %v407 = vmul.f32 %v383, %v405
      %v408 = vmul.f32 %v385, %v405
      %v409 = vmul.f32 %v387, %v405
      %v410 = vmul.f32 %v389, %v405
      %v411 = vmul.f32 %v391, %v405
      %v412 = vmul.f32 %v393, %v405
      %v413 = vmul.f32 %v395, %v405
      %v414 = vadd.f32 %v406, 0.0
      %v415 = vadd.f32 %v407, 0.0
      %v416 = vadd.f32 %v408, 0.0
      %v417 = vadd.f32 %v409, 0.0
      %v418 = vadd.f32 %v410, 0.0
      %v419 = vadd.f32 %v411, 0.0
      %v420 = vadd.f32 %v412, 0.0
      %v421 = vadd.f32 %v413, 0.0
      %s422 = scalar_lea.vmem %s1, 16
      %v423 = vld [vmem:[%s422] sm:$0x1]
      %v424 = vlaneseq
      %v425 = vshrl.u32 %v424, 7
      %v426 = vsub.s32 0, %v425
      %v427 = vrot.slane %v423, %v426
      %v428 = vmul.f32 %v381, %v427
      %v429 = vmul.f32 %v383, %v427
      %v430 = vmul.f32 %v385, %v427
      %v431 = vmul.f32 %v387, %v427
      %v432 = vmul.f32 %v389, %v427
      %v433 = vmul.f32 %v391, %v427
      %v434 = vmul.f32 %v393, %v427
      %v435 = vmul.f32 %v395, %v427
      %v436 = vadd.f32 %v428, 0.0
      %v437 = vadd.f32 %v429, 0.0
      %v438 = vadd.f32 %v430, 0.0
      %v439 = vadd.f32 %v431, 0.0
      %v440 = vadd.f32 %v432, 0.0
      %v441 = vadd.f32 %v433, 0.0
      %v442 = vadd.f32 %v434, 0.0
      %v443 = vadd.f32 %v435, 0.0
      %s444 = scalar_lea.vmem %s1, 32
      %v445 = vld [vmem:[%s444] sm:$0x1]
      %v446 = vlaneseq
      %v447 = vshrl.u32 %v446, 7
      %v448 = vsub.s32 0, %v447
      %v449 = vrot.slane %v445, %v448
      %v450 = vmul.f32 %v381, %v449
      %v451 = vmul.f32 %v383, %v449
      %v452 = vmul.f32 %v385, %v449
      %v453 = vmul.f32 %v387, %v449
      %v454 = vmul.f32 %v389, %v449
      %v455 = vmul.f32 %v391, %v449
      %v456 = vmul.f32 %v393, %v449
      %v457 = vmul.f32 %v395, %v449
      %v458 = vadd.f32 %v450, 0.0
      %v459 = vadd.f32 %v451, 0.0
      %v460 = vadd.f32 %v452, 0.0
      %v461 = vadd.f32 %v453, 0.0
      %v462 = vadd.f32 %v454, 0.0
      %v463 = vadd.f32 %v455, 0.0
      %v464 = vadd.f32 %v456, 0.0
      %v465 = vadd.f32 %v457, 0.0
      %v466 = vld [vmem:[%s1 + $0x1] sm:$0x1]
      %v467 = vlaneseq
      %v468 = vshrl.u32 %v467, 7
      %v469 = vsub.s32 0, %v468
      %v470 = vrot.slane %v466, %v469
      %v471 = vmul.f32 %v381, %v470
      %v472 = vmul.f32 %v382, %v470
      %v473 = vmul.f32 %v383, %v470
      %v474 = vmul.f32 %v384, %v470
      %v475 = vmul.f32 %v385, %v470
      %v476 = vmul.f32 %v386, %v470
      %v477 = vmul.f32 %v387, %v470
      %v478 = vmul.f32 %v388, %v470
      %v479 = vmul.f32 %v389, %v470
      %v480 = vmul.f32 %v390, %v470
      %v481 = vmul.f32 %v391, %v470
      %v482 = vmul.f32 %v392, %v470
      %v483 = vmul.f32 %v393, %v470
      %v484 = vmul.f32 %v394, %v470
      %v485 = vmul.f32 %v395, %v470
      %v486 = vmul.f32 %v396, %v470
      %vm503 = vcmask 1046528
      %v504 = vrot.slane %v471, 1
      %v505 = vrot.slane %v472, 1
      %v506 = vsel %vm503, %v504, %v505
      %v507 = vrot.slane %v473, 1
      %v508 = vrot.slane %v474, 1
      %v509 = vsel %vm503, %v507, %v508
      %v510 = vrot.slane %v475, 1
      %v511 = vrot.slane %v476, 1
      %v512 = vsel %vm503, %v510, %v511
      %v513 = vrot.slane %v477, 1
      %v514 = vrot.slane %v478, 1
      %v515 = vsel %vm503, %v513, %v514
      %v516 = vrot.slane %v479, 1
      %v517 = vrot.slane %v480, 1
      %v518 = vsel %vm503, %v516, %v517
      %v519 = vrot.slane %v481, 1
      %v520 = vrot.slane %v482, 1
      %v521 = vsel %vm503, %v519, %v520
      %v522 = vrot.slane %v483, 1
      %v523 = vrot.slane %v484, 1
      %v524 = vsel %vm503, %v522, %v523
      %v525 = vrot.slane %v485, 1
      %v526 = vrot.slane %v486, 1
      %v527 = vsel %vm503, %v525, %v526
      %v536 = vadd.f32 %v414, %v506
      %v537 = vadd.f32 %v415, %v509
      %v538 = vadd.f32 %v416, %v512
      %v539 = vadd.f32 %v417, %v515
      %v540 = vadd.f32 %v418, %v518
      %v541 = vadd.f32 %v419, %v521
      %v542 = vadd.f32 %v420, %v524
      %v543 = vadd.f32 %v421, %v527
      %v544 = vld [vmem:[%s422 + $0x1] sm:$0x1]
      %v545 = vlaneseq
      %v546 = vshrl.u32 %v545, 7
      %v547 = vsub.s32 0, %v546
      %v548 = vrot.slane %v544, %v547
      %v549 = vmul.f32 %v381, %v548
      %v550 = vmul.f32 %v382, %v548
      %v551 = vmul.f32 %v383, %v548
      %v552 = vmul.f32 %v384, %v548
      %v553 = vmul.f32 %v385, %v548
      %v554 = vmul.f32 %v386, %v548
      %v555 = vmul.f32 %v387, %v548
      %v556 = vmul.f32 %v388, %v548
      %v557 = vmul.f32 %v389, %v548
      %v558 = vmul.f32 %v390, %v548
      %v559 = vmul.f32 %v391, %v548
      %v560 = vmul.f32 %v392, %v548
      %v561 = vmul.f32 %v393, %v548
      %v562 = vmul.f32 %v394, %v548
      %v563 = vmul.f32 %v395, %v548
      %v564 = vmul.f32 %v396, %v548
      %v581 = vrot.slane %v549, 1
      %v582 = vrot.slane %v550, 1
      %v583 = vsel %vm503, %v581, %v582
      %v584 = vrot.slane %v551, 1
      %v585 = vrot.slane %v552, 1
      %v586 = vsel %vm503, %v584, %v585
      %v587 = vrot.slane %v553, 1
      %v588 = vrot.slane %v554, 1
      %v589 = vsel %vm503, %v587, %v588
      %v590 = vrot.slane %v555, 1
      %v591 = vrot.slane %v556, 1
      %v592 = vsel %vm503, %v590, %v591
      %v593 = vrot.slane %v557, 1
      %v594 = vrot.slane %v558, 1
      %v595 = vsel %vm503, %v593, %v594
      %v596 = vrot.slane %v559, 1
      %v597 = vrot.slane %v560, 1
      %v598 = vsel %vm503, %v596, %v597
      %v599 = vrot.slane %v561, 1
      %v600 = vrot.slane %v562, 1
      %v601 = vsel %vm503, %v599, %v600
      %v602 = vrot.slane %v563, 1
      %v603 = vrot.slane %v564, 1
      %v604 = vsel %vm503, %v602, %v603
      %v613 = vadd.f32 %v436, %v583
      %v614 = vadd.f32 %v437, %v586
      %v615 = vadd.f32 %v438, %v589
      %v616 = vadd.f32 %v439, %v592
      %v617 = vadd.f32 %v440, %v595
      %v618 = vadd.f32 %v441, %v598
      %v619 = vadd.f32 %v442, %v601
      %v620 = vadd.f32 %v443, %v604
      %v621 = vld [vmem:[%s444 + $0x1] sm:$0x1]
      %v622 = vlaneseq
      %v623 = vshrl.u32 %v622, 7
      %v624 = vsub.s32 0, %v623
      %v625 = vrot.slane %v621, %v624
      %v626 = vmul.f32 %v381, %v625
      %v627 = vmul.f32 %v382, %v625
      %v628 = vmul.f32 %v383, %v625
      %v629 = vmul.f32 %v384, %v625
      %v630 = vmul.f32 %v385, %v625
      %v631 = vmul.f32 %v386, %v625
      %v632 = vmul.f32 %v387, %v625
      %v633 = vmul.f32 %v388, %v625
      %v634 = vmul.f32 %v389, %v625
      %v635 = vmul.f32 %v390, %v625
      %v636 = vmul.f32 %v391, %v625
      %v637 = vmul.f32 %v392, %v625
      %v638 = vmul.f32 %v393, %v625
      %v639 = vmul.f32 %v394, %v625
      %v640 = vmul.f32 %v395, %v625
      %v641 = vmul.f32 %v396, %v625
      %v658 = vrot.slane %v626, 1
      %v659 = vrot.slane %v627, 1
      %v660 = vsel %vm503, %v658, %v659
      %v661 = vrot.slane %v628, 1
      %v662 = vrot.slane %v629, 1
      %v663 = vsel %vm503, %v661, %v662
      %v664 = vrot.slane %v630, 1
      %v665 = vrot.slane %v631, 1
      %v666 = vsel %vm503, %v664, %v665
      %v667 = vrot.slane %v632, 1
      %v668 = vrot.slane %v633, 1
      %v669 = vsel %vm503, %v667, %v668
      %v670 = vrot.slane %v634, 1
      %v671 = vrot.slane %v635, 1
      %v672 = vsel %vm503, %v670, %v671
      %v673 = vrot.slane %v636, 1
      %v674 = vrot.slane %v637, 1
      %v675 = vsel %vm503, %v673, %v674
      %v676 = vrot.slane %v638, 1
      %v677 = vrot.slane %v639, 1
      %v678 = vsel %vm503, %v676, %v677
      %v679 = vrot.slane %v640, 1
      %v680 = vrot.slane %v641, 1
      %v681 = vsel %vm503, %v679, %v680
      %v690 = vadd.f32 %v458, %v660
      %v691 = vadd.f32 %v459, %v663
      %v692 = vadd.f32 %v460, %v666
      %v693 = vadd.f32 %v461, %v669
      %v694 = vadd.f32 %v462, %v672
      %v695 = vadd.f32 %v463, %v675
      %v696 = vadd.f32 %v464, %v678
      %v697 = vadd.f32 %v465, %v681
      %v698 = vld [vmem:[%s1 + $0x2] sm:$0x1]
      %v699 = vlaneseq
      %v700 = vshrl.u32 %v699, 7
      %v701 = vsub.s32 0, %v700
      %v702 = vrot.slane %v698, %v701
      %v703 = vmul.f32 %v381, %v702
      %v704 = vmul.f32 %v382, %v702
      %v705 = vmul.f32 %v383, %v702
      %v706 = vmul.f32 %v384, %v702
      %v707 = vmul.f32 %v385, %v702
      %v708 = vmul.f32 %v386, %v702
      %v709 = vmul.f32 %v387, %v702
      %v710 = vmul.f32 %v388, %v702
      %v711 = vmul.f32 %v389, %v702
      %v712 = vmul.f32 %v390, %v702
      %v713 = vmul.f32 %v391, %v702
      %v714 = vmul.f32 %v392, %v702
      %v715 = vmul.f32 %v393, %v702
      %v716 = vmul.f32 %v394, %v702
      %v717 = vmul.f32 %v395, %v702
      %v718 = vmul.f32 %v396, %v702
      %vm735 = vcmask 1045504
      %v736 = vrot.slane %v703, 2
      %v737 = vrot.slane %v704, 2
      %v738 = vsel %vm735, %v736, %v737
      %v739 = vrot.slane %v705, 2
      %v740 = vrot.slane %v706, 2
      %v741 = vsel %vm735, %v739, %v740
      %v742 = vrot.slane %v707, 2
      %v743 = vrot.slane %v708, 2
      %v744 = vsel %vm735, %v742, %v743
      %v745 = vrot.slane %v709, 2
      %v746 = vrot.slane %v710, 2
      %v747 = vsel %vm735, %v745, %v746
      %v748 = vrot.slane %v711, 2
      %v749 = vrot.slane %v712, 2
      %v750 = vsel %vm735, %v748, %v749
      %v751 = vrot.slane %v713, 2
      %v752 = vrot.slane %v714, 2
      %v753 = vsel %vm735, %v751, %v752
      %v754 = vrot.slane %v715, 2
      %v755 = vrot.slane %v716, 2
      %v756 = vsel %vm735, %v754, %v755
      %v757 = vrot.slane %v717, 2
      %v758 = vrot.slane %v718, 2
      %v759 = vsel %vm735, %v757, %v758
      %v768 = vadd.f32 %v536, %v738
      %v769 = vadd.f32 %v537, %v741
      %v770 = vadd.f32 %v538, %v744
      %v771 = vadd.f32 %v539, %v747
      %v772 = vadd.f32 %v540, %v750
      %v773 = vadd.f32 %v541, %v753
      %v774 = vadd.f32 %v542, %v756
      %v775 = vadd.f32 %v543, %v759
      %v776 = vld [vmem:[%s422 + $0x2] sm:$0x1]
      %v777 = vlaneseq
      %v778 = vshrl.u32 %v777, 7
      %v779 = vsub.s32 0, %v778
      %v780 = vrot.slane %v776, %v779
      %v781 = vmul.f32 %v381, %v780
      %v782 = vmul.f32 %v382, %v780
      %v783 = vmul.f32 %v383, %v780
      %v784 = vmul.f32 %v384, %v780
      %v785 = vmul.f32 %v385, %v780
      %v786 = vmul.f32 %v386, %v780
      %v787 = vmul.f32 %v387, %v780
      %v788 = vmul.f32 %v388, %v780
      %v789 = vmul.f32 %v389, %v780
      %v790 = vmul.f32 %v390, %v780
      %v791 = vmul.f32 %v391, %v780
      %v792 = vmul.f32 %v392, %v780
      %v793 = vmul.f32 %v393, %v780
      %v794 = vmul.f32 %v394, %v780
      %v795 = vmul.f32 %v395, %v780
      %v796 = vmul.f32 %v396, %v780
      %v813 = vrot.slane %v781, 2
      %v814 = vrot.slane %v782, 2
      %v815 = vsel %vm735, %v813, %v814
      %v816 = vrot.slane %v783, 2
      %v817 = vrot.slane %v784, 2
      %v818 = vsel %vm735, %v816, %v817
      %v819 = vrot.slane %v785, 2
      %v820 = vrot.slane %v786, 2
      %v821 = vsel %vm735, %v819, %v820
      %v822 = vrot.slane %v787, 2
      %v823 = vrot.slane %v788, 2
      %v824 = vsel %vm735, %v822, %v823
      %v825 = vrot.slane %v789, 2
      %v826 = vrot.slane %v790, 2
      %v827 = vsel %vm735, %v825, %v826
      %v828 = vrot.slane %v791, 2
      %v829 = vrot.slane %v792, 2
      %v830 = vsel %vm735, %v828, %v829
      %v831 = vrot.slane %v793, 2
      %v832 = vrot.slane %v794, 2
      %v833 = vsel %vm735, %v831, %v832
      %v834 = vrot.slane %v795, 2
      %v835 = vrot.slane %v796, 2
      %v836 = vsel %vm735, %v834, %v835
      %v845 = vadd.f32 %v613, %v815
      %v846 = vadd.f32 %v614, %v818
      %v847 = vadd.f32 %v615, %v821
      %v848 = vadd.f32 %v616, %v824
      %v849 = vadd.f32 %v617, %v827
      %v850 = vadd.f32 %v618, %v830
      %v851 = vadd.f32 %v619, %v833
      %v852 = vadd.f32 %v620, %v836
      %v853 = vld [vmem:[%s444 + $0x2] sm:$0x1]
      %v854 = vlaneseq
      %v855 = vshrl.u32 %v854, 7
      %v856 = vsub.s32 0, %v855
      %v857 = vrot.slane %v853, %v856
      %v858 = vmul.f32 %v381, %v857
      %v859 = vmul.f32 %v382, %v857
      %v860 = vmul.f32 %v383, %v857
      %v861 = vmul.f32 %v384, %v857
      %v862 = vmul.f32 %v385, %v857
      %v863 = vmul.f32 %v386, %v857
      %v864 = vmul.f32 %v387, %v857
      %v865 = vmul.f32 %v388, %v857
      %v866 = vmul.f32 %v389, %v857
      %v867 = vmul.f32 %v390, %v857
      %v868 = vmul.f32 %v391, %v857
      %v869 = vmul.f32 %v392, %v857
      %v870 = vmul.f32 %v393, %v857
      %v871 = vmul.f32 %v394, %v857
      %v872 = vmul.f32 %v395, %v857
      %v873 = vmul.f32 %v396, %v857
      %v890 = vrot.slane %v858, 2
      %v891 = vrot.slane %v859, 2
      %v892 = vsel %vm735, %v890, %v891
      %v893 = vrot.slane %v860, 2
      %v894 = vrot.slane %v861, 2
      %v895 = vsel %vm735, %v893, %v894
      %v896 = vrot.slane %v862, 2
      %v897 = vrot.slane %v863, 2
      %v898 = vsel %vm735, %v896, %v897
      %v899 = vrot.slane %v864, 2
      %v900 = vrot.slane %v865, 2
      %v901 = vsel %vm735, %v899, %v900
      %v902 = vrot.slane %v866, 2
      %v903 = vrot.slane %v867, 2
      %v904 = vsel %vm735, %v902, %v903
      %v905 = vrot.slane %v868, 2
      %v906 = vrot.slane %v869, 2
      %v907 = vsel %vm735, %v905, %v906
      %v908 = vrot.slane %v870, 2
      %v909 = vrot.slane %v871, 2
      %v910 = vsel %vm735, %v908, %v909
      %v911 = vrot.slane %v872, 2
      %v912 = vrot.slane %v873, 2
      %v913 = vsel %vm735, %v911, %v912
      %v922 = vadd.f32 %v690, %v892
      %v923 = vadd.f32 %v691, %v895
      %v924 = vadd.f32 %v692, %v898
      %v925 = vadd.f32 %v693, %v901
      %v926 = vadd.f32 %v694, %v904
      %v927 = vadd.f32 %v695, %v907
      %v928 = vadd.f32 %v696, %v910
      %v929 = vadd.f32 %v697, %v913
      %v930 = vld [vmem:[%s1 + $0x3] sm:$0x1]
      %v931 = vlaneseq
      %v932 = vshrl.u32 %v931, 7
      %v933 = vsub.s32 0, %v932
      %v934 = vrot.slane %v930, %v933
      %v935 = vmul.f32 %v383, %v934
      %v936 = vmul.f32 %v385, %v934
      %v937 = vmul.f32 %v387, %v934
      %v938 = vmul.f32 %v389, %v934
      %v939 = vmul.f32 %v391, %v934
      %v940 = vmul.f32 %v393, %v934
      %v941 = vmul.f32 %v395, %v934
      %v942 = vmul.f32 %v397, %v934
      %v943 = vadd.f32 %v768, %v935
      %v944 = vadd.f32 %v769, %v936
      %v945 = vadd.f32 %v770, %v937
      %v946 = vadd.f32 %v771, %v938
      %v947 = vadd.f32 %v772, %v939
      %v948 = vadd.f32 %v773, %v940
      %v949 = vadd.f32 %v774, %v941
      %v950 = vadd.f32 %v775, %v942
      %v951 = vld [vmem:[%s422 + $0x3] sm:$0x1]
      %v952 = vlaneseq
      %v953 = vshrl.u32 %v952, 7
      %v954 = vsub.s32 0, %v953
      %v955 = vrot.slane %v951, %v954
      %v956 = vmul.f32 %v383, %v955
      %v957 = vmul.f32 %v385, %v955
      %v958 = vmul.f32 %v387, %v955
      %v959 = vmul.f32 %v389, %v955
      %v960 = vmul.f32 %v391, %v955
      %v961 = vmul.f32 %v393, %v955
      %v962 = vmul.f32 %v395, %v955
      %v963 = vmul.f32 %v397, %v955
      %v964 = vadd.f32 %v845, %v956
      %v965 = vadd.f32 %v846, %v957
      %v966 = vadd.f32 %v847, %v958
      %v967 = vadd.f32 %v848, %v959
      %v968 = vadd.f32 %v849, %v960
      %v969 = vadd.f32 %v850, %v961
      %v970 = vadd.f32 %v851, %v962
      %v971 = vadd.f32 %v852, %v963
      %v972 = vld [vmem:[%s444 + $0x3] sm:$0x1]
      %v973 = vlaneseq
      %v974 = vshrl.u32 %v973, 7
      %v975 = vsub.s32 0, %v974
      %v976 = vrot.slane %v972, %v975
      %v977 = vmul.f32 %v383, %v976
      %v978 = vmul.f32 %v385, %v976
      %v979 = vmul.f32 %v387, %v976
      %v980 = vmul.f32 %v389, %v976
      %v981 = vmul.f32 %v391, %v976
      %v982 = vmul.f32 %v393, %v976
      %v983 = vmul.f32 %v395, %v976
      %v984 = vmul.f32 %v397, %v976
      %v985 = vadd.f32 %v922, %v977
      %v986 = vadd.f32 %v923, %v978
      %v987 = vadd.f32 %v924, %v979
      %v988 = vadd.f32 %v925, %v980
      %v989 = vadd.f32 %v926, %v981
      %v990 = vadd.f32 %v927, %v982
      %v991 = vadd.f32 %v928, %v983
      %v992 = vadd.f32 %v929, %v984
      %v993 = vld [vmem:[%s1 + $0x4] sm:$0x1]
      %v994 = vlaneseq
      %v995 = vshrl.u32 %v994, 7
      %v996 = vsub.s32 0, %v995
      %v997 = vrot.slane %v993, %v996
      %v998 = vmul.f32 %v383, %v997
      %v999 = vmul.f32 %v384, %v997
      %v1000 = vmul.f32 %v385, %v997
      %v1001 = vmul.f32 %v386, %v997
      %v1002 = vmul.f32 %v387, %v997
      %v1003 = vmul.f32 %v388, %v997
      %v1004 = vmul.f32 %v389, %v997
      %v1005 = vmul.f32 %v390, %v997
      %v1006 = vmul.f32 %v391, %v997
      %v1007 = vmul.f32 %v392, %v997
      %v1008 = vmul.f32 %v393, %v997
      %v1009 = vmul.f32 %v394, %v997
      %v1010 = vmul.f32 %v395, %v997
      %v1011 = vmul.f32 %v396, %v997
      %v1012 = vmul.f32 %v397, %v997
      %v1013 = vmul.f32 %v398, %v997
      %v1030 = vrot.slane %v998, 1
      %v1031 = vrot.slane %v999, 1
      %v1032 = vsel %vm503, %v1030, %v1031
      %v1033 = vrot.slane %v1000, 1
      %v1034 = vrot.slane %v1001, 1
      %v1035 = vsel %vm503, %v1033, %v1034
      %v1036 = vrot.slane %v1002, 1
      %v1037 = vrot.slane %v1003, 1
      %v1038 = vsel %vm503, %v1036, %v1037
      %v1039 = vrot.slane %v1004, 1
      %v1040 = vrot.slane %v1005, 1
      %v1041 = vsel %vm503, %v1039, %v1040
      %v1042 = vrot.slane %v1006, 1
      %v1043 = vrot.slane %v1007, 1
      %v1044 = vsel %vm503, %v1042, %v1043
      %v1045 = vrot.slane %v1008, 1
      %v1046 = vrot.slane %v1009, 1
      %v1047 = vsel %vm503, %v1045, %v1046
      %v1048 = vrot.slane %v1010, 1
      %v1049 = vrot.slane %v1011, 1
      %v1050 = vsel %vm503, %v1048, %v1049
      %v1051 = vrot.slane %v1012, 1
      %v1052 = vrot.slane %v1013, 1
      %v1053 = vsel %vm503, %v1051, %v1052
      %v1062 = vadd.f32 %v943, %v1032
      %v1063 = vadd.f32 %v944, %v1035
      %v1064 = vadd.f32 %v945, %v1038
      %v1065 = vadd.f32 %v946, %v1041
      %v1066 = vadd.f32 %v947, %v1044
      %v1067 = vadd.f32 %v948, %v1047
      %v1068 = vadd.f32 %v949, %v1050
      %v1069 = vadd.f32 %v950, %v1053
      %v1070 = vld [vmem:[%s422 + $0x4] sm:$0x1]
      %v1071 = vlaneseq
      %v1072 = vshrl.u32 %v1071, 7
      %v1073 = vsub.s32 0, %v1072
      %v1074 = vrot.slane %v1070, %v1073
      %v1075 = vmul.f32 %v383, %v1074
      %v1076 = vmul.f32 %v384, %v1074
      %v1077 = vmul.f32 %v385, %v1074
      %v1078 = vmul.f32 %v386, %v1074
      %v1079 = vmul.f32 %v387, %v1074
      %v1080 = vmul.f32 %v388, %v1074
      %v1081 = vmul.f32 %v389, %v1074
      %v1082 = vmul.f32 %v390, %v1074
      %v1083 = vmul.f32 %v391, %v1074
      %v1084 = vmul.f32 %v392, %v1074
      %v1085 = vmul.f32 %v393, %v1074
      %v1086 = vmul.f32 %v394, %v1074
      %v1087 = vmul.f32 %v395, %v1074
      %v1088 = vmul.f32 %v396, %v1074
      %v1089 = vmul.f32 %v397, %v1074
      %v1090 = vmul.f32 %v398, %v1074
      %v1107 = vrot.slane %v1075, 1
      %v1108 = vrot.slane %v1076, 1
      %v1109 = vsel %vm503, %v1107, %v1108
      %v1110 = vrot.slane %v1077, 1
      %v1111 = vrot.slane %v1078, 1
      %v1112 = vsel %vm503, %v1110, %v1111
      %v1113 = vrot.slane %v1079, 1
      %v1114 = vrot.slane %v1080, 1
      %v1115 = vsel %vm503, %v1113, %v1114
      %v1116 = vrot.slane %v1081, 1
      %v1117 = vrot.slane %v1082, 1
      %v1118 = vsel %vm503, %v1116, %v1117
      %v1119 = vrot.slane %v1083, 1
      %v1120 = vrot.slane %v1084, 1
      %v1121 = vsel %vm503, %v1119, %v1120
      %v1122 = vrot.slane %v1085, 1
      %v1123 = vrot.slane %v1086, 1
      %v1124 = vsel %vm503, %v1122, %v1123
      %v1125 = vrot.slane %v1087, 1
      %v1126 = vrot.slane %v1088, 1
      %v1127 = vsel %vm503, %v1125, %v1126
      %v1128 = vrot.slane %v1089, 1
      %v1129 = vrot.slane %v1090, 1
      %v1130 = vsel %vm503, %v1128, %v1129
      %v1139 = vadd.f32 %v964, %v1109
      %v1140 = vadd.f32 %v965, %v1112
      %v1141 = vadd.f32 %v966, %v1115
      %v1142 = vadd.f32 %v967, %v1118
      %v1143 = vadd.f32 %v968, %v1121
      %v1144 = vadd.f32 %v969, %v1124
      %v1145 = vadd.f32 %v970, %v1127
      %v1146 = vadd.f32 %v971, %v1130
      %v1147 = vld [vmem:[%s444 + $0x4] sm:$0x1]
      %v1148 = vlaneseq
      %v1149 = vshrl.u32 %v1148, 7
      %v1150 = vsub.s32 0, %v1149
      %v1151 = vrot.slane %v1147, %v1150
      %v1152 = vmul.f32 %v383, %v1151
      %v1153 = vmul.f32 %v384, %v1151
      %v1154 = vmul.f32 %v385, %v1151
      %v1155 = vmul.f32 %v386, %v1151
      %v1156 = vmul.f32 %v387, %v1151
      %v1157 = vmul.f32 %v388, %v1151
      %v1158 = vmul.f32 %v389, %v1151
      %v1159 = vmul.f32 %v390, %v1151
      %v1160 = vmul.f32 %v391, %v1151
      %v1161 = vmul.f32 %v392, %v1151
      %v1162 = vmul.f32 %v393, %v1151
      %v1163 = vmul.f32 %v394, %v1151
      %v1164 = vmul.f32 %v395, %v1151
      %v1165 = vmul.f32 %v396, %v1151
      %v1166 = vmul.f32 %v397, %v1151
      %v1167 = vmul.f32 %v398, %v1151
      %v1184 = vrot.slane %v1152, 1
      %v1185 = vrot.slane %v1153, 1
      %v1186 = vsel %vm503, %v1184, %v1185
      %v1187 = vrot.slane %v1154, 1
      %v1188 = vrot.slane %v1155, 1
      %v1189 = vsel %vm503, %v1187, %v1188
      %v1190 = vrot.slane %v1156, 1
      %v1191 = vrot.slane %v1157, 1
      %v1192 = vsel %vm503, %v1190, %v1191
      %v1193 = vrot.slane %v1158, 1
      %v1194 = vrot.slane %v1159, 1
      %v1195 = vsel %vm503, %v1193, %v1194
      %v1196 = vrot.slane %v1160, 1
      %v1197 = vrot.slane %v1161, 1
      %v1198 = vsel %vm503, %v1196, %v1197
      %v1199 = vrot.slane %v1162, 1
      %v1200 = vrot.slane %v1163, 1
      %v1201 = vsel %vm503, %v1199, %v1200
      %v1202 = vrot.slane %v1164, 1
      %v1203 = vrot.slane %v1165, 1
      %v1204 = vsel %vm503, %v1202, %v1203
      %v1205 = vrot.slane %v1166, 1
      %v1206 = vrot.slane %v1167, 1
      %v1207 = vsel %vm503, %v1205, %v1206
      %v1216 = vadd.f32 %v985, %v1186
      %v1217 = vadd.f32 %v986, %v1189
      %v1218 = vadd.f32 %v987, %v1192
      %v1219 = vadd.f32 %v988, %v1195
      %v1220 = vadd.f32 %v989, %v1198
      %v1221 = vadd.f32 %v990, %v1201
      %v1222 = vadd.f32 %v991, %v1204
      %v1223 = vadd.f32 %v992, %v1207
      %v1224 = vld [vmem:[%s1 + $0x5] sm:$0x1]
      %v1225 = vlaneseq
      %v1226 = vshrl.u32 %v1225, 7
      %v1227 = vsub.s32 0, %v1226
      %v1228 = vrot.slane %v1224, %v1227
      %v1229 = vmul.f32 %v383, %v1228
      %v1230 = vmul.f32 %v384, %v1228
      %v1231 = vmul.f32 %v385, %v1228
      %v1232 = vmul.f32 %v386, %v1228
      %v1233 = vmul.f32 %v387, %v1228
      %v1234 = vmul.f32 %v388, %v1228
      %v1235 = vmul.f32 %v389, %v1228
      %v1236 = vmul.f32 %v390, %v1228
      %v1237 = vmul.f32 %v391, %v1228
      %v1238 = vmul.f32 %v392, %v1228
      %v1239 = vmul.f32 %v393, %v1228
      %v1240 = vmul.f32 %v394, %v1228
      %v1241 = vmul.f32 %v395, %v1228
      %v1242 = vmul.f32 %v396, %v1228
      %v1243 = vmul.f32 %v397, %v1228
      %v1244 = vmul.f32 %v398, %v1228
      %v1261 = vrot.slane %v1229, 2
      %v1262 = vrot.slane %v1230, 2
      %v1263 = vsel %vm735, %v1261, %v1262
      %v1264 = vrot.slane %v1231, 2
      %v1265 = vrot.slane %v1232, 2
      %v1266 = vsel %vm735, %v1264, %v1265
      %v1267 = vrot.slane %v1233, 2
      %v1268 = vrot.slane %v1234, 2
      %v1269 = vsel %vm735, %v1267, %v1268
      %v1270 = vrot.slane %v1235, 2
      %v1271 = vrot.slane %v1236, 2
      %v1272 = vsel %vm735, %v1270, %v1271
      %v1273 = vrot.slane %v1237, 2
      %v1274 = vrot.slane %v1238, 2
      %v1275 = vsel %vm735, %v1273, %v1274
      %v1276 = vrot.slane %v1239, 2
      %v1277 = vrot.slane %v1240, 2
      %v1278 = vsel %vm735, %v1276, %v1277
      %v1279 = vrot.slane %v1241, 2
      %v1280 = vrot.slane %v1242, 2
      %v1281 = vsel %vm735, %v1279, %v1280
      %v1282 = vrot.slane %v1243, 2
      %v1283 = vrot.slane %v1244, 2
      %v1284 = vsel %vm735, %v1282, %v1283
      %v1293 = vadd.f32 %v1062, %v1263
      %v1294 = vadd.f32 %v1063, %v1266
      %v1295 = vadd.f32 %v1064, %v1269
      %v1296 = vadd.f32 %v1065, %v1272
      %v1297 = vadd.f32 %v1066, %v1275
      %v1298 = vadd.f32 %v1067, %v1278
      %v1299 = vadd.f32 %v1068, %v1281
      %v1300 = vadd.f32 %v1069, %v1284
      %v1301 = vld [vmem:[%s422 + $0x5] sm:$0x1]
      %v1302 = vlaneseq
      %v1303 = vshrl.u32 %v1302, 7
      %v1304 = vsub.s32 0, %v1303
      %v1305 = vrot.slane %v1301, %v1304
      %v1306 = vmul.f32 %v383, %v1305
      %v1307 = vmul.f32 %v384, %v1305
      %v1308 = vmul.f32 %v385, %v1305
      %v1309 = vmul.f32 %v386, %v1305
      %v1310 = vmul.f32 %v387, %v1305
      %v1311 = vmul.f32 %v388, %v1305
      %v1312 = vmul.f32 %v389, %v1305
      %v1313 = vmul.f32 %v390, %v1305
      %v1314 = vmul.f32 %v391, %v1305
      %v1315 = vmul.f32 %v392, %v1305
      %v1316 = vmul.f32 %v393, %v1305
      %v1317 = vmul.f32 %v394, %v1305
      %v1318 = vmul.f32 %v395, %v1305
      %v1319 = vmul.f32 %v396, %v1305
      %v1320 = vmul.f32 %v397, %v1305
      %v1321 = vmul.f32 %v398, %v1305
      %v1338 = vrot.slane %v1306, 2
      %v1339 = vrot.slane %v1307, 2
      %v1340 = vsel %vm735, %v1338, %v1339
      %v1341 = vrot.slane %v1308, 2
      %v1342 = vrot.slane %v1309, 2
      %v1343 = vsel %vm735, %v1341, %v1342
      %v1344 = vrot.slane %v1310, 2
      %v1345 = vrot.slane %v1311, 2
      %v1346 = vsel %vm735, %v1344, %v1345
      %v1347 = vrot.slane %v1312, 2
      %v1348 = vrot.slane %v1313, 2
      %v1349 = vsel %vm735, %v1347, %v1348
      %v1350 = vrot.slane %v1314, 2
      %v1351 = vrot.slane %v1315, 2
      %v1352 = vsel %vm735, %v1350, %v1351
      %v1353 = vrot.slane %v1316, 2
      %v1354 = vrot.slane %v1317, 2
      %v1355 = vsel %vm735, %v1353, %v1354
      %v1356 = vrot.slane %v1318, 2
      %v1357 = vrot.slane %v1319, 2
      %v1358 = vsel %vm735, %v1356, %v1357
      %v1359 = vrot.slane %v1320, 2
      %v1360 = vrot.slane %v1321, 2
      %v1361 = vsel %vm735, %v1359, %v1360
      %v1370 = vadd.f32 %v1139, %v1340
      %v1371 = vadd.f32 %v1140, %v1343
      %v1372 = vadd.f32 %v1141, %v1346
      %v1373 = vadd.f32 %v1142, %v1349
      %v1374 = vadd.f32 %v1143, %v1352
      %v1375 = vadd.f32 %v1144, %v1355
      %v1376 = vadd.f32 %v1145, %v1358
      %v1377 = vadd.f32 %v1146, %v1361
      %v1378 = vld [vmem:[%s444 + $0x5] sm:$0x1]
      %v1379 = vlaneseq
      %v1380 = vshrl.u32 %v1379, 7
      %v1381 = vsub.s32 0, %v1380
      %v1382 = vrot.slane %v1378, %v1381
      %v1383 = vmul.f32 %v383, %v1382
      %v1384 = vmul.f32 %v384, %v1382
      %v1385 = vmul.f32 %v385, %v1382
      %v1386 = vmul.f32 %v386, %v1382
      %v1387 = vmul.f32 %v387, %v1382
      %v1388 = vmul.f32 %v388, %v1382
      %v1389 = vmul.f32 %v389, %v1382
      %v1390 = vmul.f32 %v390, %v1382
      %v1391 = vmul.f32 %v391, %v1382
      %v1392 = vmul.f32 %v392, %v1382
      %v1393 = vmul.f32 %v393, %v1382
      %v1394 = vmul.f32 %v394, %v1382
      %v1395 = vmul.f32 %v395, %v1382
      %v1396 = vmul.f32 %v396, %v1382
      %v1397 = vmul.f32 %v397, %v1382
      %v1398 = vmul.f32 %v398, %v1382
      %v1415 = vrot.slane %v1383, 2
      %v1416 = vrot.slane %v1384, 2
      %v1417 = vsel %vm735, %v1415, %v1416
      %v1418 = vrot.slane %v1385, 2
      %v1419 = vrot.slane %v1386, 2
      %v1420 = vsel %vm735, %v1418, %v1419
      %v1421 = vrot.slane %v1387, 2
      %v1422 = vrot.slane %v1388, 2
      %v1423 = vsel %vm735, %v1421, %v1422
      %v1424 = vrot.slane %v1389, 2
      %v1425 = vrot.slane %v1390, 2
      %v1426 = vsel %vm735, %v1424, %v1425
      %v1427 = vrot.slane %v1391, 2
      %v1428 = vrot.slane %v1392, 2
      %v1429 = vsel %vm735, %v1427, %v1428
      %v1430 = vrot.slane %v1393, 2
      %v1431 = vrot.slane %v1394, 2
      %v1432 = vsel %vm735, %v1430, %v1431
      %v1433 = vrot.slane %v1395, 2
      %v1434 = vrot.slane %v1396, 2
      %v1435 = vsel %vm735, %v1433, %v1434
      %v1436 = vrot.slane %v1397, 2
      %v1437 = vrot.slane %v1398, 2
      %v1438 = vsel %vm735, %v1436, %v1437
      %v1447 = vadd.f32 %v1216, %v1417
      %v1448 = vadd.f32 %v1217, %v1420
      %v1449 = vadd.f32 %v1218, %v1423
      %v1450 = vadd.f32 %v1219, %v1426
      %v1451 = vadd.f32 %v1220, %v1429
      %v1452 = vadd.f32 %v1221, %v1432
      %v1453 = vadd.f32 %v1222, %v1435
      %v1454 = vadd.f32 %v1223, %v1438
      %v1455 = vld [vmem:[%s1 + $0x6] sm:$0x1]
      %v1456 = vlaneseq
      %v1457 = vshrl.u32 %v1456, 7
      %v1458 = vsub.s32 0, %v1457
      %v1459 = vrot.slane %v1455, %v1458
      %v1460 = vmul.f32 %v385, %v1459
      %v1461 = vmul.f32 %v387, %v1459
      %v1462 = vmul.f32 %v389, %v1459
      %v1463 = vmul.f32 %v391, %v1459
      %v1464 = vmul.f32 %v393, %v1459
      %v1465 = vmul.f32 %v395, %v1459
      %v1466 = vmul.f32 %v397, %v1459
      %v1467 = vmul.f32 %v399, %v1459
      %v1468 = vadd.f32 %v1293, %v1460
      %v1469 = vadd.f32 %v1294, %v1461
      %v1470 = vadd.f32 %v1295, %v1462
      %v1471 = vadd.f32 %v1296, %v1463
      %v1472 = vadd.f32 %v1297, %v1464
      %v1473 = vadd.f32 %v1298, %v1465
      %v1474 = vadd.f32 %v1299, %v1466
      %v1475 = vadd.f32 %v1300, %v1467
      %v1476 = vld [vmem:[%s422 + $0x6] sm:$0x1]
      %v1477 = vlaneseq
      %v1478 = vshrl.u32 %v1477, 7
      %v1479 = vsub.s32 0, %v1478
      %v1480 = vrot.slane %v1476, %v1479
      %v1481 = vmul.f32 %v385, %v1480
      %v1482 = vmul.f32 %v387, %v1480
      %v1483 = vmul.f32 %v389, %v1480
      %v1484 = vmul.f32 %v391, %v1480
      %v1485 = vmul.f32 %v393, %v1480
      %v1486 = vmul.f32 %v395, %v1480
      %v1487 = vmul.f32 %v397, %v1480
      %v1488 = vmul.f32 %v399, %v1480
      %v1489 = vadd.f32 %v1370, %v1481
      %v1490 = vadd.f32 %v1371, %v1482
      %v1491 = vadd.f32 %v1372, %v1483
      %v1492 = vadd.f32 %v1373, %v1484
      %v1493 = vadd.f32 %v1374, %v1485
      %v1494 = vadd.f32 %v1375, %v1486
      %v1495 = vadd.f32 %v1376, %v1487
      %v1496 = vadd.f32 %v1377, %v1488
      %v1497 = vld [vmem:[%s444 + $0x6] sm:$0x1]
      %v1498 = vlaneseq
      %v1499 = vshrl.u32 %v1498, 7
      %v1500 = vsub.s32 0, %v1499
      %v1501 = vrot.slane %v1497, %v1500
      %v1502 = vmul.f32 %v385, %v1501
      %v1503 = vmul.f32 %v387, %v1501
      %v1504 = vmul.f32 %v389, %v1501
      %v1505 = vmul.f32 %v391, %v1501
      %v1506 = vmul.f32 %v393, %v1501
      %v1507 = vmul.f32 %v395, %v1501
      %v1508 = vmul.f32 %v397, %v1501
      %v1509 = vmul.f32 %v399, %v1501
      %v1510 = vadd.f32 %v1447, %v1502
      %v1511 = vadd.f32 %v1448, %v1503
      %v1512 = vadd.f32 %v1449, %v1504
      %v1513 = vadd.f32 %v1450, %v1505
      %v1514 = vadd.f32 %v1451, %v1506
      %v1515 = vadd.f32 %v1452, %v1507
      %v1516 = vadd.f32 %v1453, %v1508
      %v1517 = vadd.f32 %v1454, %v1509
      %v1518 = vld [vmem:[%s1 + $0x7] sm:$0x1]
      %v1519 = vlaneseq
      %v1520 = vshrl.u32 %v1519, 7
      %v1521 = vsub.s32 0, %v1520
      %v1522 = vrot.slane %v1518, %v1521
      %v1523 = vmul.f32 %v385, %v1522
      %v1524 = vmul.f32 %v386, %v1522
      %v1525 = vmul.f32 %v387, %v1522
      %v1526 = vmul.f32 %v388, %v1522
      %v1527 = vmul.f32 %v389, %v1522
      %v1528 = vmul.f32 %v390, %v1522
      %v1529 = vmul.f32 %v391, %v1522
      %v1530 = vmul.f32 %v392, %v1522
      %v1531 = vmul.f32 %v393, %v1522
      %v1532 = vmul.f32 %v394, %v1522
      %v1533 = vmul.f32 %v395, %v1522
      %v1534 = vmul.f32 %v396, %v1522
      %v1535 = vmul.f32 %v397, %v1522
      %v1536 = vmul.f32 %v398, %v1522
      %v1537 = vmul.f32 %v399, %v1522
      %v1538 = vmul.f32 %v400, %v1522
      %v1555 = vrot.slane %v1523, 1
      %v1556 = vrot.slane %v1524, 1
      %v1557 = vsel %vm503, %v1555, %v1556
      %v1558 = vrot.slane %v1525, 1
      %v1559 = vrot.slane %v1526, 1
      %v1560 = vsel %vm503, %v1558, %v1559
      %v1561 = vrot.slane %v1527, 1
      %v1562 = vrot.slane %v1528, 1
      %v1563 = vsel %vm503, %v1561, %v1562
      %v1564 = vrot.slane %v1529, 1
      %v1565 = vrot.slane %v1530, 1
      %v1566 = vsel %vm503, %v1564, %v1565
      %v1567 = vrot.slane %v1531, 1
      %v1568 = vrot.slane %v1532, 1
      %v1569 = vsel %vm503, %v1567, %v1568
      %v1570 = vrot.slane %v1533, 1
      %v1571 = vrot.slane %v1534, 1
      %v1572 = vsel %vm503, %v1570, %v1571
      %v1573 = vrot.slane %v1535, 1
      %v1574 = vrot.slane %v1536, 1
      %v1575 = vsel %vm503, %v1573, %v1574
      %v1576 = vrot.slane %v1537, 1
      %v1577 = vrot.slane %v1538, 1
      %v1578 = vsel %vm503, %v1576, %v1577
      %v1587 = vadd.f32 %v1468, %v1557
      %v1588 = vadd.f32 %v1469, %v1560
      %v1589 = vadd.f32 %v1470, %v1563
      %v1590 = vadd.f32 %v1471, %v1566
      %v1591 = vadd.f32 %v1472, %v1569
      %v1592 = vadd.f32 %v1473, %v1572
      %v1593 = vadd.f32 %v1474, %v1575
      %v1594 = vadd.f32 %v1475, %v1578
      %v1595 = vld [vmem:[%s422 + $0x7] sm:$0x1]
      %v1596 = vlaneseq
      %v1597 = vshrl.u32 %v1596, 7
      %v1598 = vsub.s32 0, %v1597
      %v1599 = vrot.slane %v1595, %v1598
      %v1600 = vmul.f32 %v385, %v1599
      %v1601 = vmul.f32 %v386, %v1599
      %v1602 = vmul.f32 %v387, %v1599
      %v1603 = vmul.f32 %v388, %v1599
      %v1604 = vmul.f32 %v389, %v1599
      %v1605 = vmul.f32 %v390, %v1599
      %v1606 = vmul.f32 %v391, %v1599
      %v1607 = vmul.f32 %v392, %v1599
      %v1608 = vmul.f32 %v393, %v1599
      %v1609 = vmul.f32 %v394, %v1599
      %v1610 = vmul.f32 %v395, %v1599
      %v1611 = vmul.f32 %v396, %v1599
      %v1612 = vmul.f32 %v397, %v1599
      %v1613 = vmul.f32 %v398, %v1599
      %v1614 = vmul.f32 %v399, %v1599
      %v1615 = vmul.f32 %v400, %v1599
      %v1632 = vrot.slane %v1600, 1
      %v1633 = vrot.slane %v1601, 1
      %v1634 = vsel %vm503, %v1632, %v1633
      %v1635 = vrot.slane %v1602, 1
      %v1636 = vrot.slane %v1603, 1
      %v1637 = vsel %vm503, %v1635, %v1636
      %v1638 = vrot.slane %v1604, 1
      %v1639 = vrot.slane %v1605, 1
      %v1640 = vsel %vm503, %v1638, %v1639
      %v1641 = vrot.slane %v1606, 1
      %v1642 = vrot.slane %v1607, 1
      %v1643 = vsel %vm503, %v1641, %v1642
      %v1644 = vrot.slane %v1608, 1
      %v1645 = vrot.slane %v1609, 1
      %v1646 = vsel %vm503, %v1644, %v1645
      %v1647 = vrot.slane %v1610, 1
      %v1648 = vrot.slane %v1611, 1
      %v1649 = vsel %vm503, %v1647, %v1648
      %v1650 = vrot.slane %v1612, 1
      %v1651 = vrot.slane %v1613, 1
      %v1652 = vsel %vm503, %v1650, %v1651
      %v1653 = vrot.slane %v1614, 1
      %v1654 = vrot.slane %v1615, 1
      %v1655 = vsel %vm503, %v1653, %v1654
      %v1664 = vadd.f32 %v1489, %v1634
      %v1665 = vadd.f32 %v1490, %v1637
      %v1666 = vadd.f32 %v1491, %v1640
      %v1667 = vadd.f32 %v1492, %v1643
      %v1668 = vadd.f32 %v1493, %v1646
      %v1669 = vadd.f32 %v1494, %v1649
      %v1670 = vadd.f32 %v1495, %v1652
      %v1671 = vadd.f32 %v1496, %v1655
      %v1672 = vld [vmem:[%s444 + $0x7] sm:$0x1]
      %v1673 = vlaneseq
      %v1674 = vshrl.u32 %v1673, 7
      %v1675 = vsub.s32 0, %v1674
      %v1676 = vrot.slane %v1672, %v1675
      %v1677 = vmul.f32 %v385, %v1676
      %v1678 = vmul.f32 %v386, %v1676
      %v1679 = vmul.f32 %v387, %v1676
      %v1680 = vmul.f32 %v388, %v1676
      %v1681 = vmul.f32 %v389, %v1676
      %v1682 = vmul.f32 %v390, %v1676
      %v1683 = vmul.f32 %v391, %v1676
      %v1684 = vmul.f32 %v392, %v1676
      %v1685 = vmul.f32 %v393, %v1676
      %v1686 = vmul.f32 %v394, %v1676
      %v1687 = vmul.f32 %v395, %v1676
      %v1688 = vmul.f32 %v396, %v1676
      %v1689 = vmul.f32 %v397, %v1676
      %v1690 = vmul.f32 %v398, %v1676
      %v1691 = vmul.f32 %v399, %v1676
      %v1692 = vmul.f32 %v400, %v1676
      %v1709 = vrot.slane %v1677, 1
      %v1710 = vrot.slane %v1678, 1
      %v1711 = vsel %vm503, %v1709, %v1710
      %v1712 = vrot.slane %v1679, 1
      %v1713 = vrot.slane %v1680, 1
      %v1714 = vsel %vm503, %v1712, %v1713
      %v1715 = vrot.slane %v1681, 1
      %v1716 = vrot.slane %v1682, 1
      %v1717 = vsel %vm503, %v1715, %v1716
      %v1718 = vrot.slane %v1683, 1
      %v1719 = vrot.slane %v1684, 1
      %v1720 = vsel %vm503, %v1718, %v1719
      %v1721 = vrot.slane %v1685, 1
      %v1722 = vrot.slane %v1686, 1
      %v1723 = vsel %vm503, %v1721, %v1722
      %v1724 = vrot.slane %v1687, 1
      %v1725 = vrot.slane %v1688, 1
      %v1726 = vsel %vm503, %v1724, %v1725
      %v1727 = vrot.slane %v1689, 1
      %v1728 = vrot.slane %v1690, 1
      %v1729 = vsel %vm503, %v1727, %v1728
      %v1730 = vrot.slane %v1691, 1
      %v1731 = vrot.slane %v1692, 1
      %v1732 = vsel %vm503, %v1730, %v1731
      %v1741 = vadd.f32 %v1510, %v1711
      %v1742 = vadd.f32 %v1511, %v1714
      %v1743 = vadd.f32 %v1512, %v1717
      %v1744 = vadd.f32 %v1513, %v1720
      %v1745 = vadd.f32 %v1514, %v1723
      %v1746 = vadd.f32 %v1515, %v1726
      %v1747 = vadd.f32 %v1516, %v1729
      %v1748 = vadd.f32 %v1517, %v1732
      %v1749 = vld [vmem:[%s1 + $0x8] sm:$0x1]
      %v1750 = vlaneseq
      %v1751 = vshrl.u32 %v1750, 7
      %v1752 = vsub.s32 0, %v1751
      %v1753 = vrot.slane %v1749, %v1752
      %v1754 = vmul.f32 %v385, %v1753
      %v1755 = vmul.f32 %v386, %v1753
      %v1756 = vmul.f32 %v387, %v1753
      %v1757 = vmul.f32 %v388, %v1753
      %v1758 = vmul.f32 %v389, %v1753
      %v1759 = vmul.f32 %v390, %v1753
      %v1760 = vmul.f32 %v391, %v1753
      %v1761 = vmul.f32 %v392, %v1753
      %v1762 = vmul.f32 %v393, %v1753
      %v1763 = vmul.f32 %v394, %v1753
      %v1764 = vmul.f32 %v395, %v1753
      %v1765 = vmul.f32 %v396, %v1753
      %v1766 = vmul.f32 %v397, %v1753
      %v1767 = vmul.f32 %v398, %v1753
      %v1768 = vmul.f32 %v399, %v1753
      %v1769 = vmul.f32 %v400, %v1753
      %v1786 = vrot.slane %v1754, 2
      %v1787 = vrot.slane %v1755, 2
      %v1788 = vsel %vm735, %v1786, %v1787
      %v1789 = vrot.slane %v1756, 2
      %v1790 = vrot.slane %v1757, 2
      %v1791 = vsel %vm735, %v1789, %v1790
      %v1792 = vrot.slane %v1758, 2
      %v1793 = vrot.slane %v1759, 2
      %v1794 = vsel %vm735, %v1792, %v1793
      %v1795 = vrot.slane %v1760, 2
      %v1796 = vrot.slane %v1761, 2
      %v1797 = vsel %vm735, %v1795, %v1796
      %v1798 = vrot.slane %v1762, 2
      %v1799 = vrot.slane %v1763, 2
      %v1800 = vsel %vm735, %v1798, %v1799
      %v1801 = vrot.slane %v1764, 2
      %v1802 = vrot.slane %v1765, 2
      %v1803 = vsel %vm735, %v1801, %v1802
      %v1804 = vrot.slane %v1766, 2
      %v1805 = vrot.slane %v1767, 2
      %v1806 = vsel %vm735, %v1804, %v1805
      %v1807 = vrot.slane %v1768, 2
      %v1808 = vrot.slane %v1769, 2
      %v1809 = vsel %vm735, %v1807, %v1808
      %v1818 = vadd.f32 %v1587, %v1788
      %v1819 = vadd.f32 %v1588, %v1791
      %v1820 = vadd.f32 %v1589, %v1794
      %v1821 = vadd.f32 %v1590, %v1797
      %v1822 = vadd.f32 %v1591, %v1800
      %v1823 = vadd.f32 %v1592, %v1803
      %v1824 = vadd.f32 %v1593, %v1806
      %v1825 = vadd.f32 %v1594, %v1809
      %v1826 = vld [vmem:[%s422 + $0x8] sm:$0x1]
      %v1827 = vlaneseq
      %v1828 = vshrl.u32 %v1827, 7
      %v1829 = vsub.s32 0, %v1828
      %v1830 = vrot.slane %v1826, %v1829
      %v1831 = vmul.f32 %v385, %v1830
      %v1832 = vmul.f32 %v386, %v1830
      %v1833 = vmul.f32 %v387, %v1830
      %v1834 = vmul.f32 %v388, %v1830
      %v1835 = vmul.f32 %v389, %v1830
      %v1836 = vmul.f32 %v390, %v1830
      %v1837 = vmul.f32 %v391, %v1830
      %v1838 = vmul.f32 %v392, %v1830
      %v1839 = vmul.f32 %v393, %v1830
      %v1840 = vmul.f32 %v394, %v1830
      %v1841 = vmul.f32 %v395, %v1830
      %v1842 = vmul.f32 %v396, %v1830
      %v1843 = vmul.f32 %v397, %v1830
      %v1844 = vmul.f32 %v398, %v1830
      %v1845 = vmul.f32 %v399, %v1830
      %v1846 = vmul.f32 %v400, %v1830
      %v1863 = vrot.slane %v1831, 2
      %v1864 = vrot.slane %v1832, 2
      %v1865 = vsel %vm735, %v1863, %v1864
      %v1866 = vrot.slane %v1833, 2
      %v1867 = vrot.slane %v1834, 2
      %v1868 = vsel %vm735, %v1866, %v1867
      %v1869 = vrot.slane %v1835, 2
      %v1870 = vrot.slane %v1836, 2
      %v1871 = vsel %vm735, %v1869, %v1870
      %v1872 = vrot.slane %v1837, 2
      %v1873 = vrot.slane %v1838, 2
      %v1874 = vsel %vm735, %v1872, %v1873
      %v1875 = vrot.slane %v1839, 2
      %v1876 = vrot.slane %v1840, 2
      %v1877 = vsel %vm735, %v1875, %v1876
      %v1878 = vrot.slane %v1841, 2
      %v1879 = vrot.slane %v1842, 2
      %v1880 = vsel %vm735, %v1878, %v1879
      %v1881 = vrot.slane %v1843, 2
      %v1882 = vrot.slane %v1844, 2
      %v1883 = vsel %vm735, %v1881, %v1882
      %v1884 = vrot.slane %v1845, 2
      %v1885 = vrot.slane %v1846, 2
      %v1886 = vsel %vm735, %v1884, %v1885
      %v1895 = vadd.f32 %v1664, %v1865
      %v1896 = vadd.f32 %v1665, %v1868
      %v1897 = vadd.f32 %v1666, %v1871
      %v1898 = vadd.f32 %v1667, %v1874
      %v1899 = vadd.f32 %v1668, %v1877
      %v1900 = vadd.f32 %v1669, %v1880
      %v1901 = vadd.f32 %v1670, %v1883
      %v1902 = vadd.f32 %v1671, %v1886
      %v1903 = vld [vmem:[%s444 + $0x8] sm:$0x1]
      %v1904 = vlaneseq
      %v1905 = vshrl.u32 %v1904, 7
      %v1906 = vsub.s32 0, %v1905
      %v1907 = vrot.slane %v1903, %v1906
      %v1908 = vmul.f32 %v385, %v1907
      %v1909 = vmul.f32 %v386, %v1907
      %v1910 = vmul.f32 %v387, %v1907
      %v1911 = vmul.f32 %v388, %v1907
      %v1912 = vmul.f32 %v389, %v1907
      %v1913 = vmul.f32 %v390, %v1907
      %v1914 = vmul.f32 %v391, %v1907
      %v1915 = vmul.f32 %v392, %v1907
      %v1916 = vmul.f32 %v393, %v1907
      %v1917 = vmul.f32 %v394, %v1907
      %v1918 = vmul.f32 %v395, %v1907
      %v1919 = vmul.f32 %v396, %v1907
      %v1920 = vmul.f32 %v397, %v1907
      %v1921 = vmul.f32 %v398, %v1907
      %v1922 = vmul.f32 %v399, %v1907
      %v1923 = vmul.f32 %v400, %v1907
      %v1940 = vrot.slane %v1908, 2
      %v1941 = vrot.slane %v1909, 2
      %v1942 = vsel %vm735, %v1940, %v1941
      %v1943 = vrot.slane %v1910, 2
      %v1944 = vrot.slane %v1911, 2
      %v1945 = vsel %vm735, %v1943, %v1944
      %v1946 = vrot.slane %v1912, 2
      %v1947 = vrot.slane %v1913, 2
      %v1948 = vsel %vm735, %v1946, %v1947
      %v1949 = vrot.slane %v1914, 2
      %v1950 = vrot.slane %v1915, 2
      %v1951 = vsel %vm735, %v1949, %v1950
      %v1952 = vrot.slane %v1916, 2
      %v1953 = vrot.slane %v1917, 2
      %v1954 = vsel %vm735, %v1952, %v1953
      %v1955 = vrot.slane %v1918, 2
      %v1956 = vrot.slane %v1919, 2
      %v1957 = vsel %vm735, %v1955, %v1956
      %v1958 = vrot.slane %v1920, 2
      %v1959 = vrot.slane %v1921, 2
      %v1960 = vsel %vm735, %v1958, %v1959
      %v1961 = vrot.slane %v1922, 2
      %v1962 = vrot.slane %v1923, 2
      %v1963 = vsel %vm735, %v1961, %v1962
      %v1972 = vadd.f32 %v1741, %v1942
      %v1973 = vadd.f32 %v1742, %v1945
      %v1974 = vadd.f32 %v1743, %v1948
      %v1975 = vadd.f32 %v1744, %v1951
      %v1976 = vadd.f32 %v1745, %v1954
      %v1977 = vadd.f32 %v1746, %v1957
      %v1978 = vadd.f32 %v1747, %v1960
      %v1979 = vadd.f32 %v1748, %v1963
      %1980 = vst.msk [vmem:[#allocation3] sm:$0xff] %vm343, 0.0
      %1981 = vst.msk [vmem:[#allocation3 + $0x8] sm:$0xff] %vm343, 0.0
      %1982 = vst.msk [vmem:[#allocation3 + $0x10] sm:$0xff] %vm343, 0.0
      %1983 = vst.msk [vmem:[#allocation3 + $0x18] sm:$0xff] %vm343, 0.0
      %1984 = vst.msk [vmem:[#allocation3 + $0x20] sm:$0xff] %vm343, 0.0
      %1985 = vst.msk [vmem:[#allocation3 + $0x28] sm:$0xff] %vm343, 0.0
      %1986 = vst.msk [vmem:[#allocation3 + $0x30] sm:$0xff] %vm343, 0.0
      %1987 = vst.msk [vmem:[#allocation3 + $0x38] sm:$0xff] %vm343, 0.0
      %1988 = vst.msk [vmem:[#allocation3 + $0x40] sm:$0xff] %vm343, 0.0
      %1989 = vst.msk [vmem:[#allocation3 + $0x48] sm:$0xff] %vm343, 0.0
      %1990 = vst.msk [vmem:[#allocation3 + $0x50] sm:$0xff] %vm343, 0.0
      %1991 = vst.msk [vmem:[#allocation3 + $0x58] sm:$0xff] %vm343, 0.0
      %1992 = vst.msk [vmem:[#allocation3 + $0x60] sm:$0xff] %vm343, 0.0
      %1993 = vst.msk [vmem:[#allocation3 + $0x68] sm:$0xff] %vm343, 0.0
      %1994 = vst.msk [vmem:[#allocation3 + $0x70] sm:$0xff] %vm343, 0.0
      %1995 = vst.msk [vmem:[#allocation3 + $0x78] sm:$0xff] %vm343, 0.0
      %1996 = vst.msk [vmem:[#allocation3 + $0x80] sm:$0xff] %vm343, 0.0
      %1997 = vst.msk [vmem:[#allocation3 + $0x88] sm:$0xff] %vm343, 0.0
      %1998 = vst.msk [vmem:[#allocation3 + $0x90] sm:$0xff] %vm343, 0.0
      %1999 = vst.msk [vmem:[#allocation3 + $0x98] sm:$0xff] %vm343, 0.0
      %2000 = vst.msk [vmem:[#allocation3 + $0xa0] sm:$0xff] %vm343, 0.0
      %2001 = vst.msk [vmem:[#allocation3 + $0xa8] sm:$0xff] %vm343, 0.0
      %2002 = vst.msk [vmem:[#allocation3 + $0xb0] sm:$0xff] %vm343, 0.0
      %2003 = vst.msk [vmem:[#allocation3 + $0xb8] sm:$0xff] %vm343, 0.0
      %2004 = vst.msk [vmem:[#allocation3 + $0xc0] sm:$0xff] %vm343, 0.0
      %2005 = vst.msk [vmem:[#allocation3 + $0xc8] sm:$0xff] %vm343, 0.0
      %2006 = vst.msk [vmem:[#allocation3 + $0xd0] sm:$0xff] %vm343, 0.0
      %2007 = vst.msk [vmem:[#allocation3 + $0xd8] sm:$0xff] %vm343, 0.0
      %2008 = vst.msk [vmem:[#allocation3 + $0xe0] sm:$0xff] %vm343, 0.0
      %2009 = vst.msk [vmem:[#allocation3 + $0xe8] sm:$0xff] %vm343, 0.0
      %2010 = vst.msk [vmem:[#allocation3 + $0xf0] sm:$0xff] %vm343, 0.0
      %2011 = vst.msk [vmem:[#allocation3 + $0xf8] sm:$0xff] %vm343, 0.0
      %2012 = vst.msk [vmem:[#allocation3 + $0x100] sm:$0xff] %vm343, 0.0
      %2013 = vst.msk [vmem:[#allocation3 + $0x108] sm:$0xff] %vm343, 0.0
      %2014 = vst.msk [vmem:[#allocation3 + $0x110] sm:$0xff] %vm343, 0.0
      %2015 = vst.msk [vmem:[#allocation3 + $0x118] sm:$0xff] %vm343, 0.0
      %2016 = vst.msk [vmem:[#allocation3 + $0x120] sm:$0xff] %vm343, 0.0
      %2017 = vst.msk [vmem:[#allocation3 + $0x128] sm:$0xff] %vm343, 0.0
      %2018 = vst.msk [vmem:[#allocation3 + $0x130] sm:$0xff] %vm343, 0.0
      %2019 = vst.msk [vmem:[#allocation3 + $0x138] sm:$0xff] %vm343, 0.0
      %2020 = vst.msk [vmem:[#allocation3 + $0x140] sm:$0xff] %vm343, 0.0
      %2021 = vst.msk [vmem:[#allocation3 + $0x148] sm:$0xff] %vm343, 0.0
      %2022 = vst.msk [vmem:[#allocation3 + $0x150] sm:$0xff] %vm343, 0.0
      %2023 = vst.msk [vmem:[#allocation3 + $0x158] sm:$0xff] %vm343, 0.0
      %2024 = vst.msk [vmem:[#allocation3 + $0x160] sm:$0xff] %vm343, 0.0
      %2025 = vst.msk [vmem:[#allocation3 + $0x168] sm:$0xff] %vm343, 0.0
      %2026 = vst.msk [vmem:[#allocation3 + $0x170] sm:$0xff] %vm343, 0.0
      %2027 = vst.msk [vmem:[#allocation3 + $0x178] sm:$0xff] %vm343, 0.0
      %v2028 = vld [vmem:[%s2] sm:$0x1]
      %v2029 = vlaneseq
      %v2030 = vshrl.u32 %v2029, 7
      %v2031 = vsub.s32 0, %v2030
      %v2032 = vrot.slane %v2028, %v2031
      %v2033 = vmul.f32 %v1818, %v2032
      %v2034 = vmul.f32 %v1819, %v2032
      %v2035 = vmul.f32 %v1820, %v2032
      %v2036 = vmul.f32 %v1821, %v2032
      %v2037 = vmul.f32 %v1822, %v2032
      %v2038 = vmul.f32 %v1823, %v2032
      %v2039 = vmul.f32 %v1824, %v2032
      %v2040 = vmul.f32 %v1825, %v2032
      %v2041 = vld [vmem:[%s3] sm:$0x1]
      %v2042 = vlaneseq
      %v2043 = vshrl.u32 %v2042, 7
      %v2044 = vsub.s32 0, %v2043
      %v2045 = vrot.slane %v2041, %v2044
      %v2046 = vadd.f32 %v2033, %v2045
      %v2047 = vadd.f32 %v2034, %v2045
      %v2048 = vadd.f32 %v2035, %v2045
      %v2049 = vadd.f32 %v2036, %v2045
      %v2050 = vadd.f32 %v2037, %v2045
      %v2051 = vadd.f32 %v2038, %v2045
      %v2052 = vadd.f32 %v2039, %v2045
      %v2053 = vadd.f32 %v2040, %v2045
      %vm2054 = vcmask 253952
      %2055 = vst.msk [vmem:[#allocation3] sm:$0x1] %vm2054, %v334
      %2056 = vst.msk [vmem:[#allocation3 + $0x1] sm:$0xff] %vm343, %v2046
      %2057 = vst.msk [vmem:[#allocation3 + $0x9] sm:$0xff] %vm343, %v2047
      %2058 = vst.msk [vmem:[#allocation3 + $0x11] sm:$0xff] %vm343, %v2048
      %2059 = vst.msk [vmem:[#allocation3 + $0x19] sm:$0xff] %vm343, %v2049
      %2060 = vst.msk [vmem:[#allocation3 + $0x21] sm:$0xff] %vm343, %v2050
      %2061 = vst.msk [vmem:[#allocation3 + $0x29] sm:$0xff] %vm343, %v2051
      %2062 = vst.msk [vmem:[#allocation3 + $0x31] sm:$0xff] %vm343, %v2052
      %2063 = vst.msk [vmem:[#allocation3 + $0x39] sm:$0xff] %vm343, %v2053
      %v2064 = vld [vmem:[%s2 + $0x1] sm:$0x1]
      %v2065 = vlaneseq
      %v2066 = vshrl.u32 %v2065, 7
      %v2067 = vsub.s32 0, %v2066
      %v2068 = vrot.slane %v2064, %v2067
      %v2069 = vmul.f32 %v1895, %v2068
      %v2070 = vmul.f32 %v1896, %v2068
      %v2071 = vmul.f32 %v1897, %v2068
      %v2072 = vmul.f32 %v1898, %v2068
      %v2073 = vmul.f32 %v1899, %v2068
      %v2074 = vmul.f32 %v1900, %v2068
      %v2075 = vmul.f32 %v1901, %v2068
      %v2076 = vmul.f32 %v1902, %v2068
      %v2077 = vld [vmem:[%s3 + $0x1] sm:$0x1]
      %v2078 = vlaneseq
      %v2079 = vshrl.u32 %v2078, 7
      %v2080 = vsub.s32 0, %v2079
      %v2081 = vrot.slane %v2077, %v2080
      %v2082 = vadd.f32 %v2069, %v2081
      %v2083 = vadd.f32 %v2070, %v2081
      %v2084 = vadd.f32 %v2071, %v2081
      %v2085 = vadd.f32 %v2072, %v2081
      %v2086 = vadd.f32 %v2073, %v2081
      %v2087 = vadd.f32 %v2074, %v2081
      %v2088 = vadd.f32 %v2075, %v2081
      %v2089 = vadd.f32 %v2076, %v2081
      %s2090 = scalar_lea.vmem [#allocation3], 128
      %2091 = vst.msk [vmem:[%s2090] sm:$0x1] %vm2054, %v334
      %2092 = vst.msk [vmem:[%s2090 + $0x1] sm:$0xff] %vm343, %v2082
      %2093 = vst.msk [vmem:[%s2090 + $0x9] sm:$0xff] %vm343, %v2083
      %2094 = vst.msk [vmem:[%s2090 + $0x11] sm:$0xff] %vm343, %v2084
      %2095 = vst.msk [vmem:[%s2090 + $0x19] sm:$0xff] %vm343, %v2085
      %2096 = vst.msk [vmem:[%s2090 + $0x21] sm:$0xff] %vm343, %v2086
      %2097 = vst.msk [vmem:[%s2090 + $0x29] sm:$0xff] %vm343, %v2087
      %2098 = vst.msk [vmem:[%s2090 + $0x31] sm:$0xff] %vm343, %v2088
      %2099 = vst.msk [vmem:[%s2090 + $0x39] sm:$0xff] %vm343, %v2089
      %v2100 = vld [vmem:[%s2 + $0x2] sm:$0x1]
      %v2101 = vlaneseq
      %v2102 = vshrl.u32 %v2101, 7
      %v2103 = vsub.s32 0, %v2102
      %v2104 = vrot.slane %v2100, %v2103
      %v2105 = vmul.f32 %v1972, %v2104
      %v2106 = vmul.f32 %v1973, %v2104
      %v2107 = vmul.f32 %v1974, %v2104
      %v2108 = vmul.f32 %v1975, %v2104
      %v2109 = vmul.f32 %v1976, %v2104
      %v2110 = vmul.f32 %v1977, %v2104
      %v2111 = vmul.f32 %v1978, %v2104
      %v2112 = vmul.f32 %v1979, %v2104
      %v2113 = vld [vmem:[%s3 + $0x2] sm:$0x1]
      %v2114 = vlaneseq
      %v2115 = vshrl.u32 %v2114, 7
      %v2116 = vsub.s32 0, %v2115
      %v2117 = vrot.slane %v2113, %v2116
      %v2118 = vadd.f32 %v2105, %v2117
      %v2119 = vadd.f32 %v2106, %v2117
      %v2120 = vadd.f32 %v2107, %v2117
      %v2121 = vadd.f32 %v2108, %v2117
      %v2122 = vadd.f32 %v2109, %v2117
      %v2123 = vadd.f32 %v2110, %v2117
      %v2124 = vadd.f32 %v2111, %v2117
      %v2125 = vadd.f32 %v2112, %v2117
      %s2126 = scalar_lea.vmem [#allocation3], 256
      %2127 = vst.msk [vmem:[%s2126] sm:$0x1] %vm2054, %v334
      %2128 = vst.msk [vmem:[%s2126 + $0x1] sm:$0xff] %vm343, %v2118
      %2129 = vst.msk [vmem:[%s2126 + $0x9] sm:$0xff] %vm343, %v2119
      %2130 = vst.msk [vmem:[%s2126 + $0x11] sm:$0xff] %vm343, %v2120
      %2131 = vst.msk [vmem:[%s2126 + $0x19] sm:$0xff] %vm343, %v2121
      %2132 = vst.msk [vmem:[%s2126 + $0x21] sm:$0xff] %vm343, %v2122
      %2133 = vst.msk [vmem:[%s2126 + $0x29] sm:$0xff] %vm343, %v2123
      %2134 = vst.msk [vmem:[%s2126 + $0x31] sm:$0xff] %vm343, %v2124
      %2135 = vst.msk [vmem:[%s2126 + $0x39] sm:$0xff] %vm343, %v2125
      %v2136 = vld [vmem:[#allocation3] sm:$0xff]
      %v2137 = vld [vmem:[#allocation3 + $0x8] sm:$0xff]
      %v2138 = vld [vmem:[#allocation3 + $0x10] sm:$0xff]
      %v2139 = vld [vmem:[#allocation3 + $0x18] sm:$0xff]
      %v2140 = vld [vmem:[#allocation3 + $0x20] sm:$0xff]
      %v2141 = vld [vmem:[#allocation3 + $0x28] sm:$0xff]
      %v2142 = vld [vmem:[#allocation3 + $0x30] sm:$0xff]
      %v2143 = vld [vmem:[#allocation3 + $0x38] sm:$0xff]
      %v2144 = vld [vmem:[#allocation3 + $0x40] sm:$0xff]
      %v2145 = vld [vmem:[#allocation3 + $0x48] sm:$0xff]
      %v2146 = vld [vmem:[#allocation3 + $0x50] sm:$0xff]
      %v2147 = vld [vmem:[#allocation3 + $0x58] sm:$0xff]
      %v2148 = vld [vmem:[#allocation3 + $0x60] sm:$0xff]
      %v2149 = vld [vmem:[#allocation3 + $0x68] sm:$0xff]
      %v2150 = vld [vmem:[#allocation3 + $0x70] sm:$0xff]
      %v2151 = vld [vmem:[#allocation3 + $0x78] sm:$0xff]
      %v2152 = vpack.c.bf16 %v2137, %v2136
      %v2153 = vpack.c.bf16 %v2139, %v2138
      %v2154 = vpack.c.bf16 %v2141, %v2140
      %v2155 = vpack.c.bf16 %v2143, %v2142
      %v2156 = vpack.c.bf16 %v2145, %v2144
      %v2157 = vpack.c.bf16 %v2147, %v2146
      %v2158 = vpack.c.bf16 %v2149, %v2148
      %v2159 = vpack.c.bf16 %v2151, %v2150
      %v2160 = vld [vmem:[%s4] sm:$0xf]
      %v2161 = vld [vmem:[%s4 + $0x4] sm:$0xf]
      %v2162 = vld [vmem:[%s4 + $0x8] sm:$0xf]
      %v2163 = vld [vmem:[%s4 + $0xc] sm:$0xf]
      %v2168 = vunpack.c.l.b16 %v2160
      %v2169 = vunpack.c.l.b16 %v2161
      %v2170 = vunpack.c.l.b16 %v2162
      %v2171 = vunpack.c.l.b16 %v2163
      %v2172 = vpack.c.b16 %v2169, %v2168
      %v2173 = vpack.c.b16 %v2171, %v2170
      %v2177 = vsel %vm343, %v2152, 0
      %v2180 = vsel %vm343, %v2153, 0
      %v2183 = vsel %vm343, %v2154, 0
      %v2186 = vsel %vm343, %v2155, 0
      %v2189 = vsel %vm343, %v2156, 0
      %v2192 = vsel %vm343, %v2157, 0
      %v2195 = vsel %vm343, %v2158, 0
      %v2198 = vsel %vm343, %v2159, 0
      %2200 = vmatprep.subr.bf16.mxu0 0
      %2201 = vmatpush1.bf16.msra.mxu0 %v2172
      %2202 = vmatprep.subr.bf16.mxu0 0
      %2203 = vmatpush1.bf16.msra.mxu0 %v2173
      %2204 = vmatprep.subr.bf16.mxu0 0
      %2205 = vmatpush1.bf16.msra.mxu0 0
      %2206 = vmatprep.subr.bf16.mxu0 0
      %2207 = vmatpush1.bf16.msra.mxu0 0
      %2208 = vmatprep.subr.bf16.mxu0 0
      %2209 = vmatpush1.bf16.msra.mxu0 0
      %2210 = vmatprep.subr.bf16.mxu0 0
      %2211 = vmatpush1.bf16.msra.mxu0 0
      %2212 = vmatprep.subr.bf16.mxu0 0
      %2213 = vmatpush1.bf16.msra.mxu0 0
      %2214 = vmatprep.subr.bf16.mxu0 0
      %2215 = vmatpush1.bf16.msra.mxu0 0
      %2216 = vmatprep.subr.bf16.mxu0 0
      %2217 = vmatpush1.bf16.msra.mxu0 0
      %2218 = vmatprep.subr.bf16.mxu0 0
      %2219 = vmatpush1.bf16.msra.mxu0 0
      %2220 = vmatprep.subr.bf16.mxu0 0
      %2221 = vmatpush1.bf16.msra.mxu0 0
      %2222 = vmatprep.subr.bf16.mxu0 0
      %2223 = vmatpush1.bf16.msra.mxu0 0
      %2224 = vmatprep.subr.bf16.mxu0 0
      %2225 = vmatpush1.bf16.msra.mxu0 0
      %2226 = vmatprep.subr.bf16.mxu0 0
      %2227 = vmatpush1.bf16.msra.mxu0 0
      %2228 = vmatprep.subr.bf16.mxu0 0
      %2229 = vmatpush1.bf16.msra.mxu0 0
      %2230 = vmatprep.subr.bf16.mxu0 0
      %2231 = vmatpush1.bf16.msra.mxu0 0
      %2232 = vmatprep.mubr.bf16.mxu0 0
      %2233 = vmatmul.mubr.bf16.gmra.mrb[0].mxu0 %v2177
      %v2234 = vpop.f32.mrb[0].mxu0
      %v2235 = vadd.f32 0.0, %v2234
      %v2236 = vpop.f32.mrb[0].mxu0
      %v2237 = vpop.f32.mrb[0].mxu0
      %v2238 = vadd.f32 0.0, %v2237
      %v2239 = vpop.f32.mrb[0].mxu0
      %2240 = vmatprep.mubr.bf16.mxu0 0
      %2241 = vmatmul.mubr.bf16.gmra.mrb[0].mxu0 %v2180
      %v2242 = vpop.f32.mrb[0].mxu0
      %v2243 = vadd.f32 0.0, %v2242
      %v2244 = vpop.f32.mrb[0].mxu0
      %v2245 = vpop.f32.mrb[0].mxu0
      %v2246 = vadd.f32 0.0, %v2245
      %v2247 = vpop.f32.mrb[0].mxu0
      %2248 = vmatprep.mubr.bf16.mxu0 0
      %2249 = vmatmul.mubr.bf16.gmra.mrb[0].mxu0 %v2183
      %v2250 = vpop.f32.mrb[0].mxu0
      %v2251 = vadd.f32 0.0, %v2250
      %v2252 = vpop.f32.mrb[0].mxu0
      %v2253 = vpop.f32.mrb[0].mxu0
      %v2254 = vadd.f32 0.0, %v2253
      %v2255 = vpop.f32.mrb[0].mxu0
      %2256 = vmatprep.mubr.bf16.mxu0 0
      %2257 = vmatmul.mubr.bf16.gmra.mrb[0].mxu0 %v2186
      %v2258 = vpop.f32.mrb[0].mxu0
      %v2259 = vadd.f32 0.0, %v2258
      %v2260 = vpop.f32.mrb[0].mxu0
      %v2261 = vpop.f32.mrb[0].mxu0
      %v2262 = vadd.f32 0.0, %v2261
      %v2263 = vpop.f32.mrb[0].mxu0
      %2264 = vmatprep.mubr.bf16.mxu0 0
      %2265 = vmatmul.mubr.bf16.gmra.mrb[0].mxu0 %v2189
      %v2266 = vpop.f32.mrb[0].mxu0
      %v2267 = vadd.f32 0.0, %v2266
      %v2268 = vpop.f32.mrb[0].mxu0
      %v2269 = vpop.f32.mrb[0].mxu0
      %v2270 = vadd.f32 0.0, %v2269
      %v2271 = vpop.f32.mrb[0].mxu0
      %2272 = vmatprep.mubr.bf16.mxu0 0
      %2273 = vmatmul.mubr.bf16.gmra.mrb[0].mxu0 %v2192
      %v2274 = vpop.f32.mrb[0].mxu0
      %v2275 = vadd.f32 0.0, %v2274
      %v2276 = vpop.f32.mrb[0].mxu0
      %v2277 = vpop.f32.mrb[0].mxu0
      %v2278 = vadd.f32 0.0, %v2277
      %v2279 = vpop.f32.mrb[0].mxu0
      %2280 = vmatprep.mubr.bf16.mxu0 0
      %2281 = vmatmul.mubr.bf16.gmra.mrb[0].mxu0 %v2195
      %v2282 = vpop.f32.mrb[0].mxu0
      %v2283 = vadd.f32 0.0, %v2282
      %v2284 = vpop.f32.mrb[0].mxu0
      %v2285 = vpop.f32.mrb[0].mxu0
      %v2286 = vadd.f32 0.0, %v2285
      %v2287 = vpop.f32.mrb[0].mxu0
      %2288 = vmatprep.mubr.bf16.mxu0 0
      %2289 = vmatmul.mubr.bf16.gmra.mrb[0].mxu0 %v2198
      %v2290 = vpop.f32.mrb[0].mxu0
      %v2291 = vadd.f32 0.0, %v2290
      %v2292 = vpop.f32.mrb[0].mxu0
      %v2293 = vpop.f32.mrb[0].mxu0
      %v2294 = vadd.f32 0.0, %v2293
      %v2295 = vpop.f32.mrb[0].mxu0
      %2296 = vdwg.mxu0
      %v2297 = vld [vmem:[%s2090] sm:$0xff]
      %v2298 = vld [vmem:[%s2090 + $0x8] sm:$0xff]
      %v2299 = vld [vmem:[%s2090 + $0x10] sm:$0xff]
      %v2300 = vld [vmem:[%s2090 + $0x18] sm:$0xff]
      %v2301 = vld [vmem:[%s2090 + $0x20] sm:$0xff]
      %v2302 = vld [vmem:[%s2090 + $0x28] sm:$0xff]
      %v2303 = vld [vmem:[%s2090 + $0x30] sm:$0xff]
      %v2304 = vld [vmem:[%s2090 + $0x38] sm:$0xff]
      %v2305 = vld [vmem:[%s2090 + $0x40] sm:$0xff]
      %v2306 = vld [vmem:[%s2090 + $0x48] sm:$0xff]
      %v2307 = vld [vmem:[%s2090 + $0x50] sm:$0xff]
      %v2308 = vld [vmem:[%s2090 + $0x58] sm:$0xff]
      %v2309 = vld [vmem:[%s2090 + $0x60] sm:$0xff]
      %v2310 = vld [vmem:[%s2090 + $0x68] sm:$0xff]
      %v2311 = vld [vmem:[%s2090 + $0x70] sm:$0xff]
      %v2312 = vld [vmem:[%s2090 + $0x78] sm:$0xff]
      %v2313 = vpack.c.bf16 %v2298, %v2297
      %v2314 = vpack.c.bf16 %v2300, %v2299
      %v2315 = vpack.c.bf16 %v2302, %v2301
      %v2316 = vpack.c.bf16 %v2304, %v2303
      %v2317 = vpack.c.bf16 %v2306, %v2305
      %v2318 = vpack.c.bf16 %v2308, %v2307
      %v2319 = vpack.c.bf16 %v2310, %v2309
      %v2320 = vpack.c.bf16 %v2312, %v2311
      %v2321 = vld [vmem:[%s5] sm:$0xf]
      %v2322 = vld [vmem:[%s5 + $0x4] sm:$0xf]
      %v2323 = vld [vmem:[%s5 + $0x8] sm:$0xf]
      %v2324 = vld [vmem:[%s5 + $0xc] sm:$0xf]
      %v2329 = vunpack.c.l.b16 %v2321
      %v2330 = vunpack.c.l.b16 %v2322
      %v2331 = vunpack.c.l.b16 %v2323
      %v2332 = vunpack.c.l.b16 %v2324
      %v2333 = vpack.c.b16 %v2330, %v2329
      %v2334 = vpack.c.b16 %v2332, %v2331
      %v2338 = vsel %vm343, %v2313, 0
      %v2341 = vsel %vm343, %v2314, 0
      %v2344 = vsel %vm343, %v2315, 0
      %v2347 = vsel %vm343, %v2316, 0
      %v2350 = vsel %vm343, %v2317, 0
      %v2353 = vsel %vm343, %v2318, 0
      %v2356 = vsel %vm343, %v2319, 0
      %v2359 = vsel %vm343, %v2320, 0
      %2361 = vmatprep.subr.bf16.mxu0 0
      %2362 = vmatpush1.bf16.msra.mxu0 %v2333
      %2363 = vmatprep.subr.bf16.mxu0 0
      %2364 = vmatpush1.bf16.msra.mxu0 %v2334
      %2365 = vmatprep.subr.bf16.mxu0 0
      %2366 = vmatpush1.bf16.msra.mxu0 0
      %2367 = vmatprep.subr.bf16.mxu0 0
      %2368 = vmatpush1.bf16.msra.mxu0 0
      %2369 = vmatprep.subr.bf16.mxu0 0
      %2370 = vmatpush1.bf16.msra.mxu0 0
      %2371 = vmatprep.subr.bf16.mxu0 0
      %2372 = vmatpush1.bf16.msra.mxu0 0
      %2373 = vmatprep.subr.bf16.mxu0 0
      %2374 = vmatpush1.bf16.msra.mxu0 0
      %2375 = vmatprep.subr.bf16.mxu0 0
      %2376 = vmatpush1.bf16.msra.mxu0 0
      %2377 = vmatprep.subr.bf16.mxu0 0
      %2378 = vmatpush1.bf16.msra.mxu0 0
      %2379 = vmatprep.subr.bf16.mxu0 0
      %2380 = vmatpush1.bf16.msra.mxu0 0
      %2381 = vmatprep.subr.bf16.mxu0 0
      %2382 = vmatpush1.bf16.msra.mxu0 0
      %2383 = vmatprep.subr.bf16.mxu0 0
      %2384 = vmatpush1.bf16.msra.mxu0 0
      %2385 = vmatprep.subr.bf16.mxu0 0
      %2386 = vmatpush1.bf16.msra.mxu0 0
      %2387 = vmatprep.subr.bf16.mxu0 0
      %2388 = vmatpush1.bf16.msra.mxu0 0
      %2389 = vmatprep.subr.bf16.mxu0 0
      %2390 = vmatpush1.bf16.msra.mxu0 0
      %2391 = vmatprep.subr.bf16.mxu0 0
      %2392 = vmatpush1.bf16.msra.mxu0 0
      %2393 = vmatprep.mubr.bf16.mxu0 0
      %2394 = vmatmul.mubr.bf16.gmra.mrb[0].mxu0 %v2338
      %v2395 = vpop.f32.mrb[0].mxu0
      %v2396 = vadd.f32 0.0, %v2395
      %v2397 = vpop.f32.mrb[0].mxu0
      %v2398 = vpop.f32.mrb[0].mxu0
      %v2399 = vadd.f32 0.0, %v2398
      %v2400 = vpop.f32.mrb[0].mxu0
      %2401 = vmatprep.mubr.bf16.mxu0 0
      %2402 = vmatmul.mubr.bf16.gmra.mrb[0].mxu0 %v2341
      %v2403 = vpop.f32.mrb[0].mxu0
      %v2404 = vadd.f32 0.0, %v2403
      %v2405 = vpop.f32.mrb[0].mxu0
      %v2406 = vpop.f32.mrb[0].mxu0
      %v2407 = vadd.f32 0.0, %v2406
      %v2408 = vpop.f32.mrb[0].mxu0
      %2409 = vmatprep.mubr.bf16.mxu0 0
      %2410 = vmatmul.mubr.bf16.gmra.mrb[0].mxu0 %v2344
      %v2411 = vpop.f32.mrb[0].mxu0
      %v2412 = vadd.f32 0.0, %v2411
      %v2413 = vpop.f32.mrb[0].mxu0
      %v2414 = vpop.f32.mrb[0].mxu0
      %v2415 = vadd.f32 0.0, %v2414
      %v2416 = vpop.f32.mrb[0].mxu0
      %2417 = vmatprep.mubr.bf16.mxu0 0
      %2418 = vmatmul.mubr.bf16.gmra.mrb[0].mxu0 %v2347
      %v2419 = vpop.f32.mrb[0].mxu0
      %v2420 = vadd.f32 0.0, %v2419
      %v2421 = vpop.f32.mrb[0].mxu0
      %v2422 = vpop.f32.mrb[0].mxu0
      %v2423 = vadd.f32 0.0, %v2422
      %v2424 = vpop.f32.mrb[0].mxu0
      %2425 = vmatprep.mubr.bf16.mxu0 0
      %2426 = vmatmul.mubr.bf16.gmra.mrb[0].mxu0 %v2350
      %v2427 = vpop.f32.mrb[0].mxu0
      %v2428 = vadd.f32 0.0, %v2427
      %v2429 = vpop.f32.mrb[0].mxu0
      %v2430 = vpop.f32.mrb[0].mxu0
      %v2431 = vadd.f32 0.0, %v2430
      %v2432 = vpop.f32.mrb[0].mxu0
      %2433 = vmatprep.mubr.bf16.mxu0 0
      %2434 = vmatmul.mubr.bf16.gmra.mrb[0].mxu0 %v2353
      %v2435 = vpop.f32.mrb[0].mxu0
      %v2436 = vadd.f32 0.0, %v2435
      %v2437 = vpop.f32.mrb[0].mxu0
      %v2438 = vpop.f32.mrb[0].mxu0
      %v2439 = vadd.f32 0.0, %v2438
      %v2440 = vpop.f32.mrb[0].mxu0
      %2441 = vmatprep.mubr.bf16.mxu0 0
      %2442 = vmatmul.mubr.bf16.gmra.mrb[0].mxu0 %v2356
      %v2443 = vpop.f32.mrb[0].mxu0
      %v2444 = vadd.f32 0.0, %v2443
      %v2445 = vpop.f32.mrb[0].mxu0
      %v2446 = vpop.f32.mrb[0].mxu0
      %v2447 = vadd.f32 0.0, %v2446
      %v2448 = vpop.f32.mrb[0].mxu0
      %2449 = vmatprep.mubr.bf16.mxu0 0
      %2450 = vmatmul.mubr.bf16.gmra.mrb[0].mxu0 %v2359
      %v2451 = vpop.f32.mrb[0].mxu0
      %v2452 = vadd.f32 0.0, %v2451
      %v2453 = vpop.f32.mrb[0].mxu0
      %v2454 = vpop.f32.mrb[0].mxu0
      %v2455 = vadd.f32 0.0, %v2454
      %v2456 = vpop.f32.mrb[0].mxu0
      %2457 = vdwg.mxu0
      %v2458 = vld [vmem:[%s2126] sm:$0xff]
      %v2459 = vld [vmem:[%s2126 + $0x8] sm:$0xff]
      %v2460 = vld [vmem:[%s2126 + $0x10] sm:$0xff]
      %v2461 = vld [vmem:[%s2126 + $0x18] sm:$0xff]
      %v2462 = vld [vmem:[%s2126 + $0x20] sm:$0xff]
      %v2463 = vld [vmem:[%s2126 + $0x28] sm:$0xff]
      %v2464 = vld [vmem:[%s2126 + $0x30] sm:$0xff]
      %v2465 = vld [vmem:[%s2126 + $0x38] sm:$0xff]
      %v2466 = vld [vmem:[%s2126 + $0x40] sm:$0xff]
      %v2467 = vld [vmem:[%s2126 + $0x48] sm:$0xff]
      %v2468 = vld [vmem:[%s2126 + $0x50] sm:$0xff]
      %v2469 = vld [vmem:[%s2126 + $0x58] sm:$0xff]
      %v2470 = vld [vmem:[%s2126 + $0x60] sm:$0xff]
      %v2471 = vld [vmem:[%s2126 + $0x68] sm:$0xff]
      %v2472 = vld [vmem:[%s2126 + $0x70] sm:$0xff]
      %v2473 = vld [vmem:[%s2126 + $0x78] sm:$0xff]
      %v2474 = vpack.c.bf16 %v2459, %v2458
      %v2475 = vpack.c.bf16 %v2461, %v2460
      %v2476 = vpack.c.bf16 %v2463, %v2462
      %v2477 = vpack.c.bf16 %v2465, %v2464
      %v2478 = vpack.c.bf16 %v2467, %v2466
      %v2479 = vpack.c.bf16 %v2469, %v2468
      %v2480 = vpack.c.bf16 %v2471, %v2470
      %v2481 = vpack.c.bf16 %v2473, %v2472
      %v2482 = vld [vmem:[%s6] sm:$0xf]
      %v2483 = vld [vmem:[%s6 + $0x4] sm:$0xf]
      %v2484 = vld [vmem:[%s6 + $0x8] sm:$0xf]
      %v2485 = vld [vmem:[%s6 + $0xc] sm:$0xf]
      %v2490 = vunpack.c.l.b16 %v2482
      %v2491 = vunpack.c.l.b16 %v2483
      %v2492 = vunpack.c.l.b16 %v2484
      %v2493 = vunpack.c.l.b16 %v2485
      %v2494 = vpack.c.b16 %v2491, %v2490
      %v2495 = vpack.c.b16 %v2493, %v2492
      %v2499 = vsel %vm343, %v2474, 0
      %v2502 = vsel %vm343, %v2475, 0
      %v2505 = vsel %vm343, %v2476, 0
      %v2508 = vsel %vm343, %v2477, 0
      %v2511 = vsel %vm343, %v2478, 0
      %v2514 = vsel %vm343, %v2479, 0
      %v2517 = vsel %vm343, %v2480, 0
      %v2520 = vsel %vm343, %v2481, 0
      %2522 = vmatprep.subr.bf16.mxu0 0
      %2523 = vmatpush1.bf16.msra.mxu0 %v2494
      %2524 = vmatprep.subr.bf16.mxu0 0
      %2525 = vmatpush1.bf16.msra.mxu0 %v2495
      %2526 = vmatprep.subr.bf16.mxu0 0
      %2527 = vmatpush1.bf16.msra.mxu0 0
      %2528 = vmatprep.subr.bf16.mxu0 0
      %2529 = vmatpush1.bf16.msra.mxu0 0
      %2530 = vmatprep.subr.bf16.mxu0 0
      %2531 = vmatpush1.bf16.msra.mxu0 0
      %2532 = vmatprep.subr.bf16.mxu0 0
      %2533 = vmatpush1.bf16.msra.mxu0 0
      %2534 = vmatprep.subr.bf16.mxu0 0
      %2535 = vmatpush1.bf16.msra.mxu0 0
      %2536 = vmatprep.subr.bf16.mxu0 0
      %2537 = vmatpush1.bf16.msra.mxu0 0
      %2538 = vmatprep.subr.bf16.mxu0 0
      %2539 = vmatpush1.bf16.msra.mxu0 0
      %2540 = vmatprep.subr.bf16.mxu0 0
      %2541 = vmatpush1.bf16.msra.mxu0 0
      %2542 = vmatprep.subr.bf16.mxu0 0
      %2543 = vmatpush1.bf16.msra.mxu0 0
      %2544 = vmatprep.subr.bf16.mxu0 0
      %2545 = vmatpush1.bf16.msra.mxu0 0
      %2546 = vmatprep.subr.bf16.mxu0 0
      %2547 = vmatpush1.bf16.msra.mxu0 0
      %2548 = vmatprep.subr.bf16.mxu0 0
      %2549 = vmatpush1.bf16.msra.mxu0 0
      %2550 = vmatprep.subr.bf16.mxu0 0
      %2551 = vmatpush1.bf16.msra.mxu0 0
      %2552 = vmatprep.subr.bf16.mxu0 0
      %2553 = vmatpush1.bf16.msra.mxu0 0
      %2554 = vmatprep.mubr.bf16.mxu0 0
      %2555 = vmatmul.mubr.bf16.gmra.mrb[0].mxu0 %v2499
      %v2556 = vpop.f32.mrb[0].mxu0
      %v2557 = vadd.f32 0.0, %v2556
      %v2558 = vpop.f32.mrb[0].mxu0
      %v2559 = vpop.f32.mrb[0].mxu0
      %v2560 = vadd.f32 0.0, %v2559
      %v2561 = vpop.f32.mrb[0].mxu0
      %2562 = vmatprep.mubr.bf16.mxu0 0
      %2563 = vmatmul.mubr.bf16.gmra.mrb[0].mxu0 %v2502
      %v2564 = vpop.f32.mrb[0].mxu0
      %v2565 = vadd.f32 0.0, %v2564
      %v2566 = vpop.f32.mrb[0].mxu0
      %v2567 = vpop.f32.mrb[0].mxu0
      %v2568 = vadd.f32 0.0, %v2567
      %v2569 = vpop.f32.mrb[0].mxu0
      %2570 = vmatprep.mubr.bf16.mxu0 0
      %2571 = vmatmul.mubr.bf16.gmra.mrb[0].mxu0 %v2505
      %v2572 = vpop.f32.mrb[0].mxu0
      %v2573 = vadd.f32 0.0, %v2572
      %v2574 = vpop.f32.mrb[0].mxu0
      %v2575 = vpop.f32.mrb[0].mxu0
      %v2576 = vadd.f32 0.0, %v2575
      %v2577 = vpop.f32.mrb[0].mxu0
      %2578 = vmatprep.mubr.bf16.mxu0 0
      %2579 = vmatmul.mubr.bf16.gmra.mrb[0].mxu0 %v2508
      %v2580 = vpop.f32.mrb[0].mxu0
      %v2581 = vadd.f32 0.0, %v2580
      %v2582 = vpop.f32.mrb[0].mxu0
      %v2583 = vpop.f32.mrb[0].mxu0
      %v2584 = vadd.f32 0.0, %v2583
      %v2585 = vpop.f32.mrb[0].mxu0
      %2586 = vmatprep.mubr.bf16.mxu0 0
      %2587 = vmatmul.mubr.bf16.gmra.mrb[0].mxu0 %v2511
      %v2588 = vpop.f32.mrb[0].mxu0
      %v2589 = vadd.f32 0.0, %v2588
      %v2590 = vpop.f32.mrb[0].mxu0
      %v2591 = vpop.f32.mrb[0].mxu0
      %v2592 = vadd.f32 0.0, %v2591
      %v2593 = vpop.f32.mrb[0].mxu0
      %2594 = vmatprep.mubr.bf16.mxu0 0
      %2595 = vmatmul.mubr.bf16.gmra.mrb[0].mxu0 %v2514
      %v2596 = vpop.f32.mrb[0].mxu0
      %v2597 = vadd.f32 0.0, %v2596
      %v2598 = vpop.f32.mrb[0].mxu0
      %v2599 = vpop.f32.mrb[0].mxu0
      %v2600 = vadd.f32 0.0, %v2599
      %v2601 = vpop.f32.mrb[0].mxu0
      %2602 = vmatprep.mubr.bf16.mxu0 0
      %2603 = vmatmul.mubr.bf16.gmra.mrb[0].mxu0 %v2517
      %v2604 = vpop.f32.mrb[0].mxu0
      %v2605 = vadd.f32 0.0, %v2604
      %v2606 = vpop.f32.mrb[0].mxu0
      %v2607 = vpop.f32.mrb[0].mxu0
      %v2608 = vadd.f32 0.0, %v2607
      %v2609 = vpop.f32.mrb[0].mxu0
      %2610 = vmatprep.mubr.bf16.mxu0 0
      %2611 = vmatmul.mubr.bf16.gmra.mrb[0].mxu0 %v2520
      %v2612 = vpop.f32.mrb[0].mxu0
      %v2613 = vadd.f32 0.0, %v2612
      %v2614 = vpop.f32.mrb[0].mxu0
      %v2615 = vpop.f32.mrb[0].mxu0
      %v2616 = vadd.f32 0.0, %v2615
      %v2617 = vpop.f32.mrb[0].mxu0
      %2618 = vdwg.mxu0
      %v2619 = vmul.f32 %v2235, 0.17677669
      %v2620 = vmul.f32 %v2238, 0.17677669
      %v2621 = vmul.f32 %v2243, 0.17677669
      %v2622 = vmul.f32 %v2246, 0.17677669
      %v2623 = vmul.f32 %v2251, 0.17677669
      %v2624 = vmul.f32 %v2254, 0.17677669
      %v2625 = vmul.f32 %v2259, 0.17677669
      %v2626 = vmul.f32 %v2262, 0.17677669
      %v2627 = vmul.f32 %v2267, 0.17677669
      %v2628 = vmul.f32 %v2270, 0.17677669
      %v2629 = vmul.f32 %v2275, 0.17677669
      %v2630 = vmul.f32 %v2278, 0.17677669
      %v2631 = vmul.f32 %v2283, 0.17677669
      %v2632 = vmul.f32 %v2286, 0.17677669
      %v2633 = vmul.f32 %v2291, 0.17677669
      %v2634 = vmul.f32 %v2294, 0.17677669
      %v2635 = vlaneseq
      %v2636 = vand.u32 %v2635, 127
      %vm2637 = vcmp.lt.s32.totalorder %v2636, 65
      %v2638 = vpack.c.bf16 %v2620, %v2619
      %v2639 = vpack.c.bf16 %v2622, %v2621
      %v2640 = vpack.c.bf16 %v2624, %v2623
      %v2641 = vpack.c.bf16 %v2626, %v2625
      %v2642 = vpack.c.bf16 %v2628, %v2627
      %v2643 = vpack.c.bf16 %v2630, %v2629
      %v2644 = vpack.c.bf16 %v2632, %v2631
      %v2645 = vpack.c.bf16 %v2634, %v2633
      %v2646 = vpack.c.bf16 %v2399, %v2396
      %v2647 = vpack.c.bf16 %v2407, %v2404
      %v2648 = vpack.c.bf16 %v2415, %v2412
      %v2649 = vpack.c.bf16 %v2423, %v2420
      %v2650 = vpack.c.bf16 %v2431, %v2428
      %v2651 = vpack.c.bf16 %v2439, %v2436
      %v2652 = vpack.c.bf16 %v2447, %v2444
      %v2653 = vpack.c.bf16 %v2455, %v2452
      %v2654 = vpack.c.bf16 %v2560, %v2557
      %v2655 = vpack.c.bf16 %v2568, %v2565
      %v2656 = vpack.c.bf16 %v2576, %v2573
      %v2657 = vpack.c.bf16 %v2584, %v2581
      %v2658 = vpack.c.bf16 %v2592, %v2589
      %v2659 = vpack.c.bf16 %v2600, %v2597
      %v2660 = vpack.c.bf16 %v2608, %v2605
      %v2661 = vpack.c.bf16 %v2616, %v2613
      %vm2662 = vcmask 64512
      %v2664 = vsel %vm2662, %v2638, 0
      %v2667 = vsel %vm2662, %v2639, 0
      %v2670 = vsel %vm2662, %v2640, 0
      %v2673 = vsel %vm2662, %v2641, 0
      %v2676 = vsel %vm2662, %v2642, 0
      %v2679 = vsel %vm2662, %v2643, 0
      %v2682 = vsel %vm2662, %v2644, 0
      %v2685 = vsel %vm2662, %v2645, 0
      %v2688 = vsel %vm2662, %v2646, 0
      %v2691 = vsel %vm2662, %v2647, 0
      %v2694 = vsel %vm2662, %v2648, 0
      %v2697 = vsel %vm2662, %v2649, 0
      %v2700 = vsel %vm2662, %v2650, 0
      %v2703 = vsel %vm2662, %v2651, 0
      %v2706 = vsel %vm2662, %v2652, 0
      %v2709 = vsel %vm2662, %v2653, 0
      %2711 = vmatprep.subr.bf16.mxu0 0
      %2712 = vmatpush1.bf16.xpose.msra.mxu0 %v2688
      %2713 = vmatprep.subr.bf16.mxu0 0
      %2714 = vmatpush1.bf16.xpose.msra.mxu0 %v2691
      %2715 = vmatprep.subr.bf16.mxu0 0
      %2716 = vmatpush1.bf16.xpose.msra.mxu0 %v2694
      %2717 = vmatprep.subr.bf16.mxu0 0
      %2718 = vmatpush1.bf16.xpose.msra.mxu0 %v2697
      %2719 = vmatprep.subr.bf16.mxu0 0
      %2720 = vmatpush1.bf16.xpose.msra.mxu0 %v2700
      %2721 = vmatprep.subr.bf16.mxu0 0
      %2722 = vmatpush1.bf16.xpose.msra.mxu0 %v2703
      %2723 = vmatprep.subr.bf16.mxu0 0
      %2724 = vmatpush1.bf16.xpose.msra.mxu0 %v2706
      %2725 = vmatprep.subr.bf16.mxu0 0
      %2726 = vmatpush1.bf16.xpose.msra.mxu0 %v2709
      %2727 = vmatprep.subr.bf16.mxu0 0
      %2728 = vmatpush1.bf16.xpose.msra.mxu0 0
      %2729 = vmatprep.subr.bf16.mxu0 0
      %2730 = vmatpush1.bf16.xpose.msra.mxu0 0
      %2731 = vmatprep.subr.bf16.mxu0 0
      %2732 = vmatpush1.bf16.xpose.msra.mxu0 0
      %2733 = vmatprep.subr.bf16.mxu0 0
      %2734 = vmatpush1.bf16.xpose.msra.mxu0 0
      %2735 = vmatprep.subr.bf16.mxu0 0
      %2736 = vmatpush1.bf16.xpose.msra.mxu0 0
      %2737 = vmatprep.subr.bf16.mxu0 0
      %2738 = vmatpush1.bf16.xpose.msra.mxu0 0
      %2739 = vmatprep.subr.bf16.mxu0 0
      %2740 = vmatpush1.bf16.xpose.msra.mxu0 0
      %2741 = vmatprep.subr.bf16.mxu0 0
      %2742 = vmatpush1.bf16.xpose.msra.mxu0 0
      %2743 = vmatprep.mubr.bf16.mxu0 0
      %2744 = vmatmul.mubr.bf16.gmra.mrb[0].mxu0 %v2664
      %v2745 = vpop.f32.mrb[0].mxu0
      %v2746 = vadd.f32 0.0, %v2745
      %v2747 = vpop.f32.mrb[0].mxu0
      %v2748 = vpop.f32.mrb[0].mxu0
      %v2749 = vadd.f32 0.0, %v2748
      %v2750 = vpop.f32.mrb[0].mxu0
      %2751 = vmatprep.mubr.bf16.mxu0 0
      %2752 = vmatmul.mubr.bf16.gmra.mrb[0].mxu0 %v2667
      %v2753 = vpop.f32.mrb[0].mxu0
      %v2754 = vadd.f32 0.0, %v2753
      %v2755 = vpop.f32.mrb[0].mxu0
      %v2756 = vpop.f32.mrb[0].mxu0
      %v2757 = vadd.f32 0.0, %v2756
      %v2758 = vpop.f32.mrb[0].mxu0
      %2759 = vmatprep.mubr.bf16.mxu0 0
      %2760 = vmatmul.mubr.bf16.gmra.mrb[0].mxu0 %v2670
      %v2761 = vpop.f32.mrb[0].mxu0
      %v2762 = vadd.f32 0.0, %v2761
      %v2763 = vpop.f32.mrb[0].mxu0
      %v2764 = vpop.f32.mrb[0].mxu0
      %v2765 = vadd.f32 0.0, %v2764
      %v2766 = vpop.f32.mrb[0].mxu0
      %2767 = vmatprep.mubr.bf16.mxu0 0
      %2768 = vmatmul.mubr.bf16.gmra.mrb[0].mxu0 %v2673
      %v2769 = vpop.f32.mrb[0].mxu0
      %v2770 = vadd.f32 0.0, %v2769
      %v2771 = vpop.f32.mrb[0].mxu0
      %v2772 = vpop.f32.mrb[0].mxu0
      %v2773 = vadd.f32 0.0, %v2772
      %v2774 = vpop.f32.mrb[0].mxu0
      %2775 = vmatprep.mubr.bf16.mxu0 0
      %2776 = vmatmul.mubr.bf16.gmra.mrb[0].mxu0 %v2676
      %v2777 = vpop.f32.mrb[0].mxu0
      %v2778 = vadd.f32 0.0, %v2777
      %v2779 = vpop.f32.mrb[0].mxu0
      %v2780 = vpop.f32.mrb[0].mxu0
      %v2781 = vadd.f32 0.0, %v2780
      %v2782 = vpop.f32.mrb[0].mxu0
      %2783 = vmatprep.mubr.bf16.mxu0 0
      %2784 = vmatmul.mubr.bf16.gmra.mrb[0].mxu0 %v2679
      %v2785 = vpop.f32.mrb[0].mxu0
      %v2786 = vadd.f32 0.0, %v2785
      %v2787 = vpop.f32.mrb[0].mxu0
      %v2788 = vpop.f32.mrb[0].mxu0
      %v2789 = vadd.f32 0.0, %v2788
      %v2790 = vpop.f32.mrb[0].mxu0
      %2791 = vmatprep.mubr.bf16.mxu0 0
      %2792 = vmatmul.mubr.bf16.gmra.mrb[0].mxu0 %v2682
      %v2793 = vpop.f32.mrb[0].mxu0
      %v2794 = vadd.f32 0.0, %v2793
      %v2795 = vpop.f32.mrb[0].mxu0
      %v2796 = vpop.f32.mrb[0].mxu0
      %v2797 = vadd.f32 0.0, %v2796
      %v2798 = vpop.f32.mrb[0].mxu0
      %2799 = vmatprep.mubr.bf16.mxu0 0
      %2800 = vmatmul.mubr.bf16.gmra.mrb[0].mxu0 %v2685
      %v2801 = vpop.f32.mrb[0].mxu0
      %v2802 = vadd.f32 0.0, %v2801
      %v2803 = vpop.f32.mrb[0].mxu0
      %v2804 = vpop.f32.mrb[0].mxu0
      %v2805 = vadd.f32 0.0, %v2804
      %v2806 = vpop.f32.mrb[0].mxu0
      %2807 = vdwg.mxu0
      %v2808 = vsel %vm2637, %v2746, -1e+30
      %v2809 = vsel %vm2637, %v2749, -1e+30
      %v2810 = vsel %vm2637, %v2754, -1e+30
      %v2811 = vsel %vm2637, %v2757, -1e+30
      %v2812 = vsel %vm2637, %v2762, -1e+30
      %v2813 = vsel %vm2637, %v2765, -1e+30
      %v2814 = vsel %vm2637, %v2770, -1e+30
      %v2815 = vsel %vm2637, %v2773, -1e+30
      %v2816 = vsel %vm2637, %v2778, -1e+30
      %v2817 = vsel %vm2637, %v2781, -1e+30
      %v2818 = vsel %vm2637, %v2786, -1e+30
      %v2819 = vsel %vm2637, %v2789, -1e+30
      %v2820 = vsel %vm2637, %v2794, -1e+30
      %v2821 = vsel %vm2637, %v2797, -1e+30
      %v2822 = vsel %vm2637, %v2802, -1e+30
      %v2823 = vsel %vm2637, %v2805, -1e+30
      %2824 = vmax.xlane.f32.xlu0 %v2808
      %v2825 = vpop.xlane.xlu0 %2824
      %2826 = vmax.xlane.f32.xlu0 %v2809
      %v2827 = vpop.xlane.xlu0 %2826
      %2828 = vmax.xlane.f32.xlu0 %v2810
      %v2829 = vpop.xlane.xlu0 %2828
      %2830 = vmax.xlane.f32.xlu0 %v2811
      %v2831 = vpop.xlane.xlu0 %2830
      %2832 = vmax.xlane.f32.xlu0 %v2812
      %v2833 = vpop.xlane.xlu0 %2832
      %2834 = vmax.xlane.f32.xlu0 %v2813
      %v2835 = vpop.xlane.xlu0 %2834
      %2836 = vmax.xlane.f32.xlu0 %v2814
      %v2837 = vpop.xlane.xlu0 %2836
      %2838 = vmax.xlane.f32.xlu0 %v2815
      %v2839 = vpop.xlane.xlu0 %2838
      %2840 = vmax.xlane.f32.xlu0 %v2816
      %v2841 = vpop.xlane.xlu0 %2840
      %2842 = vmax.xlane.f32.xlu0 %v2817
      %v2843 = vpop.xlane.xlu0 %2842
      %2844 = vmax.xlane.f32.xlu0 %v2818
      %v2845 = vpop.xlane.xlu0 %2844
      %2846 = vmax.xlane.f32.xlu0 %v2819
      %v2847 = vpop.xlane.xlu0 %2846
      %2848 = vmax.xlane.f32.xlu0 %v2820
      %v2849 = vpop.xlane.xlu0 %2848
      %2850 = vmax.xlane.f32.xlu0 %v2821
      %v2851 = vpop.xlane.xlu0 %2850
      %2852 = vmax.xlane.f32.xlu0 %v2822
      %v2853 = vpop.xlane.xlu0 %2852
      %2854 = vmax.xlane.f32.xlu0 %v2823
      %v2855 = vpop.xlane.xlu0 %2854
      %v2856 = vsub.f32 %v2808, %v2825
      %v2857 = vsub.f32 %v2809, %v2827
      %v2858 = vsub.f32 %v2810, %v2829
      %v2859 = vsub.f32 %v2811, %v2831
      %v2860 = vsub.f32 %v2812, %v2833
      %v2861 = vsub.f32 %v2813, %v2835
      %v2862 = vsub.f32 %v2814, %v2837
      %v2863 = vsub.f32 %v2815, %v2839
      %v2864 = vsub.f32 %v2816, %v2841
      %v2865 = vsub.f32 %v2817, %v2843
      %v2866 = vsub.f32 %v2818, %v2845
      %v2867 = vsub.f32 %v2819, %v2847
      %v2868 = vsub.f32 %v2820, %v2849
      %v2869 = vsub.f32 %v2821, %v2851
      %v2870 = vsub.f32 %v2822, %v2853
      %v2871 = vsub.f32 %v2823, %v2855
      %v2872 = vmul.f32 %v2856, 1.442695
      %v2873 = vpow.pop %v2872
      %v2874 = vmul.f32 %v2857, 1.442695
      %v2875 = vpow.pop %v2874
      %v2876 = vmul.f32 %v2858, 1.442695
      %v2877 = vpow.pop %v2876
      %v2878 = vmul.f32 %v2859, 1.442695
      %v2879 = vpow.pop %v2878
      %v2880 = vmul.f32 %v2860, 1.442695
      %v2881 = vpow.pop %v2880
      %v2882 = vmul.f32 %v2861, 1.442695
      %v2883 = vpow.pop %v2882
      %v2884 = vmul.f32 %v2862, 1.442695
      %v2885 = vpow.pop %v2884
      %v2886 = vmul.f32 %v2863, 1.442695
      %v2887 = vpow.pop %v2886
      %v2888 = vmul.f32 %v2864, 1.442695
      %v2889 = vpow.pop %v2888
      %v2890 = vmul.f32 %v2865, 1.442695
      %v2891 = vpow.pop %v2890
      %v2892 = vmul.f32 %v2866, 1.442695
      %v2893 = vpow.pop %v2892
      %v2894 = vmul.f32 %v2867, 1.442695
      %v2895 = vpow.pop %v2894
      %v2896 = vmul.f32 %v2868, 1.442695
      %v2897 = vpow.pop %v2896
      %v2898 = vmul.f32 %v2869, 1.442695
      %v2899 = vpow.pop %v2898
      %v2900 = vmul.f32 %v2870, 1.442695
      %v2901 = vpow.pop %v2900
      %v2902 = vmul.f32 %v2871, 1.442695
      %v2903 = vpow.pop %v2902
      %2904 = vadd.xlane.f32.xlu0 %v2873
      %v2905 = vpop.xlane.xlu0 %2904
      %2906 = vadd.xlane.f32.xlu0 %v2875
      %v2907 = vpop.xlane.xlu0 %2906
      %2908 = vadd.xlane.f32.xlu0 %v2877
      %v2909 = vpop.xlane.xlu0 %2908
      %2910 = vadd.xlane.f32.xlu0 %v2879
      %v2911 = vpop.xlane.xlu0 %2910
      %2912 = vadd.xlane.f32.xlu0 %v2881
      %v2913 = vpop.xlane.xlu0 %2912
      %2914 = vadd.xlane.f32.xlu0 %v2883
      %v2915 = vpop.xlane.xlu0 %2914
      %2916 = vadd.xlane.f32.xlu0 %v2885
      %v2917 = vpop.xlane.xlu0 %2916
      %2918 = vadd.xlane.f32.xlu0 %v2887
      %v2919 = vpop.xlane.xlu0 %2918
      %2920 = vadd.xlane.f32.xlu0 %v2889
      %v2921 = vpop.xlane.xlu0 %2920
      %2922 = vadd.xlane.f32.xlu0 %v2891
      %v2923 = vpop.xlane.xlu0 %2922
      %2924 = vadd.xlane.f32.xlu0 %v2893
      %v2925 = vpop.xlane.xlu0 %2924
      %2926 = vadd.xlane.f32.xlu0 %v2895
      %v2927 = vpop.xlane.xlu0 %2926
      %2928 = vadd.xlane.f32.xlu0 %v2897
      %v2929 = vpop.xlane.xlu0 %2928
      %2930 = vadd.xlane.f32.xlu0 %v2899
      %v2931 = vpop.xlane.xlu0 %2930
      %2932 = vadd.xlane.f32.xlu0 %v2901
      %v2933 = vpop.xlane.xlu0 %2932
      %2934 = vadd.xlane.f32.xlu0 %v2903
      %v2935 = vpop.xlane.xlu0 %2934
      %v2936 = vrcp.pop %v2905
      %v2937 = vrcp.pop %v2907
      %v2938 = vrcp.pop %v2909
      %v2939 = vrcp.pop %v2911
      %v2940 = vrcp.pop %v2913
      %v2941 = vrcp.pop %v2915
      %v2942 = vrcp.pop %v2917
      %v2943 = vrcp.pop %v2919
      %v2944 = vrcp.pop %v2921
      %v2945 = vrcp.pop %v2923
      %v2946 = vrcp.pop %v2925
      %v2947 = vrcp.pop %v2927
      %v2948 = vrcp.pop %v2929
      %v2949 = vrcp.pop %v2931
      %v2950 = vrcp.pop %v2933
      %v2951 = vrcp.pop %v2935
      %v2952 = vmul.f32 %v2873, %v2936
      %v2953 = vmul.f32 %v2875, %v2937
      %v2954 = vmul.f32 %v2877, %v2938
      %v2955 = vmul.f32 %v2879, %v2939
      %v2956 = vmul.f32 %v2881, %v2940
      %v2957 = vmul.f32 %v2883, %v2941
      %v2958 = vmul.f32 %v2885, %v2942
      %v2959 = vmul.f32 %v2887, %v2943
      %v2960 = vmul.f32 %v2889, %v2944
      %v2961 = vmul.f32 %v2891, %v2945
      %v2962 = vmul.f32 %v2893, %v2946
      %v2963 = vmul.f32 %v2895, %v2947
      %v2964 = vmul.f32 %v2897, %v2948
      %v2965 = vmul.f32 %v2899, %v2949
      %v2966 = vmul.f32 %v2901, %v2950
      %v2967 = vmul.f32 %v2903, %v2951
      %v2968 = vpack.c.bf16 %v2953, %v2952
      %v2969 = vpack.c.bf16 %v2955, %v2954
      %v2970 = vpack.c.bf16 %v2957, %v2956
      %v2971 = vpack.c.bf16 %v2959, %v2958
      %v2972 = vpack.c.bf16 %v2961, %v2960
      %v2973 = vpack.c.bf16 %v2963, %v2962
      %v2974 = vpack.c.bf16 %v2965, %v2964
      %v2975 = vpack.c.bf16 %v2967, %v2966
      %2976 = vmatprep.subr.bf16.mxu0 0
      %2977 = vmatpush1.bf16.msra.mxu0 %v2654
      %2978 = vmatprep.subr.bf16.mxu0 0
      %2979 = vmatpush1.bf16.msra.mxu0 %v2655
      %2980 = vmatprep.subr.bf16.mxu0 0
      %2981 = vmatpush1.bf16.msra.mxu0 %v2656
      %2982 = vmatprep.subr.bf16.mxu0 0
      %2983 = vmatpush1.bf16.msra.mxu0 %v2657
      %2984 = vmatprep.subr.bf16.mxu0 0
      %2985 = vmatpush1.bf16.msra.mxu0 %v2658
      %2986 = vmatprep.subr.bf16.mxu0 0
      %2987 = vmatpush1.bf16.msra.mxu0 %v2659
      %2988 = vmatprep.subr.bf16.mxu0 0
      %2989 = vmatpush1.bf16.msra.mxu0 %v2660
      %2990 = vmatprep.subr.bf16.mxu0 0
      %2991 = vmatpush1.bf16.msra.mxu0 %v2661
      %2992 = vmatprep.subr.bf16.mxu0 0
      %2993 = vmatpush1.bf16.msra.mxu0 0
      %2994 = vmatprep.subr.bf16.mxu0 0
      %2995 = vmatpush1.bf16.msra.mxu0 0
      %2996 = vmatprep.subr.bf16.mxu0 0
      %2997 = vmatpush1.bf16.msra.mxu0 0
      %2998 = vmatprep.subr.bf16.mxu0 0
      %2999 = vmatpush1.bf16.msra.mxu0 0
      %3000 = vmatprep.subr.bf16.mxu0 0
      %3001 = vmatpush1.bf16.msra.mxu0 0
      %3002 = vmatprep.subr.bf16.mxu0 0
      %3003 = vmatpush1.bf16.msra.mxu0 0
      %3004 = vmatprep.subr.bf16.mxu0 0
      %3005 = vmatpush1.bf16.msra.mxu0 0
      %3006 = vmatprep.subr.bf16.mxu0 0
      %3007 = vmatpush1.bf16.msra.mxu0 0
      %3008 = vmatprep.mubr.bf16.mxu0 0
      %3009 = vmatmul.mubr.bf16.gmra.mrb[0].mxu0 %v2968
      %v3010 = vpop.f32.mrb[0].mxu0
      %v3011 = vadd.f32 0.0, %v3010
      %v3012 = vpop.f32.mrb[0].mxu0
      %v3013 = vpop.f32.mrb[0].mxu0
      %v3014 = vadd.f32 0.0, %v3013
      %v3015 = vpop.f32.mrb[0].mxu0
      %3016 = vmatprep.mubr.bf16.mxu0 0
      %3017 = vmatmul.mubr.bf16.gmra.mrb[0].mxu0 %v2969
      %v3018 = vpop.f32.mrb[0].mxu0
      %v3019 = vadd.f32 0.0, %v3018
      %v3020 = vpop.f32.mrb[0].mxu0
      %v3021 = vpop.f32.mrb[0].mxu0
      %v3022 = vadd.f32 0.0, %v3021
      %v3023 = vpop.f32.mrb[0].mxu0
      %3024 = vmatprep.mubr.bf16.mxu0 0
      %3025 = vmatmul.mubr.bf16.gmra.mrb[0].mxu0 %v2970
      %v3026 = vpop.f32.mrb[0].mxu0
      %v3027 = vadd.f32 0.0, %v3026
      %v3028 = vpop.f32.mrb[0].mxu0
      %v3029 = vpop.f32.mrb[0].mxu0
      %v3030 = vadd.f32 0.0, %v3029
      %v3031 = vpop.f32.mrb[0].mxu0
      %3032 = vmatprep.mubr.bf16.mxu0 0
      %3033 = vmatmul.mubr.bf16.gmra.mrb[0].mxu0 %v2971
      %v3034 = vpop.f32.mrb[0].mxu0
      %v3035 = vadd.f32 0.0, %v3034
      %v3036 = vpop.f32.mrb[0].mxu0
      %v3037 = vpop.f32.mrb[0].mxu0
      %v3038 = vadd.f32 0.0, %v3037
      %v3039 = vpop.f32.mrb[0].mxu0
      %3040 = vmatprep.mubr.bf16.mxu0 0
      %3041 = vmatmul.mubr.bf16.gmra.mrb[0].mxu0 %v2972
      %v3042 = vpop.f32.mrb[0].mxu0
      %v3043 = vadd.f32 0.0, %v3042
      %v3044 = vpop.f32.mrb[0].mxu0
      %v3045 = vpop.f32.mrb[0].mxu0
      %v3046 = vadd.f32 0.0, %v3045
      %v3047 = vpop.f32.mrb[0].mxu0
      %3048 = vmatprep.mubr.bf16.mxu0 0
      %3049 = vmatmul.mubr.bf16.gmra.mrb[0].mxu0 %v2973
      %v3050 = vpop.f32.mrb[0].mxu0
      %v3051 = vadd.f32 0.0, %v3050
      %v3052 = vpop.f32.mrb[0].mxu0
      %v3053 = vpop.f32.mrb[0].mxu0
      %v3054 = vadd.f32 0.0, %v3053
      %v3055 = vpop.f32.mrb[0].mxu0
      %3056 = vmatprep.mubr.bf16.mxu0 0
      %3057 = vmatmul.mubr.bf16.gmra.mrb[0].mxu0 %v2974
      %v3058 = vpop.f32.mrb[0].mxu0
      %v3059 = vadd.f32 0.0, %v3058
      %v3060 = vpop.f32.mrb[0].mxu0
      %v3061 = vpop.f32.mrb[0].mxu0
      %v3062 = vadd.f32 0.0, %v3061
      %v3063 = vpop.f32.mrb[0].mxu0
      %3064 = vmatprep.mubr.bf16.mxu0 0
      %3065 = vmatmul.mubr.bf16.gmra.mrb[0].mxu0 %v2975
      %v3066 = vpop.f32.mrb[0].mxu0
      %v3067 = vadd.f32 0.0, %v3066
      %v3068 = vpop.f32.mrb[0].mxu0
      %v3069 = vpop.f32.mrb[0].mxu0
      %v3070 = vadd.f32 0.0, %v3069
      %v3071 = vpop.f32.mrb[0].mxu0
      %3072 = vdwg.mxu0
      %v3073 = vpack.c.bf16 %v3014, %v3011
      %v3074 = vpack.c.bf16 %v3022, %v3019
      %v3075 = vpack.c.bf16 %v3030, %v3027
      %v3076 = vpack.c.bf16 %v3038, %v3035
      %v3077 = vpack.c.bf16 %v3046, %v3043
      %v3078 = vpack.c.bf16 %v3054, %v3051
      %v3079 = vpack.c.bf16 %v3062, %v3059
      %v3080 = vpack.c.bf16 %v3070, %v3067
      %v3081 = vld [vmem:[%s7] sm:$0xf]
      %3090 = vrot.lane.b32.xlu0 %v2638, 120
      %v3091 = vpop.permute.xlu0 %3090
      %3092 = vrot.lane.b32.xlu0 %v2639, 120
      %v3093 = vpop.permute.xlu0 %3092
      %3094 = vrot.lane.b32.xlu0 %v2640, 120
      %v3095 = vpop.permute.xlu0 %3094
      %3096 = vrot.lane.b32.xlu0 %v2641, 120
      %v3097 = vpop.permute.xlu0 %3096
      %3098 = vrot.lane.b32.xlu0 %v2642, 120
      %v3099 = vpop.permute.xlu0 %3098
      %3100 = vrot.lane.b32.xlu0 %v2643, 120
      %v3101 = vpop.permute.xlu0 %3100
      %3102 = vrot.lane.b32.xlu0 %v2644, 120
      %v3103 = vpop.permute.xlu0 %3102
      %3104 = vrot.lane.b32.xlu0 %v2645, 120
      %v3105 = vpop.permute.xlu0 %3104
      %3114 = vrot.lane.b32.xlu0 %v2646, 120
      %v3115 = vpop.permute.xlu0 %3114
      %3116 = vrot.lane.b32.xlu0 %v2647, 120
      %v3117 = vpop.permute.xlu0 %3116
      %3118 = vrot.lane.b32.xlu0 %v2648, 120
      %v3119 = vpop.permute.xlu0 %3118
      %3120 = vrot.lane.b32.xlu0 %v2649, 120
      %v3121 = vpop.permute.xlu0 %3120
      %3122 = vrot.lane.b32.xlu0 %v2650, 120
      %v3123 = vpop.permute.xlu0 %3122
      %3124 = vrot.lane.b32.xlu0 %v2651, 120
      %v3125 = vpop.permute.xlu0 %3124
      %3126 = vrot.lane.b32.xlu0 %v2652, 120
      %v3127 = vpop.permute.xlu0 %3126
      %3128 = vrot.lane.b32.xlu0 %v2653, 120
      %v3129 = vpop.permute.xlu0 %3128
      %v3131 = vsel %vm2662, %v3091, 0
      %v3134 = vsel %vm2662, %v3093, 0
      %v3137 = vsel %vm2662, %v3095, 0
      %v3140 = vsel %vm2662, %v3097, 0
      %v3143 = vsel %vm2662, %v3099, 0
      %v3146 = vsel %vm2662, %v3101, 0
      %v3149 = vsel %vm2662, %v3103, 0
      %v3152 = vsel %vm2662, %v3105, 0
      %v3155 = vsel %vm2662, %v3115, 0
      %v3158 = vsel %vm2662, %v3117, 0
      %v3161 = vsel %vm2662, %v3119, 0
      %v3164 = vsel %vm2662, %v3121, 0
      %v3167 = vsel %vm2662, %v3123, 0
      %v3170 = vsel %vm2662, %v3125, 0
      %v3173 = vsel %vm2662, %v3127, 0
      %v3176 = vsel %vm2662, %v3129, 0
      %3178 = vmatprep.subr.bf16.mxu0 0
      %3179 = vmatpush1.bf16.xpose.msra.mxu0 %v3155
      %3180 = vmatprep.subr.bf16.mxu0 0
      %3181 = vmatpush1.bf16.xpose.msra.mxu0 %v3158
      %3182 = vmatprep.subr.bf16.mxu0 0
      %3183 = vmatpush1.bf16.xpose.msra.mxu0 %v3161
      %3184 = vmatprep.subr.bf16.mxu0 0
      %3185 = vmatpush1.bf16.xpose.msra.mxu0 %v3164
      %3186 = vmatprep.subr.bf16.mxu0 0
      %3187 = vmatpush1.bf16.xpose.msra.mxu0 %v3167
      %3188 = vmatprep.subr.bf16.mxu0 0
      %3189 = vmatpush1.bf16.xpose.msra.mxu0 %v3170
      %3190 = vmatprep.subr.bf16.mxu0 0
      %3191 = vmatpush1.bf16.xpose.msra.mxu0 %v3173
      %3192 = vmatprep.subr.bf16.mxu0 0
      %3193 = vmatpush1.bf16.xpose.msra.mxu0 %v3176
      %3194 = vmatprep.subr.bf16.mxu0 0
      %3195 = vmatpush1.bf16.xpose.msra.mxu0 0
      %3196 = vmatprep.subr.bf16.mxu0 0
      %3197 = vmatpush1.bf16.xpose.msra.mxu0 0
      %3198 = vmatprep.subr.bf16.mxu0 0
      %3199 = vmatpush1.bf16.xpose.msra.mxu0 0
      %3200 = vmatprep.subr.bf16.mxu0 0
      %3201 = vmatpush1.bf16.xpose.msra.mxu0 0
      %3202 = vmatprep.subr.bf16.mxu0 0
      %3203 = vmatpush1.bf16.xpose.msra.mxu0 0
      %3204 = vmatprep.subr.bf16.mxu0 0
      %3205 = vmatpush1.bf16.xpose.msra.mxu0 0
      %3206 = vmatprep.subr.bf16.mxu0 0
      %3207 = vmatpush1.bf16.xpose.msra.mxu0 0
      %3208 = vmatprep.subr.bf16.mxu0 0
      %3209 = vmatpush1.bf16.xpose.msra.mxu0 0
      %3210 = vmatprep.mubr.bf16.mxu0 0
      %3211 = vmatmul.mubr.bf16.gmra.mrb[0].mxu0 %v3131
      %v3212 = vpop.f32.mrb[0].mxu0
      %v3213 = vadd.f32 0.0, %v3212
      %v3214 = vpop.f32.mrb[0].mxu0
      %v3215 = vpop.f32.mrb[0].mxu0
      %v3216 = vadd.f32 0.0, %v3215
      %v3217 = vpop.f32.mrb[0].mxu0
      %3218 = vmatprep.mubr.bf16.mxu0 0
      %3219 = vmatmul.mubr.bf16.gmra.mrb[0].mxu0 %v3134
      %v3220 = vpop.f32.mrb[0].mxu0
      %v3221 = vadd.f32 0.0, %v3220
      %v3222 = vpop.f32.mrb[0].mxu0
      %v3223 = vpop.f32.mrb[0].mxu0
      %v3224 = vadd.f32 0.0, %v3223
      %v3225 = vpop.f32.mrb[0].mxu0
      %3226 = vmatprep.mubr.bf16.mxu0 0
      %3227 = vmatmul.mubr.bf16.gmra.mrb[0].mxu0 %v3137
      %v3228 = vpop.f32.mrb[0].mxu0
      %v3229 = vadd.f32 0.0, %v3228
      %v3230 = vpop.f32.mrb[0].mxu0
      %v3231 = vpop.f32.mrb[0].mxu0
      %v3232 = vadd.f32 0.0, %v3231
      %v3233 = vpop.f32.mrb[0].mxu0
      %3234 = vmatprep.mubr.bf16.mxu0 0
      %3235 = vmatmul.mubr.bf16.gmra.mrb[0].mxu0 %v3140
      %v3236 = vpop.f32.mrb[0].mxu0
      %v3237 = vadd.f32 0.0, %v3236
      %v3238 = vpop.f32.mrb[0].mxu0
      %v3239 = vpop.f32.mrb[0].mxu0
      %v3240 = vadd.f32 0.0, %v3239
      %v3241 = vpop.f32.mrb[0].mxu0
      %3242 = vmatprep.mubr.bf16.mxu0 0
      %3243 = vmatmul.mubr.bf16.gmra.mrb[0].mxu0 %v3143
      %v3244 = vpop.f32.mrb[0].mxu0
      %v3245 = vadd.f32 0.0, %v3244
      %v3246 = vpop.f32.mrb[0].mxu0
      %v3247 = vpop.f32.mrb[0].mxu0
      %v3248 = vadd.f32 0.0, %v3247
      %v3249 = vpop.f32.mrb[0].mxu0
      %3250 = vmatprep.mubr.bf16.mxu0 0
      %3251 = vmatmul.mubr.bf16.gmra.mrb[0].mxu0 %v3146
      %v3252 = vpop.f32.mrb[0].mxu0
      %v3253 = vadd.f32 0.0, %v3252
      %v3254 = vpop.f32.mrb[0].mxu0
      %v3255 = vpop.f32.mrb[0].mxu0
      %v3256 = vadd.f32 0.0, %v3255
      %v3257 = vpop.f32.mrb[0].mxu0
      %3258 = vmatprep.mubr.bf16.mxu0 0
      %3259 = vmatmul.mubr.bf16.gmra.mrb[0].mxu0 %v3149
      %v3260 = vpop.f32.mrb[0].mxu0
      %v3261 = vadd.f32 0.0, %v3260
      %v3262 = vpop.f32.mrb[0].mxu0
      %v3263 = vpop.f32.mrb[0].mxu0
      %v3264 = vadd.f32 0.0, %v3263
      %v3265 = vpop.f32.mrb[0].mxu0
      %3266 = vmatprep.mubr.bf16.mxu0 0
      %3267 = vmatmul.mubr.bf16.gmra.mrb[0].mxu0 %v3152
      %v3268 = vpop.f32.mrb[0].mxu0
      %v3269 = vadd.f32 0.0, %v3268
      %v3270 = vpop.f32.mrb[0].mxu0
      %v3271 = vpop.f32.mrb[0].mxu0
      %v3272 = vadd.f32 0.0, %v3271
      %v3273 = vpop.f32.mrb[0].mxu0
      %3274 = vdwg.mxu0
      %v3275 = vsel %vm2637, %v3213, -1e+30
      %v3276 = vsel %vm2637, %v3216, -1e+30
      %v3277 = vsel %vm2637, %v3221, -1e+30
      %v3278 = vsel %vm2637, %v3224, -1e+30
      %v3279 = vsel %vm2637, %v3229, -1e+30
      %v3280 = vsel %vm2637, %v3232, -1e+30
      %v3281 = vsel %vm2637, %v3237, -1e+30
      %v3282 = vsel %vm2637, %v3240, -1e+30
      %v3283 = vsel %vm2637, %v3245, -1e+30
      %v3284 = vsel %vm2637, %v3248, -1e+30
      %v3285 = vsel %vm2637, %v3253, -1e+30
      %v3286 = vsel %vm2637, %v3256, -1e+30
      %v3287 = vsel %vm2637, %v3261, -1e+30
      %v3288 = vsel %vm2637, %v3264, -1e+30
      %v3289 = vsel %vm2637, %v3269, -1e+30
      %v3290 = vsel %vm2637, %v3272, -1e+30
      %3291 = vmax.xlane.f32.xlu0 %v3275
      %v3292 = vpop.xlane.xlu0 %3291
      %3293 = vmax.xlane.f32.xlu0 %v3276
      %v3294 = vpop.xlane.xlu0 %3293
      %3295 = vmax.xlane.f32.xlu0 %v3277
      %v3296 = vpop.xlane.xlu0 %3295
      %3297 = vmax.xlane.f32.xlu0 %v3278
      %v3298 = vpop.xlane.xlu0 %3297
      %3299 = vmax.xlane.f32.xlu0 %v3279
      %v3300 = vpop.xlane.xlu0 %3299
      %3301 = vmax.xlane.f32.xlu0 %v3280
      %v3302 = vpop.xlane.xlu0 %3301
      %3303 = vmax.xlane.f32.xlu0 %v3281
      %v3304 = vpop.xlane.xlu0 %3303
      %3305 = vmax.xlane.f32.xlu0 %v3282
      %v3306 = vpop.xlane.xlu0 %3305
      %3307 = vmax.xlane.f32.xlu0 %v3283
      %v3308 = vpop.xlane.xlu0 %3307
      %3309 = vmax.xlane.f32.xlu0 %v3284
      %v3310 = vpop.xlane.xlu0 %3309
      %3311 = vmax.xlane.f32.xlu0 %v3285
      %v3312 = vpop.xlane.xlu0 %3311
      %3313 = vmax.xlane.f32.xlu0 %v3286
      %v3314 = vpop.xlane.xlu0 %3313
      %3315 = vmax.xlane.f32.xlu0 %v3287
      %v3316 = vpop.xlane.xlu0 %3315
      %3317 = vmax.xlane.f32.xlu0 %v3288
      %v3318 = vpop.xlane.xlu0 %3317
      %3319 = vmax.xlane.f32.xlu0 %v3289
      %v3320 = vpop.xlane.xlu0 %3319
      %3321 = vmax.xlane.f32.xlu0 %v3290
      %v3322 = vpop.xlane.xlu0 %3321
      %v3323 = vsub.f32 %v3275, %v3292
      %v3324 = vsub.f32 %v3276, %v3294
      %v3325 = vsub.f32 %v3277, %v3296
      %v3326 = vsub.f32 %v3278, %v3298
      %v3327 = vsub.f32 %v3279, %v3300
      %v3328 = vsub.f32 %v3280, %v3302
      %v3329 = vsub.f32 %v3281, %v3304
      %v3330 = vsub.f32 %v3282, %v3306
      %v3331 = vsub.f32 %v3283, %v3308
      %v3332 = vsub.f32 %v3284, %v3310
      %v3333 = vsub.f32 %v3285, %v3312
      %v3334 = vsub.f32 %v3286, %v3314
      %v3335 = vsub.f32 %v3287, %v3316
      %v3336 = vsub.f32 %v3288, %v3318
      %v3337 = vsub.f32 %v3289, %v3320
      %v3338 = vsub.f32 %v3290, %v3322
      %v3339 = vmul.f32 %v3323, 1.442695
      %v3340 = vpow.pop %v3339
      %v3341 = vmul.f32 %v3324, 1.442695
      %v3342 = vpow.pop %v3341
      %v3343 = vmul.f32 %v3325, 1.442695
      %v3344 = vpow.pop %v3343
      %v3345 = vmul.f32 %v3326, 1.442695
      %v3346 = vpow.pop %v3345
      %v3347 = vmul.f32 %v3327, 1.442695
      %v3348 = vpow.pop %v3347
      %v3349 = vmul.f32 %v3328, 1.442695
      %v3350 = vpow.pop %v3349
      %v3351 = vmul.f32 %v3329, 1.442695
      %v3352 = vpow.pop %v3351
      %v3353 = vmul.f32 %v3330, 1.442695
      %v3354 = vpow.pop %v3353
      %v3355 = vmul.f32 %v3331, 1.442695
      %v3356 = vpow.pop %v3355
      %v3357 = vmul.f32 %v3332, 1.442695
      %v3358 = vpow.pop %v3357
      %v3359 = vmul.f32 %v3333, 1.442695
      %v3360 = vpow.pop %v3359
      %v3361 = vmul.f32 %v3334, 1.442695
      %v3362 = vpow.pop %v3361
      %v3363 = vmul.f32 %v3335, 1.442695
      %v3364 = vpow.pop %v3363
      %v3365 = vmul.f32 %v3336, 1.442695
      %v3366 = vpow.pop %v3365
      %v3367 = vmul.f32 %v3337, 1.442695
      %v3368 = vpow.pop %v3367
      %v3369 = vmul.f32 %v3338, 1.442695
      %v3370 = vpow.pop %v3369
      %3371 = vadd.xlane.f32.xlu0 %v3340
      %v3372 = vpop.xlane.xlu0 %3371
      %3373 = vadd.xlane.f32.xlu0 %v3342
      %v3374 = vpop.xlane.xlu0 %3373
      %3375 = vadd.xlane.f32.xlu0 %v3344
      %v3376 = vpop.xlane.xlu0 %3375
      %3377 = vadd.xlane.f32.xlu0 %v3346
      %v3378 = vpop.xlane.xlu0 %3377
      %3379 = vadd.xlane.f32.xlu0 %v3348
      %v3380 = vpop.xlane.xlu0 %3379
      %3381 = vadd.xlane.f32.xlu0 %v3350
      %v3382 = vpop.xlane.xlu0 %3381
      %3383 = vadd.xlane.f32.xlu0 %v3352
      %v3384 = vpop.xlane.xlu0 %3383
      %3385 = vadd.xlane.f32.xlu0 %v3354
      %v3386 = vpop.xlane.xlu0 %3385
      %3387 = vadd.xlane.f32.xlu0 %v3356
      %v3388 = vpop.xlane.xlu0 %3387
      %3389 = vadd.xlane.f32.xlu0 %v3358
      %v3390 = vpop.xlane.xlu0 %3389
      %3391 = vadd.xlane.f32.xlu0 %v3360
      %v3392 = vpop.xlane.xlu0 %3391
      %3393 = vadd.xlane.f32.xlu0 %v3362
      %v3394 = vpop.xlane.xlu0 %3393
      %3395 = vadd.xlane.f32.xlu0 %v3364
      %v3396 = vpop.xlane.xlu0 %3395
      %3397 = vadd.xlane.f32.xlu0 %v3366
      %v3398 = vpop.xlane.xlu0 %3397
      %3399 = vadd.xlane.f32.xlu0 %v3368
      %v3400 = vpop.xlane.xlu0 %3399
      %3401 = vadd.xlane.f32.xlu0 %v3370
      %v3402 = vpop.xlane.xlu0 %3401
      %v3403 = vrcp.pop %v3372
      %v3404 = vrcp.pop %v3374
      %v3405 = vrcp.pop %v3376
      %v3406 = vrcp.pop %v3378
      %v3407 = vrcp.pop %v3380
      %v3408 = vrcp.pop %v3382
      %v3409 = vrcp.pop %v3384
      %v3410 = vrcp.pop %v3386
      %v3411 = vrcp.pop %v3388
      %v3412 = vrcp.pop %v3390
      %v3413 = vrcp.pop %v3392
      %v3414 = vrcp.pop %v3394
      %v3415 = vrcp.pop %v3396
      %v3416 = vrcp.pop %v3398
      %v3417 = vrcp.pop %v3400
      %v3418 = vrcp.pop %v3402
      %v3419 = vmul.f32 %v3340, %v3403
      %v3420 = vmul.f32 %v3342, %v3404
      %v3421 = vmul.f32 %v3344, %v3405
      %v3422 = vmul.f32 %v3346, %v3406
      %v3423 = vmul.f32 %v3348, %v3407
      %v3424 = vmul.f32 %v3350, %v3408
      %v3425 = vmul.f32 %v3352, %v3409
      %v3426 = vmul.f32 %v3354, %v3410
      %v3427 = vmul.f32 %v3356, %v3411
      %v3428 = vmul.f32 %v3358, %v3412
      %v3429 = vmul.f32 %v3360, %v3413
      %v3430 = vmul.f32 %v3362, %v3414
      %v3431 = vmul.f32 %v3364, %v3415
      %v3432 = vmul.f32 %v3366, %v3416
      %v3433 = vmul.f32 %v3368, %v3417
      %v3434 = vmul.f32 %v3370, %v3418
      %v3435 = vpack.c.bf16 %v3420, %v3419
      %v3436 = vpack.c.bf16 %v3422, %v3421
      %v3437 = vpack.c.bf16 %v3424, %v3423
      %v3438 = vpack.c.bf16 %v3426, %v3425
      %v3439 = vpack.c.bf16 %v3428, %v3427
      %v3440 = vpack.c.bf16 %v3430, %v3429
      %v3441 = vpack.c.bf16 %v3432, %v3431
      %v3442 = vpack.c.bf16 %v3434, %v3433
      %3451 = vrot.lane.b32.xlu0 %v2654, 120
      %v3452 = vpop.permute.xlu0 %3451
      %3453 = vrot.lane.b32.xlu0 %v2655, 120
      %v3454 = vpop.permute.xlu0 %3453
      %3455 = vrot.lane.b32.xlu0 %v2656, 120
      %v3456 = vpop.permute.xlu0 %3455
      %3457 = vrot.lane.b32.xlu0 %v2657, 120
      %v3458 = vpop.permute.xlu0 %3457
      %3459 = vrot.lane.b32.xlu0 %v2658, 120
      %v3460 = vpop.permute.xlu0 %3459
      %3461 = vrot.lane.b32.xlu0 %v2659, 120
      %v3462 = vpop.permute.xlu0 %3461
      %3463 = vrot.lane.b32.xlu0 %v2660, 120
      %v3464 = vpop.permute.xlu0 %3463
      %3465 = vrot.lane.b32.xlu0 %v2661, 120
      %v3466 = vpop.permute.xlu0 %3465
      %3475 = vmatprep.subr.bf16.mxu0 0
      %3476 = vmatpush1.bf16.msra.mxu0 %v3452
      %3477 = vmatprep.subr.bf16.mxu0 0
      %3478 = vmatpush1.bf16.msra.mxu0 %v3454
      %3479 = vmatprep.subr.bf16.mxu0 0
      %3480 = vmatpush1.bf16.msra.mxu0 %v3456
      %3481 = vmatprep.subr.bf16.mxu0 0
      %3482 = vmatpush1.bf16.msra.mxu0 %v3458
      %3483 = vmatprep.subr.bf16.mxu0 0
      %3484 = vmatpush1.bf16.msra.mxu0 %v3460
      %3485 = vmatprep.subr.bf16.mxu0 0
      %3486 = vmatpush1.bf16.msra.mxu0 %v3462
      %3487 = vmatprep.subr.bf16.mxu0 0
      %3488 = vmatpush1.bf16.msra.mxu0 %v3464
      %3489 = vmatprep.subr.bf16.mxu0 0
      %3490 = vmatpush1.bf16.msra.mxu0 %v3466
      %3491 = vmatprep.subr.bf16.mxu0 0
      %3492 = vmatpush1.bf16.msra.mxu0 0
      %3493 = vmatprep.subr.bf16.mxu0 0
      %3494 = vmatpush1.bf16.msra.mxu0 0
      %3495 = vmatprep.subr.bf16.mxu0 0
      %3496 = vmatpush1.bf16.msra.mxu0 0
      %3497 = vmatprep.subr.bf16.mxu0 0
      %3498 = vmatpush1.bf16.msra.mxu0 0
      %3499 = vmatprep.subr.bf16.mxu0 0
      %3500 = vmatpush1.bf16.msra.mxu0 0
      %3501 = vmatprep.subr.bf16.mxu0 0
      %3502 = vmatpush1.bf16.msra.mxu0 0
      %3503 = vmatprep.subr.bf16.mxu0 0
      %3504 = vmatpush1.bf16.msra.mxu0 0
      %3505 = vmatprep.subr.bf16.mxu0 0
      %3506 = vmatpush1.bf16.msra.mxu0 0
      %3507 = vmatprep.mubr.bf16.mxu0 0
      %3508 = vmatmul.mubr.bf16.gmra.mrb[0].mxu0 %v3435
      %v3509 = vpop.f32.mrb[0].mxu0
      %v3510 = vadd.f32 0.0, %v3509
      %v3511 = vpop.f32.mrb[0].mxu0
      %v3512 = vpop.f32.mrb[0].mxu0
      %v3513 = vadd.f32 0.0, %v3512
      %v3514 = vpop.f32.mrb[0].mxu0
      %3515 = vmatprep.mubr.bf16.mxu0 0
      %3516 = vmatmul.mubr.bf16.gmra.mrb[0].mxu0 %v3436
      %v3517 = vpop.f32.mrb[0].mxu0
      %v3518 = vadd.f32 0.0, %v3517
      %v3519 = vpop.f32.mrb[0].mxu0
      %v3520 = vpop.f32.mrb[0].mxu0
      %v3521 = vadd.f32 0.0, %v3520
      %v3522 = vpop.f32.mrb[0].mxu0
      %3523 = vmatprep.mubr.bf16.mxu0 0
      %3524 = vmatmul.mubr.bf16.gmra.mrb[0].mxu0 %v3437
      %v3525 = vpop.f32.mrb[0].mxu0
      %v3526 = vadd.f32 0.0, %v3525
      %v3527 = vpop.f32.mrb[0].mxu0
      %v3528 = vpop.f32.mrb[0].mxu0
      %v3529 = vadd.f32 0.0, %v3528
      %v3530 = vpop.f32.mrb[0].mxu0
      %3531 = vmatprep.mubr.bf16.mxu0 0
      %3532 = vmatmul.mubr.bf16.gmra.mrb[0].mxu0 %v3438
      %v3533 = vpop.f32.mrb[0].mxu0
      %v3534 = vadd.f32 0.0, %v3533
      %v3535 = vpop.f32.mrb[0].mxu0
      %v3536 = vpop.f32.mrb[0].mxu0
      %v3537 = vadd.f32 0.0, %v3536
      %v3538 = vpop.f32.mrb[0].mxu0
      %3539 = vmatprep.mubr.bf16.mxu0 0
      %3540 = vmatmul.mubr.bf16.gmra.mrb[0].mxu0 %v3439
      %v3541 = vpop.f32.mrb[0].mxu0
      %v3542 = vadd.f32 0.0, %v3541
      %v3543 = vpop.f32.mrb[0].mxu0
      %v3544 = vpop.f32.mrb[0].mxu0
      %v3545 = vadd.f32 0.0, %v3544
      %v3546 = vpop.f32.mrb[0].mxu0
      %3547 = vmatprep.mubr.bf16.mxu0 0
      %3548 = vmatmul.mubr.bf16.gmra.mrb[0].mxu0 %v3440
      %v3549 = vpop.f32.mrb[0].mxu0
      %v3550 = vadd.f32 0.0, %v3549
      %v3551 = vpop.f32.mrb[0].mxu0
      %v3552 = vpop.f32.mrb[0].mxu0
      %v3553 = vadd.f32 0.0, %v3552
      %v3554 = vpop.f32.mrb[0].mxu0
      %3555 = vmatprep.mubr.bf16.mxu0 0
      %3556 = vmatmul.mubr.bf16.gmra.mrb[0].mxu0 %v3441
      %v3557 = vpop.f32.mrb[0].mxu0
      %v3558 = vadd.f32 0.0, %v3557
      %v3559 = vpop.f32.mrb[0].mxu0
      %v3560 = vpop.f32.mrb[0].mxu0
      %v3561 = vadd.f32 0.0, %v3560
      %v3562 = vpop.f32.mrb[0].mxu0
      %3563 = vmatprep.mubr.bf16.mxu0 0
      %3564 = vmatmul.mubr.bf16.gmra.mrb[0].mxu0 %v3442
      %v3565 = vpop.f32.mrb[0].mxu0
      %v3566 = vadd.f32 0.0, %v3565
      %v3567 = vpop.f32.mrb[0].mxu0
      %v3568 = vpop.f32.mrb[0].mxu0
      %v3569 = vadd.f32 0.0, %v3568
      %v3570 = vpop.f32.mrb[0].mxu0
      %3571 = vdwg.mxu0
      %v3572 = vpack.c.bf16 %v3513, %v3510
      %v3573 = vpack.c.bf16 %v3521, %v3518
      %v3574 = vpack.c.bf16 %v3529, %v3526
      %v3575 = vpack.c.bf16 %v3537, %v3534
      %v3576 = vpack.c.bf16 %v3545, %v3542
      %v3577 = vpack.c.bf16 %v3553, %v3550
      %v3578 = vpack.c.bf16 %v3561, %v3558
      %v3579 = vpack.c.bf16 %v3569, %v3566
      %v3580 = vld [vmem:[%s7 + $0x4] sm:$0xf]
      %v3582 = vsel %vm2662, %v3572, 0
      %v3585 = vsel %vm2662, %v3573, 0
      %v3588 = vsel %vm2662, %v3574, 0
      %v3591 = vsel %vm2662, %v3575, 0
      %v3594 = vsel %vm2662, %v3576, 0
      %v3597 = vsel %vm2662, %v3577, 0
      %v3600 = vsel %vm2662, %v3578, 0
      %v3603 = vsel %vm2662, %v3579, 0
      %vm3605 = vcmask 1043456
      %v3607 = vsel %vm3605, %v3580, 0
      %3609 = vmatprep.subr.bf16.mxu0 0
      %3610 = vmatpush1.bf16.msra.mxu0 %v3607
      %3611 = vmatprep.subr.bf16.mxu0 0
      %3612 = vmatpush1.bf16.msra.mxu0 0
      %3613 = vmatprep.subr.bf16.mxu0 0
      %3614 = vmatpush1.bf16.msra.mxu0 0
      %3615 = vmatprep.subr.bf16.mxu0 0
      %3616 = vmatpush1.bf16.msra.mxu0 0
      %3617 = vmatprep.subr.bf16.mxu0 0
      %3618 = vmatpush1.bf16.msra.mxu0 0
      %3619 = vmatprep.subr.bf16.mxu0 0
      %3620 = vmatpush1.bf16.msra.mxu0 0
      %3621 = vmatprep.subr.bf16.mxu0 0
      %3622 = vmatpush1.bf16.msra.mxu0 0
      %3623 = vmatprep.subr.bf16.mxu0 0
      %3624 = vmatpush1.bf16.msra.mxu0 0
      %3625 = vmatprep.subr.bf16.mxu0 0
      %3626 = vmatpush1.bf16.msra.mxu0 0
      %3627 = vmatprep.subr.bf16.mxu0 0
      %3628 = vmatpush1.bf16.msra.mxu0 0
      %3629 = vmatprep.subr.bf16.mxu0 0
      %3630 = vmatpush1.bf16.msra.mxu0 0
      %3631 = vmatprep.subr.bf16.mxu0 0
      %3632 = vmatpush1.bf16.msra.mxu0 0
      %3633 = vmatprep.subr.bf16.mxu0 0
      %3634 = vmatpush1.bf16.msra.mxu0 0
      %3635 = vmatprep.subr.bf16.mxu0 0
      %3636 = vmatpush1.bf16.msra.mxu0 0
      %3637 = vmatprep.subr.bf16.mxu0 0
      %3638 = vmatpush1.bf16.msra.mxu0 0
      %3639 = vmatprep.subr.bf16.mxu0 0
      %3640 = vmatpush1.bf16.msra.mxu0 0
      %3641 = vmatprep.mubr.bf16.mxu0 0
      %3642 = vmatmul.mubr.bf16.gmra.mrb[0].mxu0 %v3582
      %v3643 = vpop.f32.mrb[0].mxu0
      %v3644 = vadd.f32 0.0, %v3643
      %v3645 = vpop.f32.mrb[0].mxu0
      %v3646 = vpop.f32.mrb[0].mxu0
      %v3647 = vadd.f32 0.0, %v3646
      %v3648 = vpop.f32.mrb[0].mxu0
      %3649 = vmatprep.mubr.bf16.mxu0 0
      %3650 = vmatmul.mubr.bf16.gmra.mrb[0].mxu0 %v3585
      %v3651 = vpop.f32.mrb[0].mxu0
      %v3652 = vadd.f32 0.0, %v3651
      %v3653 = vpop.f32.mrb[0].mxu0
      %v3654 = vpop.f32.mrb[0].mxu0
      %v3655 = vadd.f32 0.0, %v3654
      %v3656 = vpop.f32.mrb[0].mxu0
      %3657 = vmatprep.mubr.bf16.mxu0 0
      %3658 = vmatmul.mubr.bf16.gmra.mrb[0].mxu0 %v3588
      %v3659 = vpop.f32.mrb[0].mxu0
      %v3660 = vadd.f32 0.0, %v3659
      %v3661 = vpop.f32.mrb[0].mxu0
      %v3662 = vpop.f32.mrb[0].mxu0
      %v3663 = vadd.f32 0.0, %v3662
      %v3664 = vpop.f32.mrb[0].mxu0
      %3665 = vmatprep.mubr.bf16.mxu0 0
      %3666 = vmatmul.mubr.bf16.gmra.mrb[0].mxu0 %v3591
      %v3667 = vpop.f32.mrb[0].mxu0
      %v3668 = vadd.f32 0.0, %v3667
      %v3669 = vpop.f32.mrb[0].mxu0
      %v3670 = vpop.f32.mrb[0].mxu0
      %v3671 = vadd.f32 0.0, %v3670
      %v3672 = vpop.f32.mrb[0].mxu0
      %3673 = vmatprep.mubr.bf16.mxu0 0
      %3674 = vmatmul.mubr.bf16.gmra.mrb[0].mxu0 %v3594
      %v3675 = vpop.f32.mrb[0].mxu0
      %v3676 = vadd.f32 0.0, %v3675
      %v3677 = vpop.f32.mrb[0].mxu0
      %v3678 = vpop.f32.mrb[0].mxu0
      %v3679 = vpop.f32.mrb[0].mxu0
      %3680 = vmatprep.mubr.bf16.mxu0 0
      %3681 = vmatmul.mubr.bf16.gmra.mrb[0].mxu0 %v3597
      %v3682 = vpop.f32.mrb[0].mxu0
      %v3683 = vpop.f32.mrb[0].mxu0
      %v3684 = vpop.f32.mrb[0].mxu0
      %v3685 = vpop.f32.mrb[0].mxu0
      %3686 = vmatprep.mubr.bf16.mxu0 0
      %3687 = vmatmul.mubr.bf16.gmra.mrb[0].mxu0 %v3600
      %v3688 = vpop.f32.mrb[0].mxu0
      %v3689 = vpop.f32.mrb[0].mxu0
      %v3690 = vpop.f32.mrb[0].mxu0
      %v3691 = vpop.f32.mrb[0].mxu0
      %3692 = vmatprep.mubr.bf16.mxu0 0
      %3693 = vmatmul.mubr.bf16.gmra.mrb[0].mxu0 %v3603
      %v3694 = vpop.f32.mrb[0].mxu0
      %v3695 = vpop.f32.mrb[0].mxu0
      %v3696 = vpop.f32.mrb[0].mxu0
      %v3697 = vpop.f32.mrb[0].mxu0
      %3698 = vdwg.mxu0
      %v3700 = vsel %vm2662, %v3073, 0
      %v3703 = vsel %vm2662, %v3074, 0
      %v3706 = vsel %vm2662, %v3075, 0
      %v3709 = vsel %vm2662, %v3076, 0
      %v3712 = vsel %vm2662, %v3077, 0
      %v3715 = vsel %vm2662, %v3078, 0
      %v3718 = vsel %vm2662, %v3079, 0
      %v3721 = vsel %vm2662, %v3080, 0
      %v3724 = vsel %vm3605, %v3081, 0
      %3726 = vmatprep.subr.bf16.mxu0 0
      %3727 = vmatpush1.bf16.msra.mxu0 %v3724
      %3728 = vmatprep.subr.bf16.mxu0 0
      %3729 = vmatpush1.bf16.msra.mxu0 0
      %3730 = vmatprep.subr.bf16.mxu0 0
      %3731 = vmatpush1.bf16.msra.mxu0 0
      %3732 = vmatprep.subr.bf16.mxu0 0
      %3733 = vmatpush1.bf16.msra.mxu0 0
      %3734 = vmatprep.subr.bf16.mxu0 0
      %3735 = vmatpush1.bf16.msra.mxu0 0
      %3736 = vmatprep.subr.bf16.mxu0 0
      %3737 = vmatpush1.bf16.msra.mxu0 0
      %3738 = vmatprep.subr.bf16.mxu0 0
      %3739 = vmatpush1.bf16.msra.mxu0 0
      %3740 = vmatprep.subr.bf16.mxu0 0
      %3741 = vmatpush1.bf16.msra.mxu0 0
      %3742 = vmatprep.subr.bf16.mxu0 0
      %3743 = vmatpush1.bf16.msra.mxu0 0
      %3744 = vmatprep.subr.bf16.mxu0 0
      %3745 = vmatpush1.bf16.msra.mxu0 0
      %3746 = vmatprep.subr.bf16.mxu0 0
      %3747 = vmatpush1.bf16.msra.mxu0 0
      %3748 = vmatprep.subr.bf16.mxu0 0
      %3749 = vmatpush1.bf16.msra.mxu0 0
      %3750 = vmatprep.subr.bf16.mxu0 0
      %3751 = vmatpush1.bf16.msra.mxu0 0
      %3752 = vmatprep.subr.bf16.mxu0 0
      %3753 = vmatpush1.bf16.msra.mxu0 0
      %3754 = vmatprep.subr.bf16.mxu0 0
      %3755 = vmatpush1.bf16.msra.mxu0 0
      %3756 = vmatprep.subr.bf16.mxu0 0
      %3757 = vmatpush1.bf16.msra.mxu0 0
      %3758 = vmatprep.mubr.bf16.mxu0 0
      %3759 = vmatmul.mubr.bf16.gmra.mrb[0].mxu0 %v3700
      %v3760 = vpop.f32.mrb[0].mxu0
      %v3761 = vadd.f32 %v3644, %v3760
      %v3762 = vpop.f32.mrb[0].mxu0
      %v3763 = vpop.f32.mrb[0].mxu0
      %v3764 = vadd.f32 %v3647, %v3763
      %v3765 = vpop.f32.mrb[0].mxu0
      %3766 = vmatprep.mubr.bf16.mxu0 0
      %3767 = vmatmul.mubr.bf16.gmra.mrb[0].mxu0 %v3703
      %v3768 = vpop.f32.mrb[0].mxu0
      %v3769 = vadd.f32 %v3652, %v3768
      %v3770 = vpop.f32.mrb[0].mxu0
      %v3771 = vpop.f32.mrb[0].mxu0
      %v3772 = vadd.f32 %v3655, %v3771
      %v3773 = vpop.f32.mrb[0].mxu0
      %3774 = vmatprep.mubr.bf16.mxu0 0
      %3775 = vmatmul.mubr.bf16.gmra.mrb[0].mxu0 %v3706
      %v3776 = vpop.f32.mrb[0].mxu0
      %v3777 = vadd.f32 %v3660, %v3776
      %v3778 = vpop.f32.mrb[0].mxu0
      %v3779 = vpop.f32.mrb[0].mxu0
      %v3780 = vadd.f32 %v3663, %v3779
      %v3781 = vpop.f32.mrb[0].mxu0
      %3782 = vmatprep.mubr.bf16.mxu0 0
      %3783 = vmatmul.mubr.bf16.gmra.mrb[0].mxu0 %v3709
      %v3784 = vpop.f32.mrb[0].mxu0
      %v3785 = vadd.f32 %v3668, %v3784
      %v3786 = vpop.f32.mrb[0].mxu0
      %v3787 = vpop.f32.mrb[0].mxu0
      %v3788 = vadd.f32 %v3671, %v3787
      %v3789 = vpop.f32.mrb[0].mxu0
      %3790 = vmatprep.mubr.bf16.mxu0 0
      %3791 = vmatmul.mubr.bf16.gmra.mrb[0].mxu0 %v3712
      %v3792 = vpop.f32.mrb[0].mxu0
      %v3793 = vadd.f32 %v3676, %v3792
      %v3794 = vpop.f32.mrb[0].mxu0
      %v3795 = vpop.f32.mrb[0].mxu0
      %v3796 = vpop.f32.mrb[0].mxu0
      %3797 = vmatprep.mubr.bf16.mxu0 0
      %3798 = vmatmul.mubr.bf16.gmra.mrb[0].mxu0 %v3715
      %v3799 = vpop.f32.mrb[0].mxu0
      %v3800 = vpop.f32.mrb[0].mxu0
      %v3801 = vpop.f32.mrb[0].mxu0
      %v3802 = vpop.f32.mrb[0].mxu0
      %3803 = vmatprep.mubr.bf16.mxu0 0
      %3804 = vmatmul.mubr.bf16.gmra.mrb[0].mxu0 %v3718
      %v3805 = vpop.f32.mrb[0].mxu0
      %v3806 = vpop.f32.mrb[0].mxu0
      %v3807 = vpop.f32.mrb[0].mxu0
      %v3808 = vpop.f32.mrb[0].mxu0
      %3809 = vmatprep.mubr.bf16.mxu0 0
      %3810 = vmatmul.mubr.bf16.gmra.mrb[0].mxu0 %v3721
      %v3811 = vpop.f32.mrb[0].mxu0
      %v3812 = vpop.f32.mrb[0].mxu0
      %v3813 = vpop.f32.mrb[0].mxu0
      %v3814 = vpop.f32.mrb[0].mxu0
      %3815 = vdwg.mxu0
      %3816 = vrot.lane.b32.xlu0 %v2638, 112
      %v3817 = vpop.permute.xlu0 %3816
      %3818 = vrot.lane.b32.xlu0 %v2639, 112
      %v3819 = vpop.permute.xlu0 %3818
      %3820 = vrot.lane.b32.xlu0 %v2640, 112
      %v3821 = vpop.permute.xlu0 %3820
      %3822 = vrot.lane.b32.xlu0 %v2641, 112
      %v3823 = vpop.permute.xlu0 %3822
      %3824 = vrot.lane.b32.xlu0 %v2642, 112
      %v3825 = vpop.permute.xlu0 %3824
      %3826 = vrot.lane.b32.xlu0 %v2643, 112
      %v3827 = vpop.permute.xlu0 %3826
      %3828 = vrot.lane.b32.xlu0 %v2644, 112
      %v3829 = vpop.permute.xlu0 %3828
      %3830 = vrot.lane.b32.xlu0 %v2645, 112
      %v3831 = vpop.permute.xlu0 %3830
      %3832 = vrot.lane.b32.xlu0 %v2646, 112
      %v3833 = vpop.permute.xlu0 %3832
      %3834 = vrot.lane.b32.xlu0 %v2647, 112
      %v3835 = vpop.permute.xlu0 %3834
      %3836 = vrot.lane.b32.xlu0 %v2648, 112
      %v3837 = vpop.permute.xlu0 %3836
      %3838 = vrot.lane.b32.xlu0 %v2649, 112
      %v3839 = vpop.permute.xlu0 %3838
      %3840 = vrot.lane.b32.xlu0 %v2650, 112
      %v3841 = vpop.permute.xlu0 %3840
      %3842 = vrot.lane.b32.xlu0 %v2651, 112
      %v3843 = vpop.permute.xlu0 %3842
      %3844 = vrot.lane.b32.xlu0 %v2652, 112
      %v3845 = vpop.permute.xlu0 %3844
      %3846 = vrot.lane.b32.xlu0 %v2653, 112
      %v3847 = vpop.permute.xlu0 %3846
      %v3849 = vsel %vm2662, %v3817, 0
      %v3852 = vsel %vm2662, %v3819, 0
      %v3855 = vsel %vm2662, %v3821, 0
      %v3858 = vsel %vm2662, %v3823, 0
      %v3861 = vsel %vm2662, %v3825, 0
      %v3864 = vsel %vm2662, %v3827, 0
      %v3867 = vsel %vm2662, %v3829, 0
      %v3870 = vsel %vm2662, %v3831, 0
      %v3873 = vsel %vm2662, %v3833, 0
      %v3876 = vsel %vm2662, %v3835, 0
      %v3879 = vsel %vm2662, %v3837, 0
      %v3882 = vsel %vm2662, %v3839, 0
      %v3885 = vsel %vm2662, %v3841, 0
      %v3888 = vsel %vm2662, %v3843, 0
      %v3891 = vsel %vm2662, %v3845, 0
      %v3894 = vsel %vm2662, %v3847, 0
      %3896 = vmatprep.subr.bf16.mxu0 0
      %3897 = vmatpush1.bf16.xpose.msra.mxu0 %v3873
      %3898 = vmatprep.subr.bf16.mxu0 0
      %3899 = vmatpush1.bf16.xpose.msra.mxu0 %v3876
      %3900 = vmatprep.subr.bf16.mxu0 0
      %3901 = vmatpush1.bf16.xpose.msra.mxu0 %v3879
      %3902 = vmatprep.subr.bf16.mxu0 0
      %3903 = vmatpush1.bf16.xpose.msra.mxu0 %v3882
      %3904 = vmatprep.subr.bf16.mxu0 0
      %3905 = vmatpush1.bf16.xpose.msra.mxu0 %v3885
      %3906 = vmatprep.subr.bf16.mxu0 0
      %3907 = vmatpush1.bf16.xpose.msra.mxu0 %v3888
      %3908 = vmatprep.subr.bf16.mxu0 0
      %3909 = vmatpush1.bf16.xpose.msra.mxu0 %v3891
      %3910 = vmatprep.subr.bf16.mxu0 0
      %3911 = vmatpush1.bf16.xpose.msra.mxu0 %v3894
      %3912 = vmatprep.subr.bf16.mxu0 0
      %3913 = vmatpush1.bf16.xpose.msra.mxu0 0
      %3914 = vmatprep.subr.bf16.mxu0 0
      %3915 = vmatpush1.bf16.xpose.msra.mxu0 0
      %3916 = vmatprep.subr.bf16.mxu0 0
      %3917 = vmatpush1.bf16.xpose.msra.mxu0 0
      %3918 = vmatprep.subr.bf16.mxu0 0
      %3919 = vmatpush1.bf16.xpose.msra.mxu0 0
      %3920 = vmatprep.subr.bf16.mxu0 0
      %3921 = vmatpush1.bf16.xpose.msra.mxu0 0
      %3922 = vmatprep.subr.bf16.mxu0 0
      %3923 = vmatpush1.bf16.xpose.msra.mxu0 0
      %3924 = vmatprep.subr.bf16.mxu0 0
      %3925 = vmatpush1.bf16.xpose.msra.mxu0 0
      %3926 = vmatprep.subr.bf16.mxu0 0
      %3927 = vmatpush1.bf16.xpose.msra.mxu0 0
      %3928 = vmatprep.mubr.bf16.mxu0 0
      %3929 = vmatmul.mubr.bf16.gmra.mrb[0].mxu0 %v3849
      %v3930 = vpop.f32.mrb[0].mxu0
      %v3931 = vadd.f32 0.0, %v3930
      %v3932 = vpop.f32.mrb[0].mxu0
      %v3933 = vpop.f32.mrb[0].mxu0
      %v3934 = vadd.f32 0.0, %v3933
      %v3935 = vpop.f32.mrb[0].mxu0
      %3936 = vmatprep.mubr.bf16.mxu0 0
      %3937 = vmatmul.mubr.bf16.gmra.mrb[0].mxu0 %v3852
      %v3938 = vpop.f32.mrb[0].mxu0
      %v3939 = vadd.f32 0.0, %v3938
      %v3940 = vpop.f32.mrb[0].mxu0
      %v3941 = vpop.f32.mrb[0].mxu0
      %v3942 = vadd.f32 0.0, %v3941
      %v3943 = vpop.f32.mrb[0].mxu0
      %3944 = vmatprep.mubr.bf16.mxu0 0
      %3945 = vmatmul.mubr.bf16.gmra.mrb[0].mxu0 %v3855
      %v3946 = vpop.f32.mrb[0].mxu0
      %v3947 = vadd.f32 0.0, %v3946
      %v3948 = vpop.f32.mrb[0].mxu0
      %v3949 = vpop.f32.mrb[0].mxu0
      %v3950 = vadd.f32 0.0, %v3949
      %v3951 = vpop.f32.mrb[0].mxu0
      %3952 = vmatprep.mubr.bf16.mxu0 0
      %3953 = vmatmul.mubr.bf16.gmra.mrb[0].mxu0 %v3858
      %v3954 = vpop.f32.mrb[0].mxu0
      %v3955 = vadd.f32 0.0, %v3954
      %v3956 = vpop.f32.mrb[0].mxu0
      %v3957 = vpop.f32.mrb[0].mxu0
      %v3958 = vadd.f32 0.0, %v3957
      %v3959 = vpop.f32.mrb[0].mxu0
      %3960 = vmatprep.mubr.bf16.mxu0 0
      %3961 = vmatmul.mubr.bf16.gmra.mrb[0].mxu0 %v3861
      %v3962 = vpop.f32.mrb[0].mxu0
      %v3963 = vadd.f32 0.0, %v3962
      %v3964 = vpop.f32.mrb[0].mxu0
      %v3965 = vpop.f32.mrb[0].mxu0
      %v3966 = vadd.f32 0.0, %v3965
      %v3967 = vpop.f32.mrb[0].mxu0
      %3968 = vmatprep.mubr.bf16.mxu0 0
      %3969 = vmatmul.mubr.bf16.gmra.mrb[0].mxu0 %v3864
      %v3970 = vpop.f32.mrb[0].mxu0
      %v3971 = vadd.f32 0.0, %v3970
      %v3972 = vpop.f32.mrb[0].mxu0
      %v3973 = vpop.f32.mrb[0].mxu0
      %v3974 = vadd.f32 0.0, %v3973
      %v3975 = vpop.f32.mrb[0].mxu0
      %3976 = vmatprep.mubr.bf16.mxu0 0
      %3977 = vmatmul.mubr.bf16.gmra.mrb[0].mxu0 %v3867
      %v3978 = vpop.f32.mrb[0].mxu0
      %v3979 = vadd.f32 0.0, %v3978
      %v3980 = vpop.f32.mrb[0].mxu0
      %v3981 = vpop.f32.mrb[0].mxu0
      %v3982 = vadd.f32 0.0, %v3981
      %v3983 = vpop.f32.mrb[0].mxu0
      %3984 = vmatprep.mubr.bf16.mxu0 0
      %3985 = vmatmul.mubr.bf16.gmra.mrb[0].mxu0 %v3870
      %v3986 = vpop.f32.mrb[0].mxu0
      %v3987 = vadd.f32 0.0, %v3986
      %v3988 = vpop.f32.mrb[0].mxu0
      %v3989 = vpop.f32.mrb[0].mxu0
      %v3990 = vadd.f32 0.0, %v3989
      %v3991 = vpop.f32.mrb[0].mxu0
      %3992 = vdwg.mxu0
      %v3993 = vsel %vm2637, %v3931, -1e+30
      %v3994 = vsel %vm2637, %v3934, -1e+30
      %v3995 = vsel %vm2637, %v3939, -1e+30
      %v3996 = vsel %vm2637, %v3942, -1e+30
      %v3997 = vsel %vm2637, %v3947, -1e+30
      %v3998 = vsel %vm2637, %v3950, -1e+30
      %v3999 = vsel %vm2637, %v3955, -1e+30
      %v4000 = vsel %vm2637, %v3958, -1e+30
      %v4001 = vsel %vm2637, %v3963, -1e+30
      %v4002 = vsel %vm2637, %v3966, -1e+30
      %v4003 = vsel %vm2637, %v3971, -1e+30
      %v4004 = vsel %vm2637, %v3974, -1e+30
      %v4005 = vsel %vm2637, %v3979, -1e+30
      %v4006 = vsel %vm2637, %v3982, -1e+30
      %v4007 = vsel %vm2637, %v3987, -1e+30
      %v4008 = vsel %vm2637, %v3990, -1e+30
      %4009 = vmax.xlane.f32.xlu0 %v3993
      %v4010 = vpop.xlane.xlu0 %4009
      %4011 = vmax.xlane.f32.xlu0 %v3994
      %v4012 = vpop.xlane.xlu0 %4011
      %4013 = vmax.xlane.f32.xlu0 %v3995
      %v4014 = vpop.xlane.xlu0 %4013
      %4015 = vmax.xlane.f32.xlu0 %v3996
      %v4016 = vpop.xlane.xlu0 %4015
      %4017 = vmax.xlane.f32.xlu0 %v3997
      %v4018 = vpop.xlane.xlu0 %4017
      %4019 = vmax.xlane.f32.xlu0 %v3998
      %v4020 = vpop.xlane.xlu0 %4019
      %4021 = vmax.xlane.f32.xlu0 %v3999
      %v4022 = vpop.xlane.xlu0 %4021
      %4023 = vmax.xlane.f32.xlu0 %v4000
      %v4024 = vpop.xlane.xlu0 %4023
      %4025 = vmax.xlane.f32.xlu0 %v4001
      %v4026 = vpop.xlane.xlu0 %4025
      %4027 = vmax.xlane.f32.xlu0 %v4002
      %v4028 = vpop.xlane.xlu0 %4027
      %4029 = vmax.xlane.f32.xlu0 %v4003
      %v4030 = vpop.xlane.xlu0 %4029
      %4031 = vmax.xlane.f32.xlu0 %v4004
      %v4032 = vpop.xlane.xlu0 %4031
      %4033 = vmax.xlane.f32.xlu0 %v4005
      %v4034 = vpop.xlane.xlu0 %4033
      %4035 = vmax.xlane.f32.xlu0 %v4006
      %v4036 = vpop.xlane.xlu0 %4035
      %4037 = vmax.xlane.f32.xlu0 %v4007
      %v4038 = vpop.xlane.xlu0 %4037
      %4039 = vmax.xlane.f32.xlu0 %v4008
      %v4040 = vpop.xlane.xlu0 %4039
      %v4041 = vsub.f32 %v3993, %v4010
      %v4042 = vsub.f32 %v3994, %v4012
      %v4043 = vsub.f32 %v3995, %v4014
      %v4044 = vsub.f32 %v3996, %v4016
      %v4045 = vsub.f32 %v3997, %v4018
      %v4046 = vsub.f32 %v3998, %v4020
      %v4047 = vsub.f32 %v3999, %v4022
      %v4048 = vsub.f32 %v4000, %v4024
      %v4049 = vsub.f32 %v4001, %v4026
      %v4050 = vsub.f32 %v4002, %v4028
      %v4051 = vsub.f32 %v4003, %v4030
      %v4052 = vsub.f32 %v4004, %v4032
      %v4053 = vsub.f32 %v4005, %v4034
      %v4054 = vsub.f32 %v4006, %v4036
      %v4055 = vsub.f32 %v4007, %v4038
      %v4056 = vsub.f32 %v4008, %v4040
      %v4057 = vmul.f32 %v4041, 1.442695
      %v4058 = vpow.pop %v4057
      %v4059 = vmul.f32 %v4042, 1.442695
      %v4060 = vpow.pop %v4059
      %v4061 = vmul.f32 %v4043, 1.442695
      %v4062 = vpow.pop %v4061
      %v4063 = vmul.f32 %v4044, 1.442695
      %v4064 = vpow.pop %v4063
      %v4065 = vmul.f32 %v4045, 1.442695
      %v4066 = vpow.pop %v4065
      %v4067 = vmul.f32 %v4046, 1.442695
      %v4068 = vpow.pop %v4067
      %v4069 = vmul.f32 %v4047, 1.442695
      %v4070 = vpow.pop %v4069
      %v4071 = vmul.f32 %v4048, 1.442695
      %v4072 = vpow.pop %v4071
      %v4073 = vmul.f32 %v4049, 1.442695
      %v4074 = vpow.pop %v4073
      %v4075 = vmul.f32 %v4050, 1.442695
      %v4076 = vpow.pop %v4075
      %v4077 = vmul.f32 %v4051, 1.442695
      %v4078 = vpow.pop %v4077
      %v4079 = vmul.f32 %v4052, 1.442695
      %v4080 = vpow.pop %v4079
      %v4081 = vmul.f32 %v4053, 1.442695
      %v4082 = vpow.pop %v4081
      %v4083 = vmul.f32 %v4054, 1.442695
      %v4084 = vpow.pop %v4083
      %v4085 = vmul.f32 %v4055, 1.442695
      %v4086 = vpow.pop %v4085
      %v4087 = vmul.f32 %v4056, 1.442695
      %v4088 = vpow.pop %v4087
      %4089 = vadd.xlane.f32.xlu0 %v4058
      %v4090 = vpop.xlane.xlu0 %4089
      %4091 = vadd.xlane.f32.xlu0 %v4060
      %v4092 = vpop.xlane.xlu0 %4091
      %4093 = vadd.xlane.f32.xlu0 %v4062
      %v4094 = vpop.xlane.xlu0 %4093
      %4095 = vadd.xlane.f32.xlu0 %v4064
      %v4096 = vpop.xlane.xlu0 %4095
      %4097 = vadd.xlane.f32.xlu0 %v4066
      %v4098 = vpop.xlane.xlu0 %4097
      %4099 = vadd.xlane.f32.xlu0 %v4068
      %v4100 = vpop.xlane.xlu0 %4099
      %4101 = vadd.xlane.f32.xlu0 %v4070
      %v4102 = vpop.xlane.xlu0 %4101
      %4103 = vadd.xlane.f32.xlu0 %v4072
      %v4104 = vpop.xlane.xlu0 %4103
      %4105 = vadd.xlane.f32.xlu0 %v4074
      %v4106 = vpop.xlane.xlu0 %4105
      %4107 = vadd.xlane.f32.xlu0 %v4076
      %v4108 = vpop.xlane.xlu0 %4107
      %4109 = vadd.xlane.f32.xlu0 %v4078
      %v4110 = vpop.xlane.xlu0 %4109
      %4111 = vadd.xlane.f32.xlu0 %v4080
      %v4112 = vpop.xlane.xlu0 %4111
      %4113 = vadd.xlane.f32.xlu0 %v4082
      %v4114 = vpop.xlane.xlu0 %4113
      %4115 = vadd.xlane.f32.xlu0 %v4084
      %v4116 = vpop.xlane.xlu0 %4115
      %4117 = vadd.xlane.f32.xlu0 %v4086
      %v4118 = vpop.xlane.xlu0 %4117
      %4119 = vadd.xlane.f32.xlu0 %v4088
      %v4120 = vpop.xlane.xlu0 %4119
      %v4121 = vrcp.pop %v4090
      %v4122 = vrcp.pop %v4092
      %v4123 = vrcp.pop %v4094
      %v4124 = vrcp.pop %v4096
      %v4125 = vrcp.pop %v4098
      %v4126 = vrcp.pop %v4100
      %v4127 = vrcp.pop %v4102
      %v4128 = vrcp.pop %v4104
      %v4129 = vrcp.pop %v4106
      %v4130 = vrcp.pop %v4108
      %v4131 = vrcp.pop %v4110
      %v4132 = vrcp.pop %v4112
      %v4133 = vrcp.pop %v4114
      %v4134 = vrcp.pop %v4116
      %v4135 = vrcp.pop %v4118
      %v4136 = vrcp.pop %v4120
      %v4137 = vmul.f32 %v4058, %v4121
      %v4138 = vmul.f32 %v4060, %v4122
      %v4139 = vmul.f32 %v4062, %v4123
      %v4140 = vmul.f32 %v4064, %v4124
      %v4141 = vmul.f32 %v4066, %v4125
      %v4142 = vmul.f32 %v4068, %v4126
      %v4143 = vmul.f32 %v4070, %v4127
      %v4144 = vmul.f32 %v4072, %v4128
      %v4145 = vmul.f32 %v4074, %v4129
      %v4146 = vmul.f32 %v4076, %v4130
      %v4147 = vmul.f32 %v4078, %v4131
      %v4148 = vmul.f32 %v4080, %v4132
      %v4149 = vmul.f32 %v4082, %v4133
      %v4150 = vmul.f32 %v4084, %v4134
      %v4151 = vmul.f32 %v4086, %v4135
      %v4152 = vmul.f32 %v4088, %v4136
      %v4153 = vpack.c.bf16 %v4138, %v4137
      %v4154 = vpack.c.bf16 %v4140, %v4139
      %v4155 = vpack.c.bf16 %v4142, %v4141
      %v4156 = vpack.c.bf16 %v4144, %v4143
      %v4157 = vpack.c.bf16 %v4146, %v4145
      %v4158 = vpack.c.bf16 %v4148, %v4147
      %v4159 = vpack.c.bf16 %v4150, %v4149
      %v4160 = vpack.c.bf16 %v4152, %v4151
      %4161 = vrot.lane.b32.xlu0 %v2654, 112
      %v4162 = vpop.permute.xlu0 %4161
      %4163 = vrot.lane.b32.xlu0 %v2655, 112
      %v4164 = vpop.permute.xlu0 %4163
      %4165 = vrot.lane.b32.xlu0 %v2656, 112
      %v4166 = vpop.permute.xlu0 %4165
      %4167 = vrot.lane.b32.xlu0 %v2657, 112
      %v4168 = vpop.permute.xlu0 %4167
      %4169 = vrot.lane.b32.xlu0 %v2658, 112
      %v4170 = vpop.permute.xlu0 %4169
      %4171 = vrot.lane.b32.xlu0 %v2659, 112
      %v4172 = vpop.permute.xlu0 %4171
      %4173 = vrot.lane.b32.xlu0 %v2660, 112
      %v4174 = vpop.permute.xlu0 %4173
      %4175 = vrot.lane.b32.xlu0 %v2661, 112
      %v4176 = vpop.permute.xlu0 %4175
      %4185 = vmatprep.subr.bf16.mxu0 0
      %4186 = vmatpush1.bf16.msra.mxu0 %v4162
      %4187 = vmatprep.subr.bf16.mxu0 0
      %4188 = vmatpush1.bf16.msra.mxu0 %v4164
      %4189 = vmatprep.subr.bf16.mxu0 0
      %4190 = vmatpush1.bf16.msra.mxu0 %v4166
      %4191 = vmatprep.subr.bf16.mxu0 0
      %4192 = vmatpush1.bf16.msra.mxu0 %v4168
      %4193 = vmatprep.subr.bf16.mxu0 0
      %4194 = vmatpush1.bf16.msra.mxu0 %v4170
      %4195 = vmatprep.subr.bf16.mxu0 0
      %4196 = vmatpush1.bf16.msra.mxu0 %v4172
      %4197 = vmatprep.subr.bf16.mxu0 0
      %4198 = vmatpush1.bf16.msra.mxu0 %v4174
      %4199 = vmatprep.subr.bf16.mxu0 0
      %4200 = vmatpush1.bf16.msra.mxu0 %v4176
      %4201 = vmatprep.subr.bf16.mxu0 0
      %4202 = vmatpush1.bf16.msra.mxu0 0
      %4203 = vmatprep.subr.bf16.mxu0 0
      %4204 = vmatpush1.bf16.msra.mxu0 0
      %4205 = vmatprep.subr.bf16.mxu0 0
      %4206 = vmatpush1.bf16.msra.mxu0 0
      %4207 = vmatprep.subr.bf16.mxu0 0
      %4208 = vmatpush1.bf16.msra.mxu0 0
      %4209 = vmatprep.subr.bf16.mxu0 0
      %4210 = vmatpush1.bf16.msra.mxu0 0
      %4211 = vmatprep.subr.bf16.mxu0 0
      %4212 = vmatpush1.bf16.msra.mxu0 0
      %4213 = vmatprep.subr.bf16.mxu0 0
      %4214 = vmatpush1.bf16.msra.mxu0 0
      %4215 = vmatprep.subr.bf16.mxu0 0
      %4216 = vmatpush1.bf16.msra.mxu0 0
      %4217 = vmatprep.mubr.bf16.mxu0 0
      %4218 = vmatmul.mubr.bf16.gmra.mrb[0].mxu0 %v4153
      %v4219 = vpop.f32.mrb[0].mxu0
      %v4220 = vadd.f32 0.0, %v4219
      %v4221 = vpop.f32.mrb[0].mxu0
      %v4222 = vpop.f32.mrb[0].mxu0
      %v4223 = vadd.f32 0.0, %v4222
      %v4224 = vpop.f32.mrb[0].mxu0
      %4225 = vmatprep.mubr.bf16.mxu0 0
      %4226 = vmatmul.mubr.bf16.gmra.mrb[0].mxu0 %v4154
      %v4227 = vpop.f32.mrb[0].mxu0
      %v4228 = vadd.f32 0.0, %v4227
      %v4229 = vpop.f32.mrb[0].mxu0
      %v4230 = vpop.f32.mrb[0].mxu0
      %v4231 = vadd.f32 0.0, %v4230
      %v4232 = vpop.f32.mrb[0].mxu0
      %4233 = vmatprep.mubr.bf16.mxu0 0
      %4234 = vmatmul.mubr.bf16.gmra.mrb[0].mxu0 %v4155
      %v4235 = vpop.f32.mrb[0].mxu0
      %v4236 = vadd.f32 0.0, %v4235
      %v4237 = vpop.f32.mrb[0].mxu0
      %v4238 = vpop.f32.mrb[0].mxu0
      %v4239 = vadd.f32 0.0, %v4238
      %v4240 = vpop.f32.mrb[0].mxu0
      %4241 = vmatprep.mubr.bf16.mxu0 0
      %4242 = vmatmul.mubr.bf16.gmra.mrb[0].mxu0 %v4156
      %v4243 = vpop.f32.mrb[0].mxu0
      %v4244 = vadd.f32 0.0, %v4243
      %v4245 = vpop.f32.mrb[0].mxu0
      %v4246 = vpop.f32.mrb[0].mxu0
      %v4247 = vadd.f32 0.0, %v4246
      %v4248 = vpop.f32.mrb[0].mxu0
      %4249 = vmatprep.mubr.bf16.mxu0 0
      %4250 = vmatmul.mubr.bf16.gmra.mrb[0].mxu0 %v4157
      %v4251 = vpop.f32.mrb[0].mxu0
      %v4252 = vadd.f32 0.0, %v4251
      %v4253 = vpop.f32.mrb[0].mxu0
      %v4254 = vpop.f32.mrb[0].mxu0
      %v4255 = vadd.f32 0.0, %v4254
      %v4256 = vpop.f32.mrb[0].mxu0
      %4257 = vmatprep.mubr.bf16.mxu0 0
      %4258 = vmatmul.mubr.bf16.gmra.mrb[0].mxu0 %v4158
      %v4259 = vpop.f32.mrb[0].mxu0
      %v4260 = vadd.f32 0.0, %v4259
      %v4261 = vpop.f32.mrb[0].mxu0
      %v4262 = vpop.f32.mrb[0].mxu0
      %v4263 = vadd.f32 0.0, %v4262
      %v4264 = vpop.f32.mrb[0].mxu0
      %4265 = vmatprep.mubr.bf16.mxu0 0
      %4266 = vmatmul.mubr.bf16.gmra.mrb[0].mxu0 %v4159
      %v4267 = vpop.f32.mrb[0].mxu0
      %v4268 = vadd.f32 0.0, %v4267
      %v4269 = vpop.f32.mrb[0].mxu0
      %v4270 = vpop.f32.mrb[0].mxu0
      %v4271 = vadd.f32 0.0, %v4270
      %v4272 = vpop.f32.mrb[0].mxu0
      %4273 = vmatprep.mubr.bf16.mxu0 0
      %4274 = vmatmul.mubr.bf16.gmra.mrb[0].mxu0 %v4160
      %v4275 = vpop.f32.mrb[0].mxu0
      %v4276 = vadd.f32 0.0, %v4275
      %v4277 = vpop.f32.mrb[0].mxu0
      %v4278 = vpop.f32.mrb[0].mxu0
      %v4279 = vadd.f32 0.0, %v4278
      %v4280 = vpop.f32.mrb[0].mxu0
      %4281 = vdwg.mxu0
      %v4282 = vpack.c.bf16 %v4223, %v4220
      %v4283 = vpack.c.bf16 %v4231, %v4228
      %v4284 = vpack.c.bf16 %v4239, %v4236
      %v4285 = vpack.c.bf16 %v4247, %v4244
      %v4286 = vpack.c.bf16 %v4255, %v4252
      %v4287 = vpack.c.bf16 %v4263, %v4260
      %v4288 = vpack.c.bf16 %v4271, %v4268
      %v4289 = vpack.c.bf16 %v4279, %v4276
      %v4290 = vld [vmem:[%s7 + $0x8] sm:$0xf]
      %v4292 = vsel %vm2662, %v4282, 0
      %v4295 = vsel %vm2662, %v4283, 0
      %v4298 = vsel %vm2662, %v4284, 0
      %v4301 = vsel %vm2662, %v4285, 0
      %v4304 = vsel %vm2662, %v4286, 0
      %v4307 = vsel %vm2662, %v4287, 0
      %v4310 = vsel %vm2662, %v4288, 0
      %v4313 = vsel %vm2662, %v4289, 0
      %v4316 = vsel %vm3605, %v4290, 0
      %4318 = vmatprep.subr.bf16.mxu0 0
      %4319 = vmatpush1.bf16.msra.mxu0 %v4316
      %4320 = vmatprep.subr.bf16.mxu0 0
      %4321 = vmatpush1.bf16.msra.mxu0 0
      %4322 = vmatprep.subr.bf16.mxu0 0
      %4323 = vmatpush1.bf16.msra.mxu0 0
      %4324 = vmatprep.subr.bf16.mxu0 0
      %4325 = vmatpush1.bf16.msra.mxu0 0
      %4326 = vmatprep.subr.bf16.mxu0 0
      %4327 = vmatpush1.bf16.msra.mxu0 0
      %4328 = vmatprep.subr.bf16.mxu0 0
      %4329 = vmatpush1.bf16.msra.mxu0 0
      %4330 = vmatprep.subr.bf16.mxu0 0
      %4331 = vmatpush1.bf16.msra.mxu0 0
      %4332 = vmatprep.subr.bf16.mxu0 0
      %4333 = vmatpush1.bf16.msra.mxu0 0
      %4334 = vmatprep.subr.bf16.mxu0 0
      %4335 = vmatpush1.bf16.msra.mxu0 0
      %4336 = vmatprep.subr.bf16.mxu0 0
      %4337 = vmatpush1.bf16.msra.mxu0 0
      %4338 = vmatprep.subr.bf16.mxu0 0
      %4339 = vmatpush1.bf16.msra.mxu0 0
      %4340 = vmatprep.subr.bf16.mxu0 0
      %4341 = vmatpush1.bf16.msra.mxu0 0
      %4342 = vmatprep.subr.bf16.mxu0 0
      %4343 = vmatpush1.bf16.msra.mxu0 0
      %4344 = vmatprep.subr.bf16.mxu0 0
      %4345 = vmatpush1.bf16.msra.mxu0 0
      %4346 = vmatprep.subr.bf16.mxu0 0
      %4347 = vmatpush1.bf16.msra.mxu0 0
      %4348 = vmatprep.subr.bf16.mxu0 0
      %4349 = vmatpush1.bf16.msra.mxu0 0
      %4350 = vmatprep.mubr.bf16.mxu0 0
      %4351 = vmatmul.mubr.bf16.gmra.mrb[0].mxu0 %v4292
      %v4352 = vpop.f32.mrb[0].mxu0
      %v4353 = vadd.f32 0.0, %v4352
      %v4354 = vpop.f32.mrb[0].mxu0
      %v4355 = vpop.f32.mrb[0].mxu0
      %v4356 = vadd.f32 0.0, %v4355
      %v4357 = vpop.f32.mrb[0].mxu0
      %4358 = vmatprep.mubr.bf16.mxu0 0
      %4359 = vmatmul.mubr.bf16.gmra.mrb[0].mxu0 %v4295
      %v4360 = vpop.f32.mrb[0].mxu0
      %v4361 = vadd.f32 0.0, %v4360
      %v4362 = vpop.f32.mrb[0].mxu0
      %v4363 = vpop.f32.mrb[0].mxu0
      %v4364 = vadd.f32 0.0, %v4363
      %v4365 = vpop.f32.mrb[0].mxu0
      %4366 = vmatprep.mubr.bf16.mxu0 0
      %4367 = vmatmul.mubr.bf16.gmra.mrb[0].mxu0 %v4298
      %v4368 = vpop.f32.mrb[0].mxu0
      %v4369 = vadd.f32 0.0, %v4368
      %v4370 = vpop.f32.mrb[0].mxu0
      %v4371 = vpop.f32.mrb[0].mxu0
      %v4372 = vadd.f32 0.0, %v4371
      %v4373 = vpop.f32.mrb[0].mxu0
      %4374 = vmatprep.mubr.bf16.mxu0 0
      %4375 = vmatmul.mubr.bf16.gmra.mrb[0].mxu0 %v4301
      %v4376 = vpop.f32.mrb[0].mxu0
      %v4377 = vadd.f32 0.0, %v4376
      %v4378 = vpop.f32.mrb[0].mxu0
      %v4379 = vpop.f32.mrb[0].mxu0
      %v4380 = vadd.f32 0.0, %v4379
      %v4381 = vpop.f32.mrb[0].mxu0
      %4382 = vmatprep.mubr.bf16.mxu0 0
      %4383 = vmatmul.mubr.bf16.gmra.mrb[0].mxu0 %v4304
      %v4384 = vpop.f32.mrb[0].mxu0
      %v4385 = vadd.f32 0.0, %v4384
      %v4386 = vpop.f32.mrb[0].mxu0
      %v4387 = vpop.f32.mrb[0].mxu0
      %v4388 = vpop.f32.mrb[0].mxu0
      %4389 = vmatprep.mubr.bf16.mxu0 0
      %4390 = vmatmul.mubr.bf16.gmra.mrb[0].mxu0 %v4307
      %v4391 = vpop.f32.mrb[0].mxu0
      %v4392 = vpop.f32.mrb[0].mxu0
      %v4393 = vpop.f32.mrb[0].mxu0
      %v4394 = vpop.f32.mrb[0].mxu0
      %4395 = vmatprep.mubr.bf16.mxu0 0
      %4396 = vmatmul.mubr.bf16.gmra.mrb[0].mxu0 %v4310
      %v4397 = vpop.f32.mrb[0].mxu0
      %v4398 = vpop.f32.mrb[0].mxu0
      %v4399 = vpop.f32.mrb[0].mxu0
      %v4400 = vpop.f32.mrb[0].mxu0
      %4401 = vmatprep.mubr.bf16.mxu0 0
      %4402 = vmatmul.mubr.bf16.gmra.mrb[0].mxu0 %v4313
      %v4403 = vpop.f32.mrb[0].mxu0
      %v4404 = vpop.f32.mrb[0].mxu0
      %v4405 = vpop.f32.mrb[0].mxu0
      %v4406 = vpop.f32.mrb[0].mxu0
      %4407 = vdwg.mxu0
      %v4408 = vadd.f32 %v3761, %v4353
      %v4409 = vadd.f32 %v3764, %v4356
      %v4410 = vadd.f32 %v3769, %v4361
      %v4411 = vadd.f32 %v3772, %v4364
      %v4412 = vadd.f32 %v3777, %v4369
      %v4413 = vadd.f32 %v3780, %v4372
      %v4414 = vadd.f32 %v3785, %v4377
      %v4415 = vadd.f32 %v3788, %v4380
      %v4416 = vadd.f32 %v3793, %v4385
      %4417 = vrot.lane.b32.xlu0 %v2638, 104
      %v4418 = vpop.permute.xlu0 %4417
      %4419 = vrot.lane.b32.xlu0 %v2639, 104
      %v4420 = vpop.permute.xlu0 %4419
      %4421 = vrot.lane.b32.xlu0 %v2640, 104
      %v4422 = vpop.permute.xlu0 %4421
      %4423 = vrot.lane.b32.xlu0 %v2641, 104
      %v4424 = vpop.permute.xlu0 %4423
      %4425 = vrot.lane.b32.xlu0 %v2642, 104
      %v4426 = vpop.permute.xlu0 %4425
      %4427 = vrot.lane.b32.xlu0 %v2643, 104
      %v4428 = vpop.permute.xlu0 %4427
      %4429 = vrot.lane.b32.xlu0 %v2644, 104
      %v4430 = vpop.permute.xlu0 %4429
      %4431 = vrot.lane.b32.xlu0 %v2645, 104
      %v4432 = vpop.permute.xlu0 %4431
      %4433 = vrot.lane.b32.xlu0 %v2646, 104
      %v4434 = vpop.permute.xlu0 %4433
      %4435 = vrot.lane.b32.xlu0 %v2647, 104
      %v4436 = vpop.permute.xlu0 %4435
      %4437 = vrot.lane.b32.xlu0 %v2648, 104
      %v4438 = vpop.permute.xlu0 %4437
      %4439 = vrot.lane.b32.xlu0 %v2649, 104
      %v4440 = vpop.permute.xlu0 %4439
      %4441 = vrot.lane.b32.xlu0 %v2650, 104
      %v4442 = vpop.permute.xlu0 %4441
      %4443 = vrot.lane.b32.xlu0 %v2651, 104
      %v4444 = vpop.permute.xlu0 %4443
      %4445 = vrot.lane.b32.xlu0 %v2652, 104
      %v4446 = vpop.permute.xlu0 %4445
      %4447 = vrot.lane.b32.xlu0 %v2653, 104
      %v4448 = vpop.permute.xlu0 %4447
      %v4450 = vsel %vm2662, %v4418, 0
      %v4453 = vsel %vm2662, %v4420, 0
      %v4456 = vsel %vm2662, %v4422, 0
      %v4459 = vsel %vm2662, %v4424, 0
      %v4462 = vsel %vm2662, %v4426, 0
      %v4465 = vsel %vm2662, %v4428, 0
      %v4468 = vsel %vm2662, %v4430, 0
      %v4471 = vsel %vm2662, %v4432, 0
      %v4474 = vsel %vm2662, %v4434, 0
      %v4477 = vsel %vm2662, %v4436, 0
      %v4480 = vsel %vm2662, %v4438, 0
      %v4483 = vsel %vm2662, %v4440, 0
      %v4486 = vsel %vm2662, %v4442, 0
      %v4489 = vsel %vm2662, %v4444, 0
      %v4492 = vsel %vm2662, %v4446, 0
      %v4495 = vsel %vm2662, %v4448, 0
      %4497 = vmatprep.subr.bf16.mxu0 0
      %4498 = vmatpush1.bf16.xpose.msra.mxu0 %v4474
      %4499 = vmatprep.subr.bf16.mxu0 0
      %4500 = vmatpush1.bf16.xpose.msra.mxu0 %v4477
      %4501 = vmatprep.subr.bf16.mxu0 0
      %4502 = vmatpush1.bf16.xpose.msra.mxu0 %v4480
      %4503 = vmatprep.subr.bf16.mxu0 0
      %4504 = vmatpush1.bf16.xpose.msra.mxu0 %v4483
      %4505 = vmatprep.subr.bf16.mxu0 0
      %4506 = vmatpush1.bf16.xpose.msra.mxu0 %v4486
      %4507 = vmatprep.subr.bf16.mxu0 0
      %4508 = vmatpush1.bf16.xpose.msra.mxu0 %v4489
      %4509 = vmatprep.subr.bf16.mxu0 0
      %4510 = vmatpush1.bf16.xpose.msra.mxu0 %v4492
      %4511 = vmatprep.subr.bf16.mxu0 0
      %4512 = vmatpush1.bf16.xpose.msra.mxu0 %v4495
      %4513 = vmatprep.subr.bf16.mxu0 0
      %4514 = vmatpush1.bf16.xpose.msra.mxu0 0
      %4515 = vmatprep.subr.bf16.mxu0 0
      %4516 = vmatpush1.bf16.xpose.msra.mxu0 0
      %4517 = vmatprep.subr.bf16.mxu0 0
      %4518 = vmatpush1.bf16.xpose.msra.mxu0 0
      %4519 = vmatprep.subr.bf16.mxu0 0
      %4520 = vmatpush1.bf16.xpose.msra.mxu0 0
      %4521 = vmatprep.subr.bf16.mxu0 0
      %4522 = vmatpush1.bf16.xpose.msra.mxu0 0
      %4523 = vmatprep.subr.bf16.mxu0 0
      %4524 = vmatpush1.bf16.xpose.msra.mxu0 0
      %4525 = vmatprep.subr.bf16.mxu0 0
      %4526 = vmatpush1.bf16.xpose.msra.mxu0 0
      %4527 = vmatprep.subr.bf16.mxu0 0
      %4528 = vmatpush1.bf16.xpose.msra.mxu0 0
      %4529 = vmatprep.mubr.bf16.mxu0 0
      %4530 = vmatmul.mubr.bf16.gmra.mrb[0].mxu0 %v4450
      %v4531 = vpop.f32.mrb[0].mxu0
      %v4532 = vadd.f32 0.0, %v4531
      %v4533 = vpop.f32.mrb[0].mxu0
      %v4534 = vpop.f32.mrb[0].mxu0
      %v4535 = vadd.f32 0.0, %v4534
      %v4536 = vpop.f32.mrb[0].mxu0
      %4537 = vmatprep.mubr.bf16.mxu0 0
      %4538 = vmatmul.mubr.bf16.gmra.mrb[0].mxu0 %v4453
      %v4539 = vpop.f32.mrb[0].mxu0
      %v4540 = vadd.f32 0.0, %v4539
      %v4541 = vpop.f32.mrb[0].mxu0
      %v4542 = vpop.f32.mrb[0].mxu0
      %v4543 = vadd.f32 0.0, %v4542
      %v4544 = vpop.f32.mrb[0].mxu0
      %4545 = vmatprep.mubr.bf16.mxu0 0
      %4546 = vmatmul.mubr.bf16.gmra.mrb[0].mxu0 %v4456
      %v4547 = vpop.f32.mrb[0].mxu0
      %v4548 = vadd.f32 0.0, %v4547
      %v4549 = vpop.f32.mrb[0].mxu0
      %v4550 = vpop.f32.mrb[0].mxu0
      %v4551 = vadd.f32 0.0, %v4550
      %v4552 = vpop.f32.mrb[0].mxu0
      %4553 = vmatprep.mubr.bf16.mxu0 0
      %4554 = vmatmul.mubr.bf16.gmra.mrb[0].mxu0 %v4459
      %v4555 = vpop.f32.mrb[0].mxu0
      %v4556 = vadd.f32 0.0, %v4555
      %v4557 = vpop.f32.mrb[0].mxu0
      %v4558 = vpop.f32.mrb[0].mxu0
      %v4559 = vadd.f32 0.0, %v4558
      %v4560 = vpop.f32.mrb[0].mxu0
      %4561 = vmatprep.mubr.bf16.mxu0 0
      %4562 = vmatmul.mubr.bf16.gmra.mrb[0].mxu0 %v4462
      %v4563 = vpop.f32.mrb[0].mxu0
      %v4564 = vadd.f32 0.0, %v4563
      %v4565 = vpop.f32.mrb[0].mxu0
      %v4566 = vpop.f32.mrb[0].mxu0
      %v4567 = vadd.f32 0.0, %v4566
      %v4568 = vpop.f32.mrb[0].mxu0
      %4569 = vmatprep.mubr.bf16.mxu0 0
      %4570 = vmatmul.mubr.bf16.gmra.mrb[0].mxu0 %v4465
      %v4571 = vpop.f32.mrb[0].mxu0
      %v4572 = vadd.f32 0.0, %v4571
      %v4573 = vpop.f32.mrb[0].mxu0
      %v4574 = vpop.f32.mrb[0].mxu0
      %v4575 = vadd.f32 0.0, %v4574
      %v4576 = vpop.f32.mrb[0].mxu0
      %4577 = vmatprep.mubr.bf16.mxu0 0
      %4578 = vmatmul.mubr.bf16.gmra.mrb[0].mxu0 %v4468
      %v4579 = vpop.f32.mrb[0].mxu0
      %v4580 = vadd.f32 0.0, %v4579
      %v4581 = vpop.f32.mrb[0].mxu0
      %v4582 = vpop.f32.mrb[0].mxu0
      %v4583 = vadd.f32 0.0, %v4582
      %v4584 = vpop.f32.mrb[0].mxu0
      %4585 = vmatprep.mubr.bf16.mxu0 0
      %4586 = vmatmul.mubr.bf16.gmra.mrb[0].mxu0 %v4471
      %v4587 = vpop.f32.mrb[0].mxu0
      %v4588 = vadd.f32 0.0, %v4587
      %v4589 = vpop.f32.mrb[0].mxu0
      %v4590 = vpop.f32.mrb[0].mxu0
      %v4591 = vadd.f32 0.0, %v4590
      %v4592 = vpop.f32.mrb[0].mxu0
      %4593 = vdwg.mxu0
      %v4594 = vsel %vm2637, %v4532, -1e+30
      %v4595 = vsel %vm2637, %v4535, -1e+30
      %v4596 = vsel %vm2637, %v4540, -1e+30
      %v4597 = vsel %vm2637, %v4543, -1e+30
      %v4598 = vsel %vm2637, %v4548, -1e+30
      %v4599 = vsel %vm2637, %v4551, -1e+30
      %v4600 = vsel %vm2637, %v4556, -1e+30
      %v4601 = vsel %vm2637, %v4559, -1e+30
      %v4602 = vsel %vm2637, %v4564, -1e+30
      %v4603 = vsel %vm2637, %v4567, -1e+30
      %v4604 = vsel %vm2637, %v4572, -1e+30
      %v4605 = vsel %vm2637, %v4575, -1e+30
      %v4606 = vsel %vm2637, %v4580, -1e+30
      %v4607 = vsel %vm2637, %v4583, -1e+30
      %v4608 = vsel %vm2637, %v4588, -1e+30
      %v4609 = vsel %vm2637, %v4591, -1e+30
      %4610 = vmax.xlane.f32.xlu0 %v4594
      %v4611 = vpop.xlane.xlu0 %4610
      %4612 = vmax.xlane.f32.xlu0 %v4595
      %v4613 = vpop.xlane.xlu0 %4612
      %4614 = vmax.xlane.f32.xlu0 %v4596
      %v4615 = vpop.xlane.xlu0 %4614
      %4616 = vmax.xlane.f32.xlu0 %v4597
      %v4617 = vpop.xlane.xlu0 %4616
      %4618 = vmax.xlane.f32.xlu0 %v4598
      %v4619 = vpop.xlane.xlu0 %4618
      %4620 = vmax.xlane.f32.xlu0 %v4599
      %v4621 = vpop.xlane.xlu0 %4620
      %4622 = vmax.xlane.f32.xlu0 %v4600
      %v4623 = vpop.xlane.xlu0 %4622
      %4624 = vmax.xlane.f32.xlu0 %v4601
      %v4625 = vpop.xlane.xlu0 %4624
      %4626 = vmax.xlane.f32.xlu0 %v4602
      %v4627 = vpop.xlane.xlu0 %4626
      %4628 = vmax.xlane.f32.xlu0 %v4603
      %v4629 = vpop.xlane.xlu0 %4628
      %4630 = vmax.xlane.f32.xlu0 %v4604
      %v4631 = vpop.xlane.xlu0 %4630
      %4632 = vmax.xlane.f32.xlu0 %v4605
      %v4633 = vpop.xlane.xlu0 %4632
      %4634 = vmax.xlane.f32.xlu0 %v4606
      %v4635 = vpop.xlane.xlu0 %4634
      %4636 = vmax.xlane.f32.xlu0 %v4607
      %v4637 = vpop.xlane.xlu0 %4636
      %4638 = vmax.xlane.f32.xlu0 %v4608
      %v4639 = vpop.xlane.xlu0 %4638
      %4640 = vmax.xlane.f32.xlu0 %v4609
      %v4641 = vpop.xlane.xlu0 %4640
      %v4642 = vsub.f32 %v4594, %v4611
      %v4643 = vsub.f32 %v4595, %v4613
      %v4644 = vsub.f32 %v4596, %v4615
      %v4645 = vsub.f32 %v4597, %v4617
      %v4646 = vsub.f32 %v4598, %v4619
      %v4647 = vsub.f32 %v4599, %v4621
      %v4648 = vsub.f32 %v4600, %v4623
      %v4649 = vsub.f32 %v4601, %v4625
      %v4650 = vsub.f32 %v4602, %v4627
      %v4651 = vsub.f32 %v4603, %v4629
      %v4652 = vsub.f32 %v4604, %v4631
      %v4653 = vsub.f32 %v4605, %v4633
      %v4654 = vsub.f32 %v4606, %v4635
      %v4655 = vsub.f32 %v4607, %v4637
      %v4656 = vsub.f32 %v4608, %v4639
      %v4657 = vsub.f32 %v4609, %v4641
      %v4658 = vmul.f32 %v4642, 1.442695
      %v4659 = vpow.pop %v4658
      %v4660 = vmul.f32 %v4643, 1.442695
      %v4661 = vpow.pop %v4660
      %v4662 = vmul.f32 %v4644, 1.442695
      %v4663 = vpow.pop %v4662
      %v4664 = vmul.f32 %v4645, 1.442695
      %v4665 = vpow.pop %v4664
      %v4666 = vmul.f32 %v4646, 1.442695
      %v4667 = vpow.pop %v4666
      %v4668 = vmul.f32 %v4647, 1.442695
      %v4669 = vpow.pop %v4668
      %v4670 = vmul.f32 %v4648, 1.442695
      %v4671 = vpow.pop %v4670
      %v4672 = vmul.f32 %v4649, 1.442695
      %v4673 = vpow.pop %v4672
      %v4674 = vmul.f32 %v4650, 1.442695
      %v4675 = vpow.pop %v4674
      %v4676 = vmul.f32 %v4651, 1.442695
      %v4677 = vpow.pop %v4676
      %v4678 = vmul.f32 %v4652, 1.442695
      %v4679 = vpow.pop %v4678
      %v4680 = vmul.f32 %v4653, 1.442695
      %v4681 = vpow.pop %v4680
      %v4682 = vmul.f32 %v4654, 1.442695
      %v4683 = vpow.pop %v4682
      %v4684 = vmul.f32 %v4655, 1.442695
      %v4685 = vpow.pop %v4684
      %v4686 = vmul.f32 %v4656, 1.442695
      %v4687 = vpow.pop %v4686
      %v4688 = vmul.f32 %v4657, 1.442695
      %v4689 = vpow.pop %v4688
      %4690 = vadd.xlane.f32.xlu0 %v4659
      %v4691 = vpop.xlane.xlu0 %4690
      %4692 = vadd.xlane.f32.xlu0 %v4661
      %v4693 = vpop.xlane.xlu0 %4692
      %4694 = vadd.xlane.f32.xlu0 %v4663
      %v4695 = vpop.xlane.xlu0 %4694
      %4696 = vadd.xlane.f32.xlu0 %v4665
      %v4697 = vpop.xlane.xlu0 %4696
      %4698 = vadd.xlane.f32.xlu0 %v4667
      %v4699 = vpop.xlane.xlu0 %4698
      %4700 = vadd.xlane.f32.xlu0 %v4669
      %v4701 = vpop.xlane.xlu0 %4700
      %4702 = vadd.xlane.f32.xlu0 %v4671
      %v4703 = vpop.xlane.xlu0 %4702
      %4704 = vadd.xlane.f32.xlu0 %v4673
      %v4705 = vpop.xlane.xlu0 %4704
      %4706 = vadd.xlane.f32.xlu0 %v4675
      %v4707 = vpop.xlane.xlu0 %4706
      %4708 = vadd.xlane.f32.xlu0 %v4677
      %v4709 = vpop.xlane.xlu0 %4708
      %4710 = vadd.xlane.f32.xlu0 %v4679
      %v4711 = vpop.xlane.xlu0 %4710
      %4712 = vadd.xlane.f32.xlu0 %v4681
      %v4713 = vpop.xlane.xlu0 %4712
      %4714 = vadd.xlane.f32.xlu0 %v4683
      %v4715 = vpop.xlane.xlu0 %4714
      %4716 = vadd.xlane.f32.xlu0 %v4685
      %v4717 = vpop.xlane.xlu0 %4716
      %4718 = vadd.xlane.f32.xlu0 %v4687
      %v4719 = vpop.xlane.xlu0 %4718
      %4720 = vadd.xlane.f32.xlu0 %v4689
      %v4721 = vpop.xlane.xlu0 %4720
      %v4722 = vrcp.pop %v4691
      %v4723 = vrcp.pop %v4693
      %v4724 = vrcp.pop %v4695
      %v4725 = vrcp.pop %v4697
      %v4726 = vrcp.pop %v4699
      %v4727 = vrcp.pop %v4701
      %v4728 = vrcp.pop %v4703
      %v4729 = vrcp.pop %v4705
      %v4730 = vrcp.pop %v4707
      %v4731 = vrcp.pop %v4709
      %v4732 = vrcp.pop %v4711
      %v4733 = vrcp.pop %v4713
      %v4734 = vrcp.pop %v4715
      %v4735 = vrcp.pop %v4717
      %v4736 = vrcp.pop %v4719
      %v4737 = vrcp.pop %v4721
      %v4738 = vmul.f32 %v4659, %v4722
      %v4739 = vmul.f32 %v4661, %v4723
      %v4740 = vmul.f32 %v4663, %v4724
      %v4741 = vmul.f32 %v4665, %v4725
      %v4742 = vmul.f32 %v4667, %v4726
      %v4743 = vmul.f32 %v4669, %v4727
      %v4744 = vmul.f32 %v4671, %v4728
      %v4745 = vmul.f32 %v4673, %v4729
      %v4746 = vmul.f32 %v4675, %v4730
      %v4747 = vmul.f32 %v4677, %v4731
      %v4748 = vmul.f32 %v4679, %v4732
      %v4749 = vmul.f32 %v4681, %v4733
      %v4750 = vmul.f32 %v4683, %v4734
      %v4751 = vmul.f32 %v4685, %v4735
      %v4752 = vmul.f32 %v4687, %v4736
      %v4753 = vmul.f32 %v4689, %v4737
      %v4754 = vpack.c.bf16 %v4739, %v4738
      %v4755 = vpack.c.bf16 %v4741, %v4740
      %v4756 = vpack.c.bf16 %v4743, %v4742
      %v4757 = vpack.c.bf16 %v4745, %v4744
      %v4758 = vpack.c.bf16 %v4747, %v4746
      %v4759 = vpack.c.bf16 %v4749, %v4748
      %v4760 = vpack.c.bf16 %v4751, %v4750
      %v4761 = vpack.c.bf16 %v4753, %v4752
      %4762 = vrot.lane.b32.xlu0 %v2654, 104
      %v4763 = vpop.permute.xlu0 %4762
      %4764 = vrot.lane.b32.xlu0 %v2655, 104
      %v4765 = vpop.permute.xlu0 %4764
      %4766 = vrot.lane.b32.xlu0 %v2656, 104
      %v4767 = vpop.permute.xlu0 %4766
      %4768 = vrot.lane.b32.xlu0 %v2657, 104
      %v4769 = vpop.permute.xlu0 %4768
      %4770 = vrot.lane.b32.xlu0 %v2658, 104
      %v4771 = vpop.permute.xlu0 %4770
      %4772 = vrot.lane.b32.xlu0 %v2659, 104
      %v4773 = vpop.permute.xlu0 %4772
      %4774 = vrot.lane.b32.xlu0 %v2660, 104
      %v4775 = vpop.permute.xlu0 %4774
      %4776 = vrot.lane.b32.xlu0 %v2661, 104
      %v4777 = vpop.permute.xlu0 %4776
      %4786 = vmatprep.subr.bf16.mxu0 0
      %4787 = vmatpush1.bf16.msra.mxu0 %v4763
      %4788 = vmatprep.subr.bf16.mxu0 0
      %4789 = vmatpush1.bf16.msra.mxu0 %v4765
      %4790 = vmatprep.subr.bf16.mxu0 0
      %4791 = vmatpush1.bf16.msra.mxu0 %v4767
      %4792 = vmatprep.subr.bf16.mxu0 0
      %4793 = vmatpush1.bf16.msra.mxu0 %v4769
      %4794 = vmatprep.subr.bf16.mxu0 0
      %4795 = vmatpush1.bf16.msra.mxu0 %v4771
      %4796 = vmatprep.subr.bf16.mxu0 0
      %4797 = vmatpush1.bf16.msra.mxu0 %v4773
      %4798 = vmatprep.subr.bf16.mxu0 0
      %4799 = vmatpush1.bf16.msra.mxu0 %v4775
      %4800 = vmatprep.subr.bf16.mxu0 0
      %4801 = vmatpush1.bf16.msra.mxu0 %v4777
      %4802 = vmatprep.subr.bf16.mxu0 0
      %4803 = vmatpush1.bf16.msra.mxu0 0
      %4804 = vmatprep.subr.bf16.mxu0 0
      %4805 = vmatpush1.bf16.msra.mxu0 0
      %4806 = vmatprep.subr.bf16.mxu0 0
      %4807 = vmatpush1.bf16.msra.mxu0 0
      %4808 = vmatprep.subr.bf16.mxu0 0
      %4809 = vmatpush1.bf16.msra.mxu0 0
      %4810 = vmatprep.subr.bf16.mxu0 0
      %4811 = vmatpush1.bf16.msra.mxu0 0
      %4812 = vmatprep.subr.bf16.mxu0 0
      %4813 = vmatpush1.bf16.msra.mxu0 0
      %4814 = vmatprep.subr.bf16.mxu0 0
      %4815 = vmatpush1.bf16.msra.mxu0 0
      %4816 = vmatprep.subr.bf16.mxu0 0
      %4817 = vmatpush1.bf16.msra.mxu0 0
      %4818 = vmatprep.mubr.bf16.mxu0 0
      %4819 = vmatmul.mubr.bf16.gmra.mrb[0].mxu0 %v4754
      %v4820 = vpop.f32.mrb[0].mxu0
      %v4821 = vadd.f32 0.0, %v4820
      %v4822 = vpop.f32.mrb[0].mxu0
      %v4823 = vpop.f32.mrb[0].mxu0
      %v4824 = vadd.f32 0.0, %v4823
      %v4825 = vpop.f32.mrb[0].mxu0
      %4826 = vmatprep.mubr.bf16.mxu0 0
      %4827 = vmatmul.mubr.bf16.gmra.mrb[0].mxu0 %v4755
      %v4828 = vpop.f32.mrb[0].mxu0
      %v4829 = vadd.f32 0.0, %v4828
      %v4830 = vpop.f32.mrb[0].mxu0
      %v4831 = vpop.f32.mrb[0].mxu0
      %v4832 = vadd.f32 0.0, %v4831
      %v4833 = vpop.f32.mrb[0].mxu0
      %4834 = vmatprep.mubr.bf16.mxu0 0
      %4835 = vmatmul.mubr.bf16.gmra.mrb[0].mxu0 %v4756
      %v4836 = vpop.f32.mrb[0].mxu0
      %v4837 = vadd.f32 0.0, %v4836
      %v4838 = vpop.f32.mrb[0].mxu0
      %v4839 = vpop.f32.mrb[0].mxu0
      %v4840 = vadd.f32 0.0, %v4839
      %v4841 = vpop.f32.mrb[0].mxu0
      %4842 = vmatprep.mubr.bf16.mxu0 0
      %4843 = vmatmul.mubr.bf16.gmra.mrb[0].mxu0 %v4757
      %v4844 = vpop.f32.mrb[0].mxu0
      %v4845 = vadd.f32 0.0, %v4844
      %v4846 = vpop.f32.mrb[0].mxu0
      %v4847 = vpop.f32.mrb[0].mxu0
      %v4848 = vadd.f32 0.0, %v4847
      %v4849 = vpop.f32.mrb[0].mxu0
      %4850 = vmatprep.mubr.bf16.mxu0 0
      %4851 = vmatmul.mubr.bf16.gmra.mrb[0].mxu0 %v4758
      %v4852 = vpop.f32.mrb[0].mxu0
      %v4853 = vadd.f32 0.0, %v4852
      %v4854 = vpop.f32.mrb[0].mxu0
      %v4855 = vpop.f32.mrb[0].mxu0
      %v4856 = vadd.f32 0.0, %v4855
      %v4857 = vpop.f32.mrb[0].mxu0
      %4858 = vmatprep.mubr.bf16.mxu0 0
      %4859 = vmatmul.mubr.bf16.gmra.mrb[0].mxu0 %v4759
      %v4860 = vpop.f32.mrb[0].mxu0
      %v4861 = vadd.f32 0.0, %v4860
      %v4862 = vpop.f32.mrb[0].mxu0
      %v4863 = vpop.f32.mrb[0].mxu0
      %v4864 = vadd.f32 0.0, %v4863
      %v4865 = vpop.f32.mrb[0].mxu0
      %4866 = vmatprep.mubr.bf16.mxu0 0
      %4867 = vmatmul.mubr.bf16.gmra.mrb[0].mxu0 %v4760
      %v4868 = vpop.f32.mrb[0].mxu0
      %v4869 = vadd.f32 0.0, %v4868
      %v4870 = vpop.f32.mrb[0].mxu0
      %v4871 = vpop.f32.mrb[0].mxu0
      %v4872 = vadd.f32 0.0, %v4871
      %v4873 = vpop.f32.mrb[0].mxu0
      %4874 = vmatprep.mubr.bf16.mxu0 0
      %4875 = vmatmul.mubr.bf16.gmra.mrb[0].mxu0 %v4761
      %v4876 = vpop.f32.mrb[0].mxu0
      %v4877 = vadd.f32 0.0, %v4876
      %v4878 = vpop.f32.mrb[0].mxu0
      %v4879 = vpop.f32.mrb[0].mxu0
      %v4880 = vadd.f32 0.0, %v4879
      %v4881 = vpop.f32.mrb[0].mxu0
      %4882 = vdwg.mxu0
      %v4883 = vpack.c.bf16 %v4824, %v4821
      %v4884 = vpack.c.bf16 %v4832, %v4829
      %v4885 = vpack.c.bf16 %v4840, %v4837
      %v4886 = vpack.c.bf16 %v4848, %v4845
      %v4887 = vpack.c.bf16 %v4856, %v4853
      %v4888 = vpack.c.bf16 %v4864, %v4861
      %v4889 = vpack.c.bf16 %v4872, %v4869
      %v4890 = vpack.c.bf16 %v4880, %v4877
      %v4891 = vld [vmem:[%s7 + $0xc] sm:$0xf]
      %v4893 = vsel %vm2662, %v4883, 0
      %v4896 = vsel %vm2662, %v4884, 0
      %v4899 = vsel %vm2662, %v4885, 0
      %v4902 = vsel %vm2662, %v4886, 0
      %v4905 = vsel %vm2662, %v4887, 0
      %v4908 = vsel %vm2662, %v4888, 0
      %v4911 = vsel %vm2662, %v4889, 0
      %v4914 = vsel %vm2662, %v4890, 0
      %v4917 = vsel %vm3605, %v4891, 0
      %4919 = vmatprep.subr.bf16.mxu0 0
      %4920 = vmatpush1.bf16.msra.mxu0 %v4917
      %4921 = vmatprep.subr.bf16.mxu0 0
      %4922 = vmatpush1.bf16.msra.mxu0 0
      %4923 = vmatprep.subr.bf16.mxu0 0
      %4924 = vmatpush1.bf16.msra.mxu0 0
      %4925 = vmatprep.subr.bf16.mxu0 0
      %4926 = vmatpush1.bf16.msra.mxu0 0
      %4927 = vmatprep.subr.bf16.mxu0 0
      %4928 = vmatpush1.bf16.msra.mxu0 0
      %4929 = vmatprep.subr.bf16.mxu0 0
      %4930 = vmatpush1.bf16.msra.mxu0 0
      %4931 = vmatprep.subr.bf16.mxu0 0
      %4932 = vmatpush1.bf16.msra.mxu0 0
      %4933 = vmatprep.subr.bf16.mxu0 0
      %4934 = vmatpush1.bf16.msra.mxu0 0
      %4935 = vmatprep.subr.bf16.mxu0 0
      %4936 = vmatpush1.bf16.msra.mxu0 0
      %4937 = vmatprep.subr.bf16.mxu0 0
      %4938 = vmatpush1.bf16.msra.mxu0 0
      %4939 = vmatprep.subr.bf16.mxu0 0
      %4940 = vmatpush1.bf16.msra.mxu0 0
      %4941 = vmatprep.subr.bf16.mxu0 0
      %4942 = vmatpush1.bf16.msra.mxu0 0
      %4943 = vmatprep.subr.bf16.mxu0 0
      %4944 = vmatpush1.bf16.msra.mxu0 0
      %4945 = vmatprep.subr.bf16.mxu0 0
      %4946 = vmatpush1.bf16.msra.mxu0 0
      %4947 = vmatprep.subr.bf16.mxu0 0
      %4948 = vmatpush1.bf16.msra.mxu0 0
      %4949 = vmatprep.subr.bf16.mxu0 0
      %4950 = vmatpush1.bf16.msra.mxu0 0
      %4951 = vmatprep.mubr.bf16.mxu0 0
      %4952 = vmatmul.mubr.bf16.gmra.mrb[0].mxu0 %v4893
      %v4953 = vpop.f32.mrb[0].mxu0
      %v4954 = vadd.f32 0.0, %v4953
      %v4955 = vpop.f32.mrb[0].mxu0
      %v4956 = vpop.f32.mrb[0].mxu0
      %v4957 = vadd.f32 0.0, %v4956
      %v4958 = vpop.f32.mrb[0].mxu0
      %4959 = vmatprep.mubr.bf16.mxu0 0
      %4960 = vmatmul.mubr.bf16.gmra.mrb[0].mxu0 %v4896
      %v4961 = vpop.f32.mrb[0].mxu0
      %v4962 = vadd.f32 0.0, %v4961
      %v4963 = vpop.f32.mrb[0].mxu0
      %v4964 = vpop.f32.mrb[0].mxu0
      %v4965 = vadd.f32 0.0, %v4964
      %v4966 = vpop.f32.mrb[0].mxu0
      %4967 = vmatprep.mubr.bf16.mxu0 0
      %4968 = vmatmul.mubr.bf16.gmra.mrb[0].mxu0 %v4899
      %v4969 = vpop.f32.mrb[0].mxu0
      %v4970 = vadd.f32 0.0, %v4969
      %v4971 = vpop.f32.mrb[0].mxu0
      %v4972 = vpop.f32.mrb[0].mxu0
      %v4973 = vadd.f32 0.0, %v4972
      %v4974 = vpop.f32.mrb[0].mxu0
      %4975 = vmatprep.mubr.bf16.mxu0 0
      %4976 = vmatmul.mubr.bf16.gmra.mrb[0].mxu0 %v4902
      %v4977 = vpop.f32.mrb[0].mxu0
      %v4978 = vadd.f32 0.0, %v4977
      %v4979 = vpop.f32.mrb[0].mxu0
      %v4980 = vpop.f32.mrb[0].mxu0
      %v4981 = vadd.f32 0.0, %v4980
      %v4982 = vpop.f32.mrb[0].mxu0
      %4983 = vmatprep.mubr.bf16.mxu0 0
      %4984 = vmatmul.mubr.bf16.gmra.mrb[0].mxu0 %v4905
      %v4985 = vpop.f32.mrb[0].mxu0
      %v4986 = vadd.f32 0.0, %v4985
      %v4987 = vpop.f32.mrb[0].mxu0
      %v4988 = vpop.f32.mrb[0].mxu0
      %v4989 = vpop.f32.mrb[0].mxu0
      %4990 = vmatprep.mubr.bf16.mxu0 0
      %4991 = vmatmul.mubr.bf16.gmra.mrb[0].mxu0 %v4908
      %v4992 = vpop.f32.mrb[0].mxu0
      %v4993 = vpop.f32.mrb[0].mxu0
      %v4994 = vpop.f32.mrb[0].mxu0
      %v4995 = vpop.f32.mrb[0].mxu0
      %4996 = vmatprep.mubr.bf16.mxu0 0
      %4997 = vmatmul.mubr.bf16.gmra.mrb[0].mxu0 %v4911
      %v4998 = vpop.f32.mrb[0].mxu0
      %v4999 = vpop.f32.mrb[0].mxu0
      %v5000 = vpop.f32.mrb[0].mxu0
      %v5001 = vpop.f32.mrb[0].mxu0
      %5002 = vmatprep.mubr.bf16.mxu0 0
      %5003 = vmatmul.mubr.bf16.gmra.mrb[0].mxu0 %v4914
      %v5004 = vpop.f32.mrb[0].mxu0
      %v5005 = vpop.f32.mrb[0].mxu0
      %v5006 = vpop.f32.mrb[0].mxu0
      %v5007 = vpop.f32.mrb[0].mxu0
      %5008 = vdwg.mxu0
      %v5009 = vadd.f32 %v4408, %v4954
      %v5010 = vadd.f32 %v4409, %v4957
      %v5011 = vadd.f32 %v4410, %v4962
      %v5012 = vadd.f32 %v4411, %v4965
      %v5013 = vadd.f32 %v4412, %v4970
      %v5014 = vadd.f32 %v4413, %v4973
      %v5015 = vadd.f32 %v4414, %v4978
      %v5016 = vadd.f32 %v4415, %v4981
      %v5017 = vadd.f32 %v4416, %v4986
      %v5018 = vld [vmem:[%s8] sm:$0x1]
      %v5020 = vlaneseq
      %v5021 = vshrl.u32 %v5020, 7
      %v5022 = vsub.s32 0, %v5021
      %v5023 = vrot.slane %v5018, %v5022
      %v5025 = vadd.f32 %v5009, %v5023
      %v5026 = vadd.f32 %v5010, %v5023
      %v5027 = vadd.f32 %v5011, %v5023
      %v5028 = vadd.f32 %v5012, %v5023
      %v5029 = vadd.f32 %v5013, %v5023
      %v5030 = vadd.f32 %v5014, %v5023
      %v5031 = vadd.f32 %v5015, %v5023
      %v5032 = vadd.f32 %v5016, %v5023
      %v5033 = vadd.f32 %v5017, %v5023
      %5034 = vst.msk [vmem:[%s332] sm:$0xff] %vm343, %v5025
      %5035 = vst.msk [vmem:[%s332 + $0x8] sm:$0xff] %vm343, %v5026
      %5036 = vst.msk [vmem:[%s332 + $0x10] sm:$0xff] %vm343, %v5027
      %5037 = vst.msk [vmem:[%s332 + $0x18] sm:$0xff] %vm343, %v5028
      %5038 = vst.msk [vmem:[%s332 + $0x20] sm:$0xff] %vm343, %v5029
      %5039 = vst.msk [vmem:[%s332 + $0x28] sm:$0xff] %vm343, %v5030
      %5040 = vst.msk [vmem:[%s332 + $0x30] sm:$0xff] %vm343, %v5031
      %5041 = vst.msk [vmem:[%s332 + $0x38] sm:$0xff] %vm343, %v5032
      %5042 = vst.msk [vmem:[%s332 + $0x40] sm:$0x1] %vm2054, %v5033
      %p5043 = scmp.lt.s32.totalorder %s20, 1
      %s5044 = scalar_select %p5043, %s20, 1
      %s5045 = smul.addr %s5044, 9
      %s5046 = smul.addr %s5045, 8
      %s5047 = scalar_lea.vmem %s9, %s5046
      // Predicated region
      $region57: #{tpu_custom_call.1} parent=55 // pred_check
        %p5048 = pneg %p232
      $region58: #{tpu_custom_call.1} parent=55 // pred_check_branch
        %5050 = sbr.rel (%p5048) target = $region60
      $region59: #{tpu_custom_call.1} parent=55 // pred_region
        _
      $region60: #{tpu_custom_call.1} parent=55 // pred_fallthru
        _
    $region56: #{tpu_custom_call.1} parent=5 // pred_fallthru
      _
    %p5051 = scmp.le.s32.totalorder 2, %s15
    // Predicated region
    $region61: #{tpu_custom_call.1} parent=5 // pred_check
      %p5052 = pneg %p5051
    $region62: #{tpu_custom_call.1} parent=5 // pred_check_branch
      %5054 = sbr.rel (%p5052) target = $region64
    $region63: #{tpu_custom_call.1} parent=5 // pred_region
      %s5055 = ssub.s32 %s15, 2
      // Predicated region
      $region65: #{tpu_custom_call.1} parent=63 // pred_check
        %p5056 = pneg %p238
      $region66: #{tpu_custom_call.1} parent=63 // pred_check_branch
        %5058 = sbr.rel (%p5056) target = $region68
      $region67: #{tpu_custom_call.1} parent=63 // pred_region
        %p5059 = scmp.lt.s32.totalorder %s21, 1
        %s5060 = scalar_select %p5059, %s21, 1
        %s5061 = smul.addr %s5060, 9
        %s5062 = smul.addr %s5061, 8
        %s5063 = scalar_lea.vmem %s9, %s5062
      $region68: #{tpu_custom_call.1} parent=63 // pred_fallthru
        _
    $region64: #{tpu_custom_call.1} parent=5 // pred_fallthru
      _
  $region6: #{tpu_custom_call.1} parent=0 // loop_footer
    %s19 = sadd.s32 1, %s15
  $region7: #{tpu_custom_call.1} parent=0 // loop_footer_branch
    %14 = sbr.rel target = $region3
  $region8: #{tpu_custom_call.1} parent=0 // loop_exit
    _

</llo_original>
